<compile_context>
chip_gen: v6e
topology: v6e:2x2x1
jax: 0.10.0
libtpu: 0.0.40
codegen_flags: <defaults>
</compile_context>

<pallas_src>
import functools

import jax
import jax.numpy as jnp
from jax.experimental import pallas as pl
from jax.experimental.pallas import tpu as pltpu


def _round_up(v, m):
    return (v + m - 1) // m * m


# ---------------------------------------------------------------------------
# Kernel 1: conv for one image per grid step + per-image partial BN statistics.
# ---------------------------------------------------------------------------
def conv_stats_kernel(x_ref, w_ref, out_ref, sum_ref, sumsq_ref, *,
                      H, W, Wp, K, cp):
    # x_ref    : (Hp*Wp, Cin) bf16   flattened zero-padded image rows
    # w_ref    : (K, Cin, K*cp) bf16 folded weights  [kh, ci, kw*cp + co]
    # out_ref  : (H*W, cp) f32       conv output rows for this image
    # sum_ref / sumsq_ref : (1, 8, cp) f32  per-image partial batch-norm stats
    acc_full = None
    for kh in range(K):
        # aligned leading-dim (sublane) slice: kh*Wp is a multiple of 16
        lhs = x_ref[kh * Wp:(kh + H) * Wp, :]                 # (H*Wp, Cin) bf16
        z = jnp.dot(lhs, w_ref[kh],                           # (H*Wp, K*cp)
                    preferred_element_type=jnp.float32)       # f32 accumulation
        acc_full = z if acc_full is None else acc_full + z

    # Wp % 16 == 0 and cp % 128 == 0 -> layout-clean reshape / lane slices.
    a3 = acc_full.reshape(H, Wp, K * cp)
    acc = a3[:, 0:W, 0:cp]
    for kw in range(1, K):
        # kw shift applied on the output side (2 small slices instead of 9
        # misaligned input relayouts); lane offsets are multiples of 128.
        acc = acc + a3[:, kw:kw + W, kw * cp:(kw + 1) * cp]
    acc2 = acc.reshape(H * W, cp)                             # W % 8 == 0

    out_ref[...] = acc2

    # Per-image partial sums (each grid step writes its OWN rows -> the batch
    # axis can be 'parallel' without a race; final tiny reduction done in glue).
    s = jnp.sum(acc2, axis=0, keepdims=True)                  # (1, cp)
    ss = jnp.sum(acc2 * acc2, axis=0, keepdims=True)          # (1, cp)
    sum_ref[...] = jnp.broadcast_to(s.reshape(1, 1, cp), sum_ref.shape)
    sumsq_ref[...] = jnp.broadcast_to(ss.reshape(1, 1, cp), sumsq_ref.shape)


# ---------------------------------------------------------------------------
# Kernel 2: BatchNorm affine (pre-folded scale/shift), lane-dense, in place.
# ---------------------------------------------------------------------------
def bn_apply_kernel(y_ref, scale_ref, shift_ref, out_ref):
    # y_ref: (TR, cp) f32; scale/shift: (1, cp) -> broadcast over rows
    out_ref[...] = y_ref[...] * scale_ref[...] + shift_ref[...]


# ---------------------------------------------------------------------------
# Wrapper: ConvBlock forward (kernel_size=3, padding=1, stride=1, dilation=1,
#          conv bias disabled, norm=True, activation=None -> Identity).
# ---------------------------------------------------------------------------
@jax.jit
def conv_block_forward(x_nchw, w_oihw, gamma, beta, eps=1e-5):
    N, Cin, H, W = x_nchw.shape
    Cout, _, K, _ = w_oihw.shape
    pad = K // 2                        # module default: kernel_size=3, padding=1
    cp = _round_up(Cout, 128)           # lane-dense channel dim
    Hp = H + 2 * pad
    Wp = _round_up(W + 2 * pad, 16)     # bf16 sublane tile -> aligned kh slices
    assert W % 8 == 0, "this kernel assumes the spatial width is a multiple of 8"

    # ---- layout prep (boundary glue) --------------------------------------
    # TODO(synk): keep the surrounding model NHWC end-to-end and fold the zero
    #             padding into the kernel to remove these wrapper HBM passes.
    x = jnp.transpose(x_nchw, (0, 2, 3, 1))                         # NHWC
    xp = jnp.pad(x, ((0, 0), (pad, pad), (pad, Wp - W - pad), (0, 0)))
    x_flat = xp.reshape(N, Hp * Wp, Cin).astype(jnp.bfloat16)

    # weights OIHW -> folded (K, Cin, K*cp) with layout [kh, ci, kw*cp + co]
    w = jnp.transpose(w_oihw, (2, 1, 3, 0))                         # (K,Cin,K,Cout)
    w = jnp.pad(w, ((0, 0), (0, 0), (0, 0), (0, cp - Cout)))
    w_folded = w.reshape(K, Cin, K * cp).astype(jnp.bfloat16)

    kernel1 = functools.partial(conv_stats_kernel, H=H, W=W, Wp=Wp, K=K, cp=cp)
    conv_flat, psum, psumsq = pl.pallas_call(
        kernel1,
        out_shape=(
            jax.ShapeDtypeStruct((N * H * W, cp), jnp.float32),
            jax.ShapeDtypeStruct((N, 8, cp), jnp.float32),
            jax.ShapeDtypeStruct((N, 8, cp), jnp.float32),
        ),
        grid_spec=pltpu.PrefetchScalarGridSpec(
            num_scalar_prefetch=0,
            grid=(N,),
            in_specs=[
                pl.BlockSpec((pl.Squeezed(), Hp * Wp, Cin), lambda b: (b, 0, 0)),
                pl.BlockSpec((K, Cin, K * cp), lambda b: (0, 0, 0)),
            ],
            out_specs=(
                pl.BlockSpec((H * W, cp), lambda b: (b, 0)),
                pl.BlockSpec((1, 8, cp), lambda b: (b, 0, 0)),
                pl.BlockSpec((1, 8, cp), lambda b: (b, 0, 0)),
            ),
        ),
        compiler_params=pltpu.CompilerParams(
            dimension_semantics=("parallel",),       # images across TCs on v7x
            vmem_limit_bytes=48 * 1024 * 1024,       # whole-image blocks (v5e default 16MiB)
        ),
    )(x_flat, w_folded)
    # TODO(synk): for large H*W add a spatial (halo) grid axis so per-step
    #             blocks stay well under v7x's 64 MiB VMEM.

    # ---- training-mode BatchNorm2d statistics (tiny O(cp) glue) ------------
    cnt = jnp.float32(N * H * W)
    csum = psum[:, 0, :].sum(axis=0)                  # (cp,)
    csq = psumsq[:, 0, :].sum(axis=0)                 # (cp,)
    mean = csum / cnt
    # biased variance (training BN); clamped to guard E[x^2]-m^2 cancellation
    var = jnp.maximum(csq / cnt - mean * mean, 0.0)
    gamma_p = jnp.pad(gamma.astype(jnp.float32), (0, cp - Cout))
    beta_p = jnp.pad(beta.astype(jnp.float32), (0, cp - Cout))
    scale = gamma_p * jax.lax.rsqrt(var + eps)
    shift = beta_p - mean * scale

    # ---- BN affine: lane-dense, large row tiles, applied in place ----------
    rows = N * H * W
    # biggest row tile that divides `rows` and keeps the f32 tile <= ~4 MiB
    # (double-buffered input + aliased output stays well under scoped VMEM).
    vmem_row_cap = max(8, (4 * 1024 * 1024) // (cp * 4))
    tr = next((t for t in (4096, 2048, 1024, 512, 256, 128, 64, 32, 16, 8)
               if t <= vmem_row_cap and rows % t == 0), rows)
    y_flat = pl.pallas_call(
        bn_apply_kernel,
        out_shape=jax.ShapeDtypeStruct((rows, cp), jnp.float32),
        grid_spec=pltpu.PrefetchScalarGridSpec(
            num_scalar_prefetch=0,
            grid=(rows // tr,),
            in_specs=[
                pl.BlockSpec((tr, cp), lambda i: (i, 0)),
                pl.BlockSpec((1, cp), lambda i: (0, 0)),
                pl.BlockSpec((1, cp), lambda i: (0, 0)),
            ],
            out_specs=pl.BlockSpec((tr, cp), lambda i: (i, 0)),
        ),
        compiler_params=pltpu.CompilerParams(dimension_semantics=("parallel",)),
        input_output_aliases={0: 0},                  # in-place over conv output
    )(conv_flat, scale.reshape(1, cp), shift.reshape(1, cp))

    # activation=None -> nn.Identity()
    y = y_flat.reshape(N, H, W, cp)[..., :Cout]
    return jnp.transpose(y, (0, 3, 1, 2))             # back to NCHW


# ---------------------------------------------------------------------------
# Pure-JAX reference (mirrors the bf16 MXU inputs / f32 accumulation).
# ---------------------------------------------------------------------------
def conv_block_ref(x_nchw, w_oihw, gamma, beta, eps=1e-5):
    conv = jax.lax.conv_general_dilated(
        x_nchw.astype(jnp.bfloat16), w_oihw.astype(jnp.bfloat16),
        window_strides=(1, 1), padding=((1, 1), (1, 1)),
        dimension_numbers=("NCHW", "OIHW", "NCHW"),
        preferred_element_type=jnp.float32)
    mean = conv.mean(axis=(0, 2, 3), keepdims=True)
    var = conv.var(axis=(0, 2, 3), keepdims=True)     # biased var (training BN)
    g = gamma.reshape(1, -1, 1, 1)
    b = beta.reshape(1, -1, 1, 1)
    return (conv - mean) * jax.lax.rsqrt(var + eps) * g + b


if __name__ == "__main__":
    # Small, deterministic example (NCHW, matching the PyTorch module's layout).
    N, Cin, Cout, H, W, K = 2, 4, 8, 16, 16, 3
    key = jax.random.PRNGKey(0)
    kx, kw = jax.random.split(key)
    x = jax.random.normal(kx, (N, Cin, H, W), dtype=jnp.float32)
    w = jax.random.normal(kw, (Cout, Cin, K, K), dtype=jnp.float32) * 0.1
    gamma = jnp.ones((Cout,), jnp.float32)   # BatchNorm2d default: weight = 1
    beta = jnp.zeros((Cout,), jnp.float32)   # BatchNorm2d default: bias = 0

    out = jax.block_until_ready(conv_block_forward(x, w, gamma, beta))
    ref = jax.block_until_ready(conv_block_ref(x, w, gamma, beta))

    assert out.shape == (N, Cout, H, W), out.shape
    max_err = float(jnp.max(jnp.abs(out - ref)))
    assert jnp.allclose(out, ref, rtol=2e-3, atol=2e-3), max_err
    print("KERNEL_OK")
</pallas_src>

<mosaic_0001>
module attributes {stable_mosaic.version = 11 : i64} {
  func.func @conv_stats_kernel(%arg0: i32, %arg1: memref<1x576x4xbf16, #tpu.memory_space<vmem>>, %arg2: memref<3x4x384xbf16, #tpu.memory_space<vmem>>, %arg3: memref<256x128xf32, #tpu.memory_space<vmem>>, %arg4: memref<1x8x128xf32, #tpu.memory_space<vmem>>, %arg5: memref<1x8x128xf32, #tpu.memory_space<vmem>>) attributes {dimension_semantics = [#tpu.dimension_semantics<parallel>], iteration_bounds = array<i64: 2>, scalar_prefetch = 0 : i64, scratch_operands = 0 : i64, tpu.core_type = #tpu.core_type<tc>, window_params = [{transform_indices = @transform_0, window_bounds = array<i64: 1, 576, 4>}, {pipeline_mode = #tpu.pipeline_mode<synchronous>, transform_indices = @transform_1, window_bounds = array<i64: 3, 4, 384>}, {transform_indices = @transform_2, window_bounds = array<i64: 256, 128>}, {transform_indices = @transform_3, window_bounds = array<i64: 1, 8, 128>}, {transform_indices = @transform_4, window_bounds = array<i64: 1, 8, 128>}]} {
    %c0 = arith.constant 0 : index
    %c0_0 = arith.constant 0 : index
    %c0_1 = arith.constant 0 : index
    %0 = vector.load %arg1[%c0, %c0_0, %c0_1] : memref<1x576x4xbf16, #tpu.memory_space<vmem>>, vector<1x512x4xbf16>
    %1 = vector.shape_cast %0 : vector<1x512x4xbf16> to vector<512x4xbf16>
    %c0_2 = arith.constant 0 : index
    %c0_3 = arith.constant 0 : index
    %c0_4 = arith.constant 0 : index
    %2 = vector.load %arg2[%c0_2, %c0_3, %c0_4] : memref<3x4x384xbf16, #tpu.memory_space<vmem>>, vector<1x4x384xbf16>
    %3 = vector.shape_cast %2 : vector<1x4x384xbf16> to vector<4x384xbf16>
    %cst = arith.constant dense<0.000000e+00> : vector<512x384xf32>
    %4 = tpu.matmul %1, %3, %cst {dimension_numbers = #tpu.dot_dimension_numbers<[1], [0], [0], [1], [0, 0, 1, 1], [], []>} : vector<512x4xbf16>, vector<4x384xbf16>, vector<512x384xf32> -> vector<512x384xf32>
    %c0_5 = arith.constant 0 : index
    %c32 = arith.constant 32 : index
    %c0_6 = arith.constant 0 : index
    %5 = vector.load %arg1[%c0_5, %c32, %c0_6] : memref<1x576x4xbf16, #tpu.memory_space<vmem>>, vector<1x512x4xbf16>
    %6 = vector.shape_cast %5 : vector<1x512x4xbf16> to vector<512x4xbf16>
    %c1 = arith.constant 1 : index
    %c0_7 = arith.constant 0 : index
    %c0_8 = arith.constant 0 : index
    %7 = vector.load %arg2[%c1, %c0_7, %c0_8] : memref<3x4x384xbf16, #tpu.memory_space<vmem>>, vector<1x4x384xbf16>
    %8 = vector.shape_cast %7 : vector<1x4x384xbf16> to vector<4x384xbf16>
    %cst_9 = arith.constant dense<0.000000e+00> : vector<512x384xf32>
    %9 = tpu.matmul %6, %8, %cst_9 {dimension_numbers = #tpu.dot_dimension_numbers<[1], [0], [0], [1], [0, 0, 1, 1], [], []>} : vector<512x4xbf16>, vector<4x384xbf16>, vector<512x384xf32> -> vector<512x384xf32>
    %10 = arith.addf %4, %9 : vector<512x384xf32>
    %c0_10 = arith.constant 0 : index
    %c64 = arith.constant 64 : index
    %c0_11 = arith.constant 0 : index
    %11 = vector.load %arg1[%c0_10, %c64, %c0_11] : memref<1x576x4xbf16, #tpu.memory_space<vmem>>, vector<1x512x4xbf16>
    %12 = vector.shape_cast %11 : vector<1x512x4xbf16> to vector<512x4xbf16>
    %c2 = arith.constant 2 : index
    %c0_12 = arith.constant 0 : index
    %c0_13 = arith.constant 0 : index
    %13 = vector.load %arg2[%c2, %c0_12, %c0_13] : memref<3x4x384xbf16, #tpu.memory_space<vmem>>, vector<1x4x384xbf16>
    %14 = vector.shape_cast %13 : vector<1x4x384xbf16> to vector<4x384xbf16>
    %cst_14 = arith.constant dense<0.000000e+00> : vector<512x384xf32>
    %15 = tpu.matmul %12, %14, %cst_14 {dimension_numbers = #tpu.dot_dimension_numbers<[1], [0], [0], [1], [0, 0, 1, 1], [], []>} : vector<512x4xbf16>, vector<4x384xbf16>, vector<512x384xf32> -> vector<512x384xf32>
    %16 = arith.addf %10, %15 : vector<512x384xf32>
    %17 = vector.shape_cast %16 : vector<512x384xf32> to vector<16x32x384xf32>
    %18 = vector.extract_strided_slice %17 {offsets = [0, 0, 0], sizes = [16, 16, 128], strides = [1, 1, 1]} : vector<16x32x384xf32> to vector<16x16x128xf32>
    %19 = vector.extract_strided_slice %17 {offsets = [0, 1, 128], sizes = [16, 16, 128], strides = [1, 1, 1]} : vector<16x32x384xf32> to vector<16x16x128xf32>
    %20 = arith.addf %18, %19 : vector<16x16x128xf32>
    %21 = vector.extract_strided_slice %17 {offsets = [0, 2, 256], sizes = [16, 16, 128], strides = [1, 1, 1]} : vector<16x32x384xf32> to vector<16x16x128xf32>
    %22 = arith.addf %20, %21 : vector<16x16x128xf32>
    %23 = vector.shape_cast %22 : vector<16x16x128xf32> to vector<256x128xf32>
    %c0_15 = arith.constant 0 : index
    %c0_16 = arith.constant 0 : index
    %24 = vector.load %arg3[%c0_15, %c0_16] : memref<256x128xf32, #tpu.memory_space<vmem>>, vector<256x128xf32>
    tpu.vector_store %arg3[%c0_15, %c0_16], %23 {strides = array<i32>} : memref<256x128xf32, #tpu.memory_space<vmem>>, vector<256x128xf32>,
    %cst_17 = arith.constant dense<0.000000e+00> : vector<128xf32>
    %25 = vector.multi_reduction <add>, %23, %cst_17 [0] : vector<256x128xf32> to vector<128xf32>
    %26 = vector.shape_cast %25 : vector<128xf32> to vector<1x128xf32>
    %27 = arith.mulf %23, %23 : vector<256x128xf32>
    %cst_18 = arith.constant dense<0.000000e+00> : vector<128xf32>
    %28 = vector.multi_reduction <add>, %27, %cst_18 [0] : vector<256x128xf32> to vector<128xf32>
    %29 = vector.shape_cast %28 : vector<128xf32> to vector<1x128xf32>
    %30 = vector.shape_cast %26 : vector<1x128xf32> to vector<1x1x128xf32>
    %31 = vector.shape_cast %30 : vector<1x1x128xf32> to vector<1x1x128xf32>
    %32 = vector.broadcast %31 : vector<1x1x128xf32> to vector<1x8x128xf32>
    %c0_19 = arith.constant 0 : index
    %c0_20 = arith.constant 0 : index
    %c0_21 = arith.constant 0 : index
    %33 = vector.load %arg4[%c0_19, %c0_20, %c0_21] : memref<1x8x128xf32, #tpu.memory_space<vmem>>, vector<1x8x128xf32>
    tpu.vector_store %arg4[%c0_19, %c0_20, %c0_21], %32 {strides = array<i32>} : memref<1x8x128xf32, #tpu.memory_space<vmem>>, vector<1x8x128xf32>,
    %34 = vector.shape_cast %29 : vector<1x128xf32> to vector<1x1x128xf32>
    %35 = vector.shape_cast %34 : vector<1x1x128xf32> to vector<1x1x128xf32>
    %36 = vector.broadcast %35 : vector<1x1x128xf32> to vector<1x8x128xf32>
    %c0_22 = arith.constant 0 : index
    %c0_23 = arith.constant 0 : index
    %c0_24 = arith.constant 0 : index
    %37 = vector.load %arg5[%c0_22, %c0_23, %c0_24] : memref<1x8x128xf32, #tpu.memory_space<vmem>>, vector<1x8x128xf32>
    tpu.vector_store %arg5[%c0_22, %c0_23, %c0_24], %36 {strides = array<i32>} : memref<1x8x128xf32, #tpu.memory_space<vmem>>, vector<1x8x128xf32>,
    return
  }
  func.func @transform_0(%arg0: i32) -> (i32, i32, i32) {
    %c0_i32 = arith.constant 0 : i32
    %c0_i32_0 = arith.constant 0 : i32
    %c0_i32_1 = arith.constant 0 : i32
    return %arg0, %c0_i32, %c0_i32_0 : i32, i32, i32
  }
  func.func @transform_1(%arg0: i32) -> (i32, i32, i32) {
    %c0_i32 = arith.constant 0 : i32
    %c0_i32_0 = arith.constant 0 : i32
    %c0_i32_1 = arith.constant 0 : i32
    %c0_i32_2 = arith.constant 0 : i32
    return %c0_i32, %c0_i32_0, %c0_i32_1 : i32, i32, i32
  }
  func.func @transform_2(%arg0: i32) -> (i32, i32) {
    %c0_i32 = arith.constant 0 : i32
    %c0_i32_0 = arith.constant 0 : i32
    return %arg0, %c0_i32 : i32, i32
  }
  func.func @transform_3(%arg0: i32) -> (i32, i32, i32) {
    %c0_i32 = arith.constant 0 : i32
    %c0_i32_0 = arith.constant 0 : i32
    %c0_i32_1 = arith.constant 0 : i32
    return %arg0, %c0_i32, %c0_i32_0 : i32, i32, i32
  }
  func.func @transform_4(%arg0: i32) -> (i32, i32, i32) {
    %c0_i32 = arith.constant 0 : i32
    %c0_i32_0 = arith.constant 0 : i32
    %c0_i32_1 = arith.constant 0 : i32
    return %arg0, %c0_i32, %c0_i32_0 : i32, i32, i32
  }
}

module attributes {stable_mosaic.version = 11 : i64} {
  func.func @bn_apply_kernel(%arg0: i32, %arg1: memref<512x128xf32, #tpu.memory_space<vmem>>, %arg2: memref<1x128xf32, #tpu.memory_space<vmem>>, %arg3: memref<1x128xf32, #tpu.memory_space<vmem>>, %arg4: memref<512x128xf32, #tpu.memory_space<vmem>>) attributes {dimension_semantics = [#tpu.dimension_semantics<parallel>], iteration_bounds = array<i64: 1>, scalar_prefetch = 0 : i64, scratch_operands = 0 : i64, tpu.core_type = #tpu.core_type<tc>, window_params = [{transform_indices = @transform_0, window_bounds = array<i64: 512, 128>}, {pipeline_mode = #tpu.pipeline_mode<synchronous>, transform_indices = @transform_1, window_bounds = array<i64: 1, 128>}, {pipeline_mode = #tpu.pipeline_mode<synchronous>, transform_indices = @transform_2, window_bounds = array<i64: 1, 128>}, {transform_indices = @transform_3, window_bounds = array<i64: 512, 128>}]} {
    %c0 = arith.constant 0 : index
    %c0_0 = arith.constant 0 : index
    %0 = vector.load %arg1[%c0, %c0_0] : memref<512x128xf32, #tpu.memory_space<vmem>>, vector<512x128xf32>
    %c0_1 = arith.constant 0 : index
    %c0_2 = arith.constant 0 : index
    %1 = vector.load %arg2[%c0_1, %c0_2] : memref<1x128xf32, #tpu.memory_space<vmem>>, vector<1x128xf32>
    %2 = vector.broadcast %1 : vector<1x128xf32> to vector<512x128xf32>
    %3 = arith.mulf %0, %2 : vector<512x128xf32>
    %c0_3 = arith.constant 0 : index
    %c0_4 = arith.constant 0 : index
    %4 = vector.load %arg3[%c0_3, %c0_4] : memref<1x128xf32, #tpu.memory_space<vmem>>, vector<1x128xf32>
    %5 = vector.broadcast %4 : vector<1x128xf32> to vector<512x128xf32>
    %6 = arith.addf %3, %5 : vector<512x128xf32>
    %c0_5 = arith.constant 0 : index
    %c0_6 = arith.constant 0 : index
    %7 = vector.load %arg4[%c0_5, %c0_6] : memref<512x128xf32, #tpu.memory_space<vmem>>, vector<512x128xf32>
    tpu.vector_store %arg4[%c0_5, %c0_6], %6 {strides = array<i32>} : memref<512x128xf32, #tpu.memory_space<vmem>>, vector<512x128xf32>,
    return
  }
  func.func @transform_0(%arg0: i32) -> (i32, i32) {
    %c0_i32 = arith.constant 0 : i32
    %c0_i32_0 = arith.constant 0 : i32
    return %arg0, %c0_i32 : i32, i32
  }
  func.func @transform_1(%arg0: i32) -> (i32, i32) {
    %c0_i32 = arith.constant 0 : i32
    %c0_i32_0 = arith.constant 0 : i32
    %c0_i32_1 = arith.constant 0 : i32
    return %c0_i32, %c0_i32_0 : i32, i32
  }
  func.func @transform_2(%arg0: i32) -> (i32, i32) {
    %c0_i32 = arith.constant 0 : i32
    %c0_i32_0 = arith.constant 0 : i32
    %c0_i32_1 = arith.constant 0 : i32
    return %c0_i32, %c0_i32_0 : i32, i32
  }
  func.func @transform_3(%arg0: i32) -> (i32, i32) {
    %c0_i32 = arith.constant 0 : i32
    %c0_i32_0 = arith.constant 0 : i32
    return %arg0, %c0_i32 : i32, i32
  }
}

</mosaic_0001>

<llo_original>
// kernel: conv_block_forward.3
$region0: #{conv_block_forward.3}
  #allocation0 [shape = 'u32[]', space=smem, size = 0x4, offset = 0x4, fixed_abs, tag = 'smem constant byte address 0x4 - core index']
  #allocation1 [shape = 'u32[144,128]{1,0:T(1,128)}', space=vmem, size = 0x12000, scoped, tag = 'internal scratch']
  %s0 = inlined_call_operand.vmem [shape: f32[512,128], index: 0, kind: input, shape index: {}, may-alias: {0,3}]
  %s1 = inlined_call_operand.vmem [shape: f32[1,128], index: 1, kind: input, shape index: {}]
  %s2 = inlined_call_operand.vmem [shape: f32[1,128], index: 2, kind: input, shape index: {}]
  %s3 = inlined_call_operand.vmem [shape: f32[512,128], index: 3, kind: output, shape index: {}, may-alias: {0,3}]
  %s4 = sld [smem:[#allocation0]]
  $region22: #{conv_block_forward.3} parent=0
    _
  %s6 = ssub.s32 1, %s4
  %s7 = scalar_select 0, %s6, %s4
  // Predicated region
  $region2: #{conv_block_forward.3} parent=0 // pred_check
    _
  $region3: #{conv_block_forward.3} parent=0 // pred_check_branch
    %9 = sbr.rel (0) target = $region5
  $region4: #{conv_block_forward.3} parent=0 // pred_region
    _
  $region5: #{conv_block_forward.3} parent=0 // pred_fallthru
    _
  // Predicated region
  $region6: #{conv_block_forward.3} parent=0 // pred_check
    _
  $region7: #{conv_block_forward.3} parent=0 // pred_check_branch
    %11 = sbr.rel (0) target = $region9
  $region8: #{conv_block_forward.3} parent=0 // pred_region
    _
  $region9: #{conv_block_forward.3} parent=0 // pred_fallthru
    _
  // Predicated region
  $region10: #{conv_block_forward.3} parent=0 // pred_check
    _
  $region11: #{conv_block_forward.3} parent=0 // pred_check_branch
    %13 = sbr.rel (0) target = $region13
  $region12: #{conv_block_forward.3} parent=0 // pred_region
    _
  $region13: #{conv_block_forward.3} parent=0 // pred_fallthru
    _
  %v14 = vld [vmem:[%s0] sm:$0xff]
  %v15 = vld [vmem:[%s0 + $0x8] sm:$0xff]
  %v16 = vld [vmem:[%s0 + $0x10] sm:$0xff]
  %v17 = vld [vmem:[%s0 + $0x18] sm:$0xff]
  %v18 = vld [vmem:[%s0 + $0x20] sm:$0xff]
  %v19 = vld [vmem:[%s0 + $0x28] sm:$0xff]
  %v20 = vld [vmem:[%s0 + $0x30] sm:$0xff]
  %v21 = vld [vmem:[%s0 + $0x38] sm:$0xff]
  %v22 = vld [vmem:[%s0 + $0x40] sm:$0xff]
  %v23 = vld [vmem:[%s0 + $0x48] sm:$0xff]
  %v24 = vld [vmem:[%s0 + $0x50] sm:$0xff]
  %v25 = vld [vmem:[%s0 + $0x58] sm:$0xff]
  %v26 = vld [vmem:[%s0 + $0x60] sm:$0xff]
  %v27 = vld [vmem:[%s0 + $0x68] sm:$0xff]
  %v28 = vld [vmem:[%s0 + $0x70] sm:$0xff]
  %v29 = vld [vmem:[%s0 + $0x78] sm:$0xff]
  %v30 = vld [vmem:[%s0 + $0x80] sm:$0xff]
  %v31 = vld [vmem:[%s0 + $0x88] sm:$0xff]
  %v32 = vld [vmem:[%s0 + $0x90] sm:$0xff]
  %v33 = vld [vmem:[%s0 + $0x98] sm:$0xff]
  %v34 = vld [vmem:[%s0 + $0xa0] sm:$0xff]
  %v35 = vld [vmem:[%s0 + $0xa8] sm:$0xff]
  %v36 = vld [vmem:[%s0 + $0xb0] sm:$0xff]
  %v37 = vld [vmem:[%s0 + $0xb8] sm:$0xff]
  %v38 = vld [vmem:[%s0 + $0xc0] sm:$0xff]
  %v39 = vld [vmem:[%s0 + $0xc8] sm:$0xff]
  %v40 = vld [vmem:[%s0 + $0xd0] sm:$0xff]
  %v41 = vld [vmem:[%s0 + $0xd8] sm:$0xff]
  %v42 = vld [vmem:[%s0 + $0xe0] sm:$0xff]
  %v43 = vld [vmem:[%s0 + $0xe8] sm:$0xff]
  %v44 = vld [vmem:[%s0 + $0xf0] sm:$0xff]
  %v45 = vld [vmem:[%s0 + $0xf8] sm:$0xff]
  %v46 = vld [vmem:[%s0 + $0x100] sm:$0xff]
  %v47 = vld [vmem:[%s0 + $0x108] sm:$0xff]
  %v48 = vld [vmem:[%s0 + $0x110] sm:$0xff]
  %v49 = vld [vmem:[%s0 + $0x118] sm:$0xff]
  %v50 = vld [vmem:[%s0 + $0x120] sm:$0xff]
  %v51 = vld [vmem:[%s0 + $0x128] sm:$0xff]
  %v52 = vld [vmem:[%s0 + $0x130] sm:$0xff]
  %v53 = vld [vmem:[%s0 + $0x138] sm:$0xff]
  %v54 = vld [vmem:[%s0 + $0x140] sm:$0xff]
  %v55 = vld [vmem:[%s0 + $0x148] sm:$0xff]
  %v56 = vld [vmem:[%s0 + $0x150] sm:$0xff]
  %v57 = vld [vmem:[%s0 + $0x158] sm:$0xff]
  %v58 = vld [vmem:[%s0 + $0x160] sm:$0xff]
  %v59 = vld [vmem:[%s0 + $0x168] sm:$0xff]
  %v60 = vld [vmem:[%s0 + $0x170] sm:$0xff]
  %v61 = vld [vmem:[%s0 + $0x178] sm:$0xff]
  %v62 = vld [vmem:[%s0 + $0x180] sm:$0xff]
  %v63 = vld [vmem:[%s0 + $0x188] sm:$0xff]
  %v64 = vld [vmem:[%s0 + $0x190] sm:$0xff]
  %v65 = vld [vmem:[%s0 + $0x198] sm:$0xff]
  %v66 = vld [vmem:[%s0 + $0x1a0] sm:$0xff]
  %v67 = vld [vmem:[%s0 + $0x1a8] sm:$0xff]
  %v68 = vld [vmem:[%s0 + $0x1b0] sm:$0xff]
  %v69 = vld [vmem:[%s0 + $0x1b8] sm:$0xff]
  %v70 = vld [vmem:[%s0 + $0x1c0] sm:$0xff]
  %v71 = vld [vmem:[%s0 + $0x1c8] sm:$0xff]
  %v72 = vld [vmem:[%s0 + $0x1d0] sm:$0xff]
  %v73 = vld [vmem:[%s0 + $0x1d8] sm:$0xff]
  %v74 = vld [vmem:[%s0 + $0x1e0] sm:$0xff]
  %v75 = vld [vmem:[%s0 + $0x1e8] sm:$0xff]
  %v76 = vld [vmem:[%s0 + $0x1f0] sm:$0xff]
  %v77 = vld [vmem:[%s0 + $0x1f8] sm:$0xff]
  %v78 = vld [vmem:[%s1] sm:$0x1]
  %v80 = vlaneseq
  %v81 = vshrl.u32 %v80, 7
  %v82 = vsub.s32 0, %v81
  %v83 = vrot.slane %v78, %v82
  %v85 = vmul.f32 %v14, %v83
  %v86 = vmul.f32 %v15, %v83
  %v87 = vmul.f32 %v16, %v83
  %v88 = vmul.f32 %v17, %v83
  %v89 = vmul.f32 %v18, %v83
  %v90 = vmul.f32 %v19, %v83
  %v91 = vmul.f32 %v20, %v83
  %v92 = vmul.f32 %v21, %v83
  %v93 = vmul.f32 %v22, %v83
  %v94 = vmul.f32 %v23, %v83
  %v95 = vmul.f32 %v24, %v83
  %v96 = vmul.f32 %v25, %v83
  %v97 = vmul.f32 %v26, %v83
  %v98 = vmul.f32 %v27, %v83
  %v99 = vmul.f32 %v28, %v83
  %v100 = vmul.f32 %v29, %v83
  %v101 = vmul.f32 %v30, %v83
  %v102 = vmul.f32 %v31, %v83
  %v103 = vmul.f32 %v32, %v83
  %v104 = vmul.f32 %v33, %v83
  %v105 = vmul.f32 %v34, %v83
  %v106 = vmul.f32 %v35, %v83
  %v107 = vmul.f32 %v36, %v83
  %v108 = vmul.f32 %v37, %v83
  %v109 = vmul.f32 %v38, %v83
  %v110 = vmul.f32 %v39, %v83
  %v111 = vmul.f32 %v40, %v83
  %v112 = vmul.f32 %v41, %v83
  %v113 = vmul.f32 %v42, %v83
  %v114 = vmul.f32 %v43, %v83
  %v115 = vmul.f32 %v44, %v83
  %v116 = vmul.f32 %v45, %v83
  %v117 = vmul.f32 %v46, %v83
  %v118 = vmul.f32 %v47, %v83
  %v119 = vmul.f32 %v48, %v83
  %v120 = vmul.f32 %v49, %v83
  %v121 = vmul.f32 %v50, %v83
  %v122 = vmul.f32 %v51, %v83
  %v123 = vmul.f32 %v52, %v83
  %v124 = vmul.f32 %v53, %v83
  %v125 = vmul.f32 %v54, %v83
  %v126 = vmul.f32 %v55, %v83
  %v127 = vmul.f32 %v56, %v83
  %v128 = vmul.f32 %v57, %v83
  %v129 = vmul.f32 %v58, %v83
  %v130 = vmul.f32 %v59, %v83
  %v131 = vmul.f32 %v60, %v83
  %v132 = vmul.f32 %v61, %v83
  %v133 = vmul.f32 %v62, %v83
  %v134 = vmul.f32 %v63, %v83
  %v135 = vmul.f32 %v64, %v83
  %v136 = vmul.f32 %v65, %v83
  %v137 = vmul.f32 %v66, %v83
  %v138 = vmul.f32 %v67, %v83
  %v139 = vmul.f32 %v68, %v83
  %v140 = vmul.f32 %v69, %v83
  %v141 = vmul.f32 %v70, %v83
  %v142 = vmul.f32 %v71, %v83
  %v143 = vmul.f32 %v72, %v83
  %v144 = vmul.f32 %v73, %v83
  %v145 = vmul.f32 %v74, %v83
  %v146 = vmul.f32 %v75, %v83
  %v147 = vmul.f32 %v76, %v83
  %v148 = vmul.f32 %v77, %v83
  %v149 = vld [vmem:[%s2] sm:$0x1]
  %v151 = vlaneseq
  %v152 = vshrl.u32 %v151, 7
  %v153 = vsub.s32 0, %v152
  %v154 = vrot.slane %v149, %v153
  %v156 = vadd.f32 %v85, %v154
  %v157 = vadd.f32 %v86, %v154
  %v158 = vadd.f32 %v87, %v154
  %v159 = vadd.f32 %v88, %v154
  %v160 = vadd.f32 %v89, %v154
  %v161 = vadd.f32 %v90, %v154
  %v162 = vadd.f32 %v91, %v154
  %v163 = vadd.f32 %v92, %v154
  %v164 = vadd.f32 %v93, %v154
  %v165 = vadd.f32 %v94, %v154
  %v166 = vadd.f32 %v95, %v154
  %v167 = vadd.f32 %v96, %v154
  %v168 = vadd.f32 %v97, %v154
  %v169 = vadd.f32 %v98, %v154
  %v170 = vadd.f32 %v99, %v154
  %v171 = vadd.f32 %v100, %v154
  %v172 = vadd.f32 %v101, %v154
  %v173 = vadd.f32 %v102, %v154
  %v174 = vadd.f32 %v103, %v154
  %v175 = vadd.f32 %v104, %v154
  %v176 = vadd.f32 %v105, %v154
  %v177 = vadd.f32 %v106, %v154
  %v178 = vadd.f32 %v107, %v154
  %v179 = vadd.f32 %v108, %v154
  %v180 = vadd.f32 %v109, %v154
  %v181 = vadd.f32 %v110, %v154
  %v182 = vadd.f32 %v111, %v154
  %v183 = vadd.f32 %v112, %v154
  %v184 = vadd.f32 %v113, %v154
  %v185 = vadd.f32 %v114, %v154
  %v186 = vadd.f32 %v115, %v154
  %v187 = vadd.f32 %v116, %v154
  %v188 = vadd.f32 %v117, %v154
  %v189 = vadd.f32 %v118, %v154
  %v190 = vadd.f32 %v119, %v154
  %v191 = vadd.f32 %v120, %v154
  %v192 = vadd.f32 %v121, %v154
  %v193 = vadd.f32 %v122, %v154
  %v194 = vadd.f32 %v123, %v154
  %v195 = vadd.f32 %v124, %v154
  %v196 = vadd.f32 %v125, %v154
  %v197 = vadd.f32 %v126, %v154
  %v198 = vadd.f32 %v127, %v154
  %v199 = vadd.f32 %v128, %v154
  %v200 = vadd.f32 %v129, %v154
  %v201 = vadd.f32 %v130, %v154
  %v202 = vadd.f32 %v131, %v154
  %v203 = vadd.f32 %v132, %v154
  %v204 = vadd.f32 %v133, %v154
  %v205 = vadd.f32 %v134, %v154
  %v206 = vadd.f32 %v135, %v154
  %v207 = vadd.f32 %v136, %v154
  %v208 = vadd.f32 %v137, %v154
  %v209 = vadd.f32 %v138, %v154
  %v210 = vadd.f32 %v139, %v154
  %v211 = vadd.f32 %v140, %v154
  %v212 = vadd.f32 %v141, %v154
  %v213 = vadd.f32 %v142, %v154
  %v214 = vadd.f32 %v143, %v154
  %v215 = vadd.f32 %v144, %v154
  %v216 = vadd.f32 %v145, %v154
  %v217 = vadd.f32 %v146, %v154
  %v218 = vadd.f32 %v147, %v154
  %v219 = vadd.f32 %v148, %v154
  %220 = vst [vmem:[%s3] sm:$0xff] %v156
  %221 = vst [vmem:[%s3 + $0x8] sm:$0xff] %v157
  %222 = vst [vmem:[%s3 + $0x10] sm:$0xff] %v158
  %223 = vst [vmem:[%s3 + $0x18] sm:$0xff] %v159
  %224 = vst [vmem:[%s3 + $0x20] sm:$0xff] %v160
  %225 = vst [vmem:[%s3 + $0x28] sm:$0xff] %v161
  %226 = vst [vmem:[%s3 + $0x30] sm:$0xff] %v162
  %227 = vst [vmem:[%s3 + $0x38] sm:$0xff] %v163
  %228 = vst [vmem:[%s3 + $0x40] sm:$0xff] %v164
  %229 = vst [vmem:[%s3 + $0x48] sm:$0xff] %v165
  %230 = vst [vmem:[%s3 + $0x50] sm:$0xff] %v166
  %231 = vst [vmem:[%s3 + $0x58] sm:$0xff] %v167
  %232 = vst [vmem:[%s3 + $0x60] sm:$0xff] %v168
  %233 = vst [vmem:[%s3 + $0x68] sm:$0xff] %v169
  %234 = vst [vmem:[%s3 + $0x70] sm:$0xff] %v170
  %235 = vst [vmem:[%s3 + $0x78] sm:$0xff] %v171
  %236 = vst [vmem:[%s3 + $0x80] sm:$0xff] %v172
  %237 = vst [vmem:[%s3 + $0x88] sm:$0xff] %v173
  %238 = vst [vmem:[%s3 + $0x90] sm:$0xff] %v174
  %239 = vst [vmem:[%s3 + $0x98] sm:$0xff] %v175
  %240 = vst [vmem:[%s3 + $0xa0] sm:$0xff] %v176
  %241 = vst [vmem:[%s3 + $0xa8] sm:$0xff] %v177
  %242 = vst [vmem:[%s3 + $0xb0] sm:$0xff] %v178
  %243 = vst [vmem:[%s3 + $0xb8] sm:$0xff] %v179
  %244 = vst [vmem:[%s3 + $0xc0] sm:$0xff] %v180
  %245 = vst [vmem:[%s3 + $0xc8] sm:$0xff] %v181
  %246 = vst [vmem:[%s3 + $0xd0] sm:$0xff] %v182
  %247 = vst [vmem:[%s3 + $0xd8] sm:$0xff] %v183
  %248 = vst [vmem:[%s3 + $0xe0] sm:$0xff] %v184
  %249 = vst [vmem:[%s3 + $0xe8] sm:$0xff] %v185
  %250 = vst [vmem:[%s3 + $0xf0] sm:$0xff] %v186
  %251 = vst [vmem:[%s3 + $0xf8] sm:$0xff] %v187
  %252 = vst [vmem:[%s3 + $0x100] sm:$0xff] %v188
  %253 = vst [vmem:[%s3 + $0x108] sm:$0xff] %v189
  %254 = vst [vmem:[%s3 + $0x110] sm:$0xff] %v190
  %255 = vst [vmem:[%s3 + $0x118] sm:$0xff] %v191
  %256 = vst [vmem:[%s3 + $0x120] sm:$0xff] %v192
  %257 = vst [vmem:[%s3 + $0x128] sm:$0xff] %v193
  %258 = vst [vmem:[%s3 + $0x130] sm:$0xff] %v194
  %259 = vst [vmem:[%s3 + $0x138] sm:$0xff] %v195
  %260 = vst [vmem:[%s3 + $0x140] sm:$0xff] %v196
  %261 = vst [vmem:[%s3 + $0x148] sm:$0xff] %v197
  %262 = vst [vmem:[%s3 + $0x150] sm:$0xff] %v198
  %263 = vst [vmem:[%s3 + $0x158] sm:$0xff] %v199
  %264 = vst [vmem:[%s3 + $0x160] sm:$0xff] %v200
  %265 = vst [vmem:[%s3 + $0x168] sm:$0xff] %v201
  %266 = vst [vmem:[%s3 + $0x170] sm:$0xff] %v202
  %267 = vst [vmem:[%s3 + $0x178] sm:$0xff] %v203
  %268 = vst [vmem:[%s3 + $0x180] sm:$0xff] %v204
  %269 = vst [vmem:[%s3 + $0x188] sm:$0xff] %v205
  %270 = vst [vmem:[%s3 + $0x190] sm:$0xff] %v206
  %271 = vst [vmem:[%s3 + $0x198] sm:$0xff] %v207
  %272 = vst [vmem:[%s3 + $0x1a0] sm:$0xff] %v208
  %273 = vst [vmem:[%s3 + $0x1a8] sm:$0xff] %v209
  %274 = vst [vmem:[%s3 + $0x1b0] sm:$0xff] %v210
  %275 = vst [vmem:[%s3 + $0x1b8] sm:$0xff] %v211
  %276 = vst [vmem:[%s3 + $0x1c0] sm:$0xff] %v212
  %277 = vst [vmem:[%s3 + $0x1c8] sm:$0xff] %v213
  %278 = vst [vmem:[%s3 + $0x1d0] sm:$0xff] %v214
  %279 = vst [vmem:[%s3 + $0x1d8] sm:$0xff] %v215
  %280 = vst [vmem:[%s3 + $0x1e0] sm:$0xff] %v216
  %281 = vst [vmem:[%s3 + $0x1e8] sm:$0xff] %v217
  %282 = vst [vmem:[%s3 + $0x1f0] sm:$0xff] %v218
  %283 = vst [vmem:[%s3 + $0x1f8] sm:$0xff] %v219
  // Predicated region
  $region14: #{conv_block_forward.3} parent=0 // pred_check
    _
  $region15: #{conv_block_forward.3} parent=0 // pred_check_branch
    %285 = sbr.rel (0) target = $region17
  $region16: #{conv_block_forward.3} parent=0 // pred_region
    _
  $region17: #{conv_block_forward.3} parent=0 // pred_fallthru
    _
  // Predicated region
  $region18: #{conv_block_forward.3} parent=0 // pred_check
    _
  $region19: #{conv_block_forward.3} parent=0 // pred_check_branch
    %287 = sbr.rel (0) target = $region21
  $region20: #{conv_block_forward.3} parent=0 // pred_region
    _
  $region21: #{conv_block_forward.3} parent=0 // pred_fallthru
    _

// kernel: conv_block_forward.2
$region0: #{conv_block_forward.2}
  #allocation0 [shape = 'u32[]', space=smem, size = 0x4, offset = 0x4, fixed_abs, tag = 'smem constant byte address 0x4 - core index']
  #allocation1 [shape = 'u32[144,128]{1,0:T(1,128)}', space=vmem, size = 0x12000, scoped, tag = 'internal scratch']
  %s0 = inlined_call_operand.vmem [shape: bf16[2,576,4], index: 0, kind: input, shape index: {}]
  %s1 = inlined_call_operand.vmem [shape: bf16[3,4,384], index: 1, kind: input, shape index: {}]
  %s2 = inlined_call_operand.vmem [shape: f32[512,128], index: 2, kind: output, shape index: {0}]
  %s3 = inlined_call_operand.vmem [shape: f32[2,8,128], index: 3, kind: output, shape index: {1}]
  %s4 = inlined_call_operand.vmem [shape: f32[2,8,128], index: 4, kind: output, shape index: {2}]
  %5 = xla_tuple %s2, %s3, %s4
  %s6 = sld [smem:[#allocation0]]
  $region57: #{conv_block_forward.2} parent=0
    _
  %s8 = ssub.s32 1, %s6
  %s9 = scalar_select 0, %s8, %s6
  loop: start=0, step=1, limit=4
  $region2: #{conv_block_forward.2} parent=0 // loop_pre_header
    _
  $region3: #{conv_block_forward.2} parent=0 // loop_header
    %s11 = sphi 0, %s15
    %p12 = scmp.ge.s32.totalorder %s11, 4
    %s21 = sphi 0, %s23
    %s24 = sphi 0, %s21
    %s25 = sphi 0, %s24
    %s41 = sphi 0, %s25
    %s45 = sphi 0, %s45
    %s47 = sphi 0, %s45
    %s48 = sphi 0, %s47
    %s62 = sphi 0, %s48
    %s68 = sphi 0, %s70
    %s71 = sphi 0, %s68
    %s72 = sphi 0, %s71
    %s88 = sphi 0, %s72
    %s94 = sphi 0, %s96
    %s97 = sphi 0, %s94
    %s98 = sphi 0, %s97
    %s114 = sphi 0, %s98
    %s120 = sphi 0, %s122
    %s123 = sphi 0, %s120
    %s124 = sphi 0, %s123
    %s140 = sphi 0, %s124
  $region4: #{conv_block_forward.2} parent=0 // loop_header_branch
    %14 = sbr.rel (%p12) target = $region8
  $region5: #{conv_block_forward.2} parent=0 // loop_body
    %s16 = ssub.s32 %s11, 1
    %s17 = ssub.s32 %s11, 2
    %s18 = sadd.s32 %s11, 1
    %s19 = ssub.s32 %s11, %s18
    %p20 = scmp.eq.s32.totalorder %s19, 0
    %s22 = sadd.s32 %s21, 1
    %s23 = scalar_select %p20, %s21, %s22
    %p26 = pneg %p20
    %p27 = scmp.eq.s32.totalorder %s11, 1
    %p28 = por %p26, %p27
    %p29 = scmp.ne.s32.totalorder %s21, %s24
    %p30 = scmp.eq.s32.totalorder %s11, 0
    %p31 = por %p29, %p30
    %p32 = scmp.ne.s32.totalorder %s21, %s24
    %p33 = scmp.eq.s32.totalorder %s16, 1
    %p34 = por %p32, %p33
    %p35 = scmp.ne.s32.totalorder %s24, %s25
    %p36 = scmp.eq.s32.totalorder %s16, 0
    %p37 = por %p35, %p36
    %p38 = scmp.ne.s32.totalorder %s24, %s25
    %p39 = scmp.eq.s32.totalorder %s17, 1
    %p40 = por %p38, %p39
    %p42 = scmp.ne.s32.totalorder %s25, %s41
    %p43 = scmp.eq.s32.totalorder %s17, 0
    %p44 = por %p42, %p43
    %s46 = sadd.s32 %s45, 1
    %p49 = scmp.eq.s32.totalorder %s11, 1
    %p50 = scmp.ne.s32.totalorder %s45, %s47
    %p51 = scmp.eq.s32.totalorder %s11, 0
    %p52 = por %p50, %p51
    %p53 = scmp.ne.s32.totalorder %s45, %s47
    %p54 = scmp.eq.s32.totalorder %s16, 1
    %p55 = por %p53, %p54
    %p56 = scmp.ne.s32.totalorder %s47, %s48
    %p57 = scmp.eq.s32.totalorder %s16, 0
    %p58 = por %p56, %p57
    %p59 = scmp.ne.s32.totalorder %s47, %s48
    %p60 = scmp.eq.s32.totalorder %s17, 1
    %p61 = por %p59, %p60
    %p63 = scmp.ne.s32.totalorder %s48, %s62
    %p64 = scmp.eq.s32.totalorder %s17, 0
    %p65 = por %p63, %p64
    %s66 = ssub.s32 %s11, %s18
    %p67 = scmp.eq.s32.totalorder %s66, 0
    %s69 = sadd.s32 %s68, 1
    %s70 = scalar_select %p67, %s68, %s69
    %p73 = pneg %p67
    %p74 = scmp.eq.s32.totalorder %s11, 1
    %p75 = por %p73, %p74
    %p76 = scmp.ne.s32.totalorder %s68, %s71
    %p77 = scmp.eq.s32.totalorder %s11, 0
    %p78 = por %p76, %p77
    %p79 = scmp.ne.s32.totalorder %s68, %s71
    %p80 = scmp.eq.s32.totalorder %s16, 1
    %p81 = por %p79, %p80
    %p82 = scmp.ne.s32.totalorder %s71, %s72
    %p83 = scmp.eq.s32.totalorder %s16, 0
    %p84 = por %p82, %p83
    %p85 = scmp.ne.s32.totalorder %s71, %s72
    %p86 = scmp.eq.s32.totalorder %s17, 1
    %p87 = por %p85, %p86
    %p89 = scmp.ne.s32.totalorder %s72, %s88
    %p90 = scmp.eq.s32.totalorder %s17, 0
    %p91 = por %p89, %p90
    %s92 = ssub.s32 %s11, %s18
    %p93 = scmp.eq.s32.totalorder %s92, 0
    %s95 = sadd.s32 %s94, 1
    %s96 = scalar_select %p93, %s94, %s95
    %p99 = pneg %p93
    %p100 = scmp.eq.s32.totalorder %s11, 1
    %p101 = por %p99, %p100
    %p102 = scmp.ne.s32.totalorder %s94, %s97
    %p103 = scmp.eq.s32.totalorder %s11, 0
    %p104 = por %p102, %p103
    %p105 = scmp.ne.s32.totalorder %s94, %s97
    %p106 = scmp.eq.s32.totalorder %s16, 1
    %p107 = por %p105, %p106
    %p108 = scmp.ne.s32.totalorder %s97, %s98
    %p109 = scmp.eq.s32.totalorder %s16, 0
    %p110 = por %p108, %p109
    %p111 = scmp.ne.s32.totalorder %s97, %s98
    %p112 = scmp.eq.s32.totalorder %s17, 1
    %p113 = por %p111, %p112
    %p115 = scmp.ne.s32.totalorder %s98, %s114
    %p116 = scmp.eq.s32.totalorder %s17, 0
    %p117 = por %p115, %p116
    %s118 = ssub.s32 %s11, %s18
    %p119 = scmp.eq.s32.totalorder %s118, 0
    %s121 = sadd.s32 %s120, 1
    %s122 = scalar_select %p119, %s120, %s121
    %p125 = pneg %p119
    %p126 = scmp.eq.s32.totalorder %s11, 1
    %p127 = por %p125, %p126
    %p128 = scmp.ne.s32.totalorder %s120, %s123
    %p129 = scmp.eq.s32.totalorder %s11, 0
    %p130 = por %p128, %p129
    %p131 = scmp.ne.s32.totalorder %s120, %s123
    %p132 = scmp.eq.s32.totalorder %s16, 1
    %p133 = por %p131, %p132
    %p134 = scmp.ne.s32.totalorder %s123, %s124
    %p135 = scmp.eq.s32.totalorder %s16, 0
    %p136 = por %p134, %p135
    %p137 = scmp.ne.s32.totalorder %s123, %s124
    %p138 = scmp.eq.s32.totalorder %s17, 1
    %p139 = por %p137, %p138
    %p141 = scmp.ne.s32.totalorder %s124, %s140
    %p142 = scmp.eq.s32.totalorder %s17, 0
    %p143 = por %p141, %p142
    %p144 = scmp.le.s32.totalorder 1, %s11
    %p145 = scmp.lt.s32.totalorder %s11, 3
    %p146 = pnand %p144, %p145
    %p147 = pneg %p146
    // Predicated region
    $region9: #{conv_block_forward.2} parent=5 // pred_check
      _
    $region10: #{conv_block_forward.2} parent=5 // pred_check_branch
      %149 = sbr.rel (%p146) target = $region12
    $region11: #{conv_block_forward.2} parent=5 // pred_region
      %s150 = ssub.s32 %s11, 1
      // Predicated region
      $region13: #{conv_block_forward.2} parent=11 // pred_check
        %p151 = pneg %p58
      $region14: #{conv_block_forward.2} parent=11 // pred_check_branch
        %153 = sbr.rel (%p151) target = $region16
      $region15: #{conv_block_forward.2} parent=11 // pred_region
        _
      $region16: #{conv_block_forward.2} parent=11 // pred_fallthru
        _
    $region12: #{conv_block_forward.2} parent=5 // pred_fallthru
      _
    %p154 = scmp.lt.s32.totalorder %s11, 2
    // Predicated region
    $region17: #{conv_block_forward.2} parent=5 // pred_check
      %p155 = pneg %p154
    $region18: #{conv_block_forward.2} parent=5 // pred_check_branch
      %157 = sbr.rel (%p155) target = $region20
    $region19: #{conv_block_forward.2} parent=5 // pred_region
      // Predicated region
      $region21: #{conv_block_forward.2} parent=19 // pred_check
        %p158 = pneg %p31
      $region22: #{conv_block_forward.2} parent=19 // pred_check_branch
        %160 = sbr.rel (%p158) target = $region24
      $region23: #{conv_block_forward.2} parent=19 // pred_region
        %p161 = scmp.lt.s32.totalorder %s11, 1
        %s162 = scalar_select %p161, %s11, 1
        %s163 = smul.addr %s162, 72
        %s164 = smul.addr %s163, 4
        %s165 = scalar_lea.vmem %s0, %s164
      $region24: #{conv_block_forward.2} parent=19 // pred_fallthru
        _
    $region20: #{conv_block_forward.2} parent=5 // pred_fallthru
      _
    %p166 = scmp.le.s32.totalorder 1, %s11
    %p167 = scmp.lt.s32.totalorder %s11, 3
    %p168 = pnand %p166, %p167
    %p169 = pneg %p168
    // Predicated region
    $region25: #{conv_block_forward.2} parent=5 // pred_check
      _
    $region26: #{conv_block_forward.2} parent=5 // pred_check_branch
      %171 = sbr.rel (%p168) target = $region28
    $region27: #{conv_block_forward.2} parent=5 // pred_region
      %s172 = ssub.s32 %s11, 1
      %p173 = scmp.lt.s32.totalorder %s16, 1
      %s174 = scalar_select %p173, %s16, 1
      %s175 = smul.addr %s174, 72
      %s176 = smul.addr %s175, 4
      %s177 = scalar_lea.vmem %s0, %s176
      %p178 = pneg %p37
      %p179 = pneg %p34
      %p180 = pneg %p58
      %p181 = pneg %p55
      %p182 = pneg %p84
      %p183 = pneg %p81
      %s184 = smul.u32 32, %s16
      %p185 = scmp.lt.s32.totalorder %s184, 63
      %s186 = scalar_select %p185, %s184, 63
      %s187 = smul.addr %s186, 8
      %s188 = scalar_lea.vmem %s2, %s187
      %p189 = pneg %p110
      %p190 = pneg %p107
      %p191 = scmp.lt.s32.totalorder %s16, 1
      %s192 = scalar_select %p191, %s16, 1
      %s193 = smul.addr %s192, 8
      %s194 = scalar_lea.vmem %s3, %s193
      %p195 = pneg %p136
      %p196 = pneg %p133
      %p197 = scmp.lt.s32.totalorder %s16, 1
      %s198 = scalar_select %p197, %s16, 1
      %s199 = smul.addr %s198, 8
      %s200 = scalar_lea.vmem %s4, %s199
      %p201 = scmp.lt.s32.totalorder %s16, 1
      %s202 = scalar_select %p201, %s16, 1
      %s203 = smul.addr %s202, 72
      %s204 = smul.addr %s203, 4
      %s205 = scalar_lea.vmem %s0, %s204
      %s206 = smul.u32 32, %s16
      %p207 = scmp.lt.s32.totalorder %s206, 63
      %s208 = scalar_select %p207, %s206, 63
      %s209 = smul.addr %s208, 8
      %s210 = scalar_lea.vmem %s2, %s209
      %s211 = smul.u32 32, %s16
      %p212 = scmp.lt.s32.totalorder %s16, 1
      %s213 = scalar_select %p212, %s16, 1
      %s214 = smul.addr %s213, 8
      %s215 = scalar_lea.vmem %s3, %s214
      %p216 = scmp.lt.s32.totalorder %s16, 1
      %s217 = scalar_select %p216, %s16, 1
      %s218 = smul.addr %s217, 8
      %s219 = scalar_lea.vmem %s4, %s218
      %v221 = vld [vmem:[%s205] sm:$0xf]
      %v222 = vld [vmem:[%s205 + $0x4] sm:$0xf]
      %v223 = vld [vmem:[%s205 + $0x8] sm:$0xf]
      %v224 = vld [vmem:[%s205 + $0xc] sm:$0xf]
      %v225 = vld [vmem:[%s205 + $0x10] sm:$0xf]
      %v226 = vld [vmem:[%s205 + $0x14] sm:$0xf]
      %v227 = vld [vmem:[%s205 + $0x18] sm:$0xf]
      %v228 = vld [vmem:[%s205 + $0x1c] sm:$0xf]
      %v229 = vld [vmem:[%s205 + $0x20] sm:$0xf]
      %v230 = vld [vmem:[%s205 + $0x24] sm:$0xf]
      %v231 = vld [vmem:[%s205 + $0x28] sm:$0xf]
      %v232 = vld [vmem:[%s205 + $0x2c] sm:$0xf]
      %v233 = vld [vmem:[%s205 + $0x30] sm:$0xf]
      %v234 = vld [vmem:[%s205 + $0x34] sm:$0xf]
      %v235 = vld [vmem:[%s205 + $0x38] sm:$0xf]
      %v236 = vld [vmem:[%s205 + $0x3c] sm:$0xf]
      %v237 = vld [vmem:[%s205 + $0x40] sm:$0xf]
      %v238 = vld [vmem:[%s205 + $0x44] sm:$0xf]
      %v239 = vld [vmem:[%s205 + $0x48] sm:$0xf]
      %v240 = vld [vmem:[%s205 + $0x4c] sm:$0xf]
      %v241 = vld [vmem:[%s205 + $0x50] sm:$0xf]
      %v242 = vld [vmem:[%s205 + $0x54] sm:$0xf]
      %v243 = vld [vmem:[%s205 + $0x58] sm:$0xf]
      %v244 = vld [vmem:[%s205 + $0x5c] sm:$0xf]
      %v245 = vld [vmem:[%s205 + $0x60] sm:$0xf]
      %v246 = vld [vmem:[%s205 + $0x64] sm:$0xf]
      %v247 = vld [vmem:[%s205 + $0x68] sm:$0xf]
      %v248 = vld [vmem:[%s205 + $0x6c] sm:$0xf]
      %v249 = vld [vmem:[%s205 + $0x70] sm:$0xf]
      %v250 = vld [vmem:[%s205 + $0x74] sm:$0xf]
      %v251 = vld [vmem:[%s205 + $0x78] sm:$0xf]
      %v252 = vld [vmem:[%s205 + $0x7c] sm:$0xf]
      %v253 = vld [vmem:[%s205 + $0x80] sm:$0xf]
      %v254 = vld [vmem:[%s205 + $0x84] sm:$0xf]
      %v255 = vld [vmem:[%s205 + $0x88] sm:$0xf]
      %v256 = vld [vmem:[%s205 + $0x8c] sm:$0xf]
      %v257 = vld [vmem:[%s205 + $0x90] sm:$0xf]
      %v258 = vld [vmem:[%s205 + $0x94] sm:$0xf]
      %v259 = vld [vmem:[%s205 + $0x98] sm:$0xf]
      %v260 = vld [vmem:[%s205 + $0x9c] sm:$0xf]
      %v261 = vld [vmem:[%s205 + $0xa0] sm:$0xf]
      %v262 = vld [vmem:[%s205 + $0xa4] sm:$0xf]
      %v263 = vld [vmem:[%s205 + $0xa8] sm:$0xf]
      %v264 = vld [vmem:[%s205 + $0xac] sm:$0xf]
      %v265 = vld [vmem:[%s205 + $0xb0] sm:$0xf]
      %v266 = vld [vmem:[%s205 + $0xb4] sm:$0xf]
      %v267 = vld [vmem:[%s205 + $0xb8] sm:$0xf]
      %v268 = vld [vmem:[%s205 + $0xbc] sm:$0xf]
      %v269 = vld [vmem:[%s205 + $0xc0] sm:$0xf]
      %v270 = vld [vmem:[%s205 + $0xc4] sm:$0xf]
      %v271 = vld [vmem:[%s205 + $0xc8] sm:$0xf]
      %v272 = vld [vmem:[%s205 + $0xcc] sm:$0xf]
      %v273 = vld [vmem:[%s205 + $0xd0] sm:$0xf]
      %v274 = vld [vmem:[%s205 + $0xd4] sm:$0xf]
      %v275 = vld [vmem:[%s205 + $0xd8] sm:$0xf]
      %v276 = vld [vmem:[%s205 + $0xdc] sm:$0xf]
      %v277 = vld [vmem:[%s205 + $0xe0] sm:$0xf]
      %v278 = vld [vmem:[%s205 + $0xe4] sm:$0xf]
      %v279 = vld [vmem:[%s205 + $0xe8] sm:$0xf]
      %v280 = vld [vmem:[%s205 + $0xec] sm:$0xf]
      %v281 = vld [vmem:[%s205 + $0xf0] sm:$0xf]
      %v282 = vld [vmem:[%s205 + $0xf4] sm:$0xf]
      %v283 = vld [vmem:[%s205 + $0xf8] sm:$0xf]
      %v284 = vld [vmem:[%s205 + $0xfc] sm:$0xf]
      %v285 = vld [vmem:[%s1] sm:$0x3f]
      %v286 = vld [vmem:[%s205 + $0x100] sm:$0xf]
      %v287 = vld [vmem:[%s205 + $0x104] sm:$0xf]
      %v288 = vld [vmem:[%s205 + $0x108] sm:$0xf]
      %v289 = vld [vmem:[%s205 + $0x10c] sm:$0xf]
      %s290 = scalar_lea.vmem %s1, 6
      %v291 = vld [vmem:[%s290] sm:$0x3f]
      %v356 = vunpack.c.l.b16 %v225
      %v357 = vunpack.c.l.b16 %v226
      %v358 = vunpack.c.l.b16 %v227
      %v359 = vunpack.c.l.b16 %v228
      %v360 = vunpack.c.l.b16 %v229
      %v361 = vunpack.c.l.b16 %v230
      %v362 = vunpack.c.l.b16 %v231
      %v363 = vunpack.c.l.b16 %v232
      %v364 = vunpack.c.l.b16 %v233
      %v365 = vunpack.c.l.b16 %v234
      %v366 = vunpack.c.l.b16 %v235
      %v367 = vunpack.c.l.b16 %v236
      %v368 = vunpack.c.l.b16 %v237
      %v369 = vunpack.c.l.b16 %v238
      %v370 = vunpack.c.l.b16 %v239
      %v371 = vunpack.c.l.b16 %v240
      %v372 = vunpack.c.l.b16 %v241
      %v373 = vunpack.c.l.b16 %v242
      %v374 = vunpack.c.l.b16 %v243
      %v375 = vunpack.c.l.b16 %v244
      %v376 = vunpack.c.l.b16 %v245
      %v377 = vunpack.c.l.b16 %v246
      %v378 = vunpack.c.l.b16 %v247
      %v379 = vunpack.c.l.b16 %v248
      %v380 = vunpack.c.l.b16 %v249
      %v381 = vunpack.c.l.b16 %v250
      %v382 = vunpack.c.l.b16 %v251
      %v383 = vunpack.c.l.b16 %v252
      %v384 = vunpack.c.l.b16 %v253
      %v385 = vunpack.c.l.b16 %v254
      %v386 = vunpack.c.l.b16 %v255
      %v387 = vunpack.c.l.b16 %v256
      %v388 = vunpack.c.l.b16 %v257
      %v389 = vunpack.c.l.b16 %v258
      %v390 = vunpack.c.l.b16 %v259
      %v391 = vunpack.c.l.b16 %v260
      %v392 = vunpack.c.l.b16 %v261
      %v393 = vunpack.c.l.b16 %v262
      %v394 = vunpack.c.l.b16 %v263
      %v395 = vunpack.c.l.b16 %v264
      %v396 = vunpack.c.l.b16 %v265
      %v397 = vunpack.c.l.b16 %v266
      %v398 = vunpack.c.l.b16 %v267
      %v399 = vunpack.c.l.b16 %v268
      %v400 = vunpack.c.l.b16 %v269
      %v401 = vunpack.c.l.b16 %v270
      %v402 = vunpack.c.l.b16 %v271
      %v403 = vunpack.c.l.b16 %v272
      %v404 = vunpack.c.l.b16 %v273
      %v405 = vunpack.c.l.b16 %v274
      %v406 = vunpack.c.l.b16 %v275
      %v407 = vunpack.c.l.b16 %v276
      %v408 = vunpack.c.l.b16 %v277
      %v409 = vunpack.c.l.b16 %v278
      %v410 = vunpack.c.l.b16 %v279
      %v411 = vunpack.c.l.b16 %v280
      %v412 = vunpack.c.l.b16 %v281
      %v413 = vunpack.c.l.b16 %v282
      %v414 = vunpack.c.l.b16 %v283
      %v415 = vunpack.c.l.b16 %v284
      %v416 = vunpack.c.l.b16 %v286
      %v417 = vunpack.c.l.b16 %v287
      %v418 = vunpack.c.l.b16 %v288
      %v419 = vunpack.c.l.b16 %v289
      %v420 = vpack.c.b16 %v357, %v356
      %v421 = vpack.c.b16 %v359, %v358
      %v422 = vpack.c.b16 %v361, %v360
      %v423 = vpack.c.b16 %v363, %v362
      %v424 = vpack.c.b16 %v365, %v364
      %v425 = vpack.c.b16 %v367, %v366
      %v426 = vpack.c.b16 %v369, %v368
      %v427 = vpack.c.b16 %v371, %v370
      %v428 = vpack.c.b16 %v373, %v372
      %v429 = vpack.c.b16 %v375, %v374
      %v430 = vpack.c.b16 %v377, %v376
      %v431 = vpack.c.b16 %v379, %v378
      %v432 = vpack.c.b16 %v381, %v380
      %v433 = vpack.c.b16 %v383, %v382
      %v434 = vpack.c.b16 %v385, %v384
      %v435 = vpack.c.b16 %v387, %v386
      %v436 = vpack.c.b16 %v389, %v388
      %v437 = vpack.c.b16 %v391, %v390
      %v438 = vpack.c.b16 %v393, %v392
      %v439 = vpack.c.b16 %v395, %v394
      %v440 = vpack.c.b16 %v397, %v396
      %v441 = vpack.c.b16 %v399, %v398
      %v442 = vpack.c.b16 %v401, %v400
      %v443 = vpack.c.b16 %v403, %v402
      %v444 = vpack.c.b16 %v405, %v404
      %v445 = vpack.c.b16 %v407, %v406
      %v446 = vpack.c.b16 %v409, %v408
      %v447 = vpack.c.b16 %v411, %v410
      %v448 = vpack.c.b16 %v413, %v412
      %v449 = vpack.c.b16 %v415, %v414
      %v450 = vpack.c.b16 %v417, %v416
      %v451 = vpack.c.b16 %v419, %v418
      %v453 = vcombine.high %v291, %v291
      %v455 = vunpack.c.l.s4 1983009808
      %v456 = vunpack.c.0.s8 %v455
      %v457 = vlaneseq
      %v458 = vshrl.u32 %v457, 7
      %v459 = vsub.s32 %v456, %v458
      %v460 = vrot.slane %v291, %v459
      %v462 = vunpack.c.l.s4 1983009808
      %v463 = vunpack.c.0.s8 %v462
      %v464 = vlaneseq
      %v465 = vshrl.u32 %v464, 7
      %v466 = vsub.s32 %v463, %v465
      %v467 = vrot.slane %v453, %v466
      %v468 = vcombine.high %v460, %v460
      %vm469 = vcmask 31744
      %v471 = vsel %vm469, %v420, 0
      %v474 = vsel %vm469, %v421, 0
      %v477 = vsel %vm469, %v422, 0
      %v480 = vsel %vm469, %v423, 0
      %v483 = vsel %vm469, %v424, 0
      %v486 = vsel %vm469, %v425, 0
      %v489 = vsel %vm469, %v426, 0
      %v492 = vsel %vm469, %v427, 0
      %v495 = vsel %vm469, %v428, 0
      %v498 = vsel %vm469, %v429, 0
      %v501 = vsel %vm469, %v430, 0
      %v504 = vsel %vm469, %v431, 0
      %v507 = vsel %vm469, %v432, 0
      %v510 = vsel %vm469, %v433, 0
      %v513 = vsel %vm469, %v434, 0
      %v516 = vsel %vm469, %v435, 0
      %v519 = vsel %vm469, %v436, 0
      %v522 = vsel %vm469, %v437, 0
      %v525 = vsel %vm469, %v438, 0
      %v528 = vsel %vm469, %v439, 0
      %v531 = vsel %vm469, %v440, 0
      %v534 = vsel %vm469, %v441, 0
      %v537 = vsel %vm469, %v442, 0
      %v540 = vsel %vm469, %v443, 0
      %v543 = vsel %vm469, %v444, 0
      %v546 = vsel %vm469, %v445, 0
      %v549 = vsel %vm469, %v446, 0
      %v552 = vsel %vm469, %v447, 0
      %v555 = vsel %vm469, %v448, 0
      %v558 = vsel %vm469, %v449, 0
      %v561 = vsel %vm469, %v450, 0
      %v564 = vsel %vm469, %v451, 0
      %vm566 = vcmask 1041408
      %v568 = vsel %vm566, %v460, 0
      %v571 = vsel %vm566, %v468, 0
      %v574 = vsel %vm566, %v467, 0
      %576 = vmatprep.subr.bf16.mxu0 0
      %577 = vmatpush1.bf16.msra.mxu0 0
      %578 = vmatprep.subr.bf16.mxu0 0
      %579 = vmatpush1.bf16.msra.mxu0 0
      %580 = vmatprep.subr.bf16.mxu0 0
      %581 = vmatpush1.bf16.msra.mxu0 0
      %582 = vmatprep.subr.bf16.mxu0 0
      %583 = vmatpush1.bf16.msra.mxu0 0
      %584 = vmatprep.subr.bf16.mxu0 0
      %585 = vmatpush1.bf16.msra.mxu0 0
      %586 = vmatprep.subr.bf16.mxu0 0
      %587 = vmatpush1.bf16.msra.mxu0 0
      %588 = vmatprep.subr.bf16.mxu0 0
      %589 = vmatpush1.bf16.msra.mxu0 0
      %590 = vmatprep.subr.bf16.mxu0 %v571
      %591 = vmatpush1.bf16.msra.mxu0 %v568
      %592 = vmatprep.subr.bf16.mxu0 0
      %593 = vmatpush2.bf16.msra.mxu0 0
      %594 = vmatprep.subr.bf16.mxu0 0
      %595 = vmatpush2.bf16.msra.mxu0 0
      %596 = vmatprep.subr.bf16.mxu0 0
      %597 = vmatpush2.bf16.msra.mxu0 0
      %598 = vmatprep.subr.bf16.mxu0 0
      %599 = vmatpush2.bf16.msra.mxu0 0
      %600 = vmatprep.subr.bf16.mxu0 0
      %601 = vmatpush2.bf16.msra.mxu0 0
      %602 = vmatprep.subr.bf16.mxu0 0
      %603 = vmatpush2.bf16.msra.mxu0 0
      %604 = vmatprep.subr.bf16.mxu0 0
      %605 = vmatpush2.bf16.msra.mxu0 0
      %606 = vmatprep.subr.bf16.mxu0 0
      %607 = vmatpush2.bf16.msra.mxu0 0
      %608 = vmatprep.mubr.bf16.mxu0 0
      %609 = vmatmul.mubr.bf16.gmra.mxu0 %v471
      %v610 = vpop.f32.mrf.mxu0
      %v611 = vadd.f32 0.0, %v610
      %v612 = vpop.f32.mrf.mxu0
      %v613 = vadd.f32 0.0, %v612
      %v614 = vpop.f32.mrf.mxu0
      %v615 = vadd.f32 0.0, %v614
      %v616 = vpop.f32.mrf.mxu0
      %v617 = vadd.f32 0.0, %v616
      %618 = vmatprep.mubr.bf16.mxu0 0
      %619 = vmatmul.mubr.bf16.gmra.mxu0 %v474
      %v620 = vpop.f32.mrf.mxu0
      %v621 = vpop.f32.mrf.mxu0
      %v622 = vadd.f32 0.0, %v621
      %v623 = vpop.f32.mrf.mxu0
      %v624 = vpop.f32.mrf.mxu0
      %625 = vmatprep.mubr.bf16.mxu0 0
      %626 = vmatmul.mubr.bf16.gmra.mxu0 %v477
      %v627 = vpop.f32.mrf.mxu0
      %v628 = vadd.f32 0.0, %v627
      %v629 = vpop.f32.mrf.mxu0
      %v630 = vadd.f32 0.0, %v629
      %v631 = vpop.f32.mrf.mxu0
      %v632 = vadd.f32 0.0, %v631
      %v633 = vpop.f32.mrf.mxu0
      %v634 = vadd.f32 0.0, %v633
      %635 = vmatprep.mubr.bf16.mxu0 0
      %636 = vmatmul.mubr.bf16.gmra.mxu0 %v480
      %v637 = vpop.f32.mrf.mxu0
      %v638 = vpop.f32.mrf.mxu0
      %v639 = vadd.f32 0.0, %v638
      %v640 = vpop.f32.mrf.mxu0
      %v641 = vpop.f32.mrf.mxu0
      %642 = vmatprep.mubr.bf16.mxu0 0
      %643 = vmatmul.mubr.bf16.gmra.mxu0 %v483
      %v644 = vpop.f32.mrf.mxu0
      %v645 = vadd.f32 0.0, %v644
      %v646 = vpop.f32.mrf.mxu0
      %v647 = vadd.f32 0.0, %v646
      %v648 = vpop.f32.mrf.mxu0
      %v649 = vadd.f32 0.0, %v648
      %v650 = vpop.f32.mrf.mxu0
      %v651 = vadd.f32 0.0, %v650
      %652 = vmatprep.mubr.bf16.mxu0 0
      %653 = vmatmul.mubr.bf16.gmra.mxu0 %v486
      %v654 = vpop.f32.mrf.mxu0
      %v655 = vpop.f32.mrf.mxu0
      %v656 = vadd.f32 0.0, %v655
      %v657 = vpop.f32.mrf.mxu0
      %v658 = vpop.f32.mrf.mxu0
      %659 = vmatprep.mubr.bf16.mxu0 0
      %660 = vmatmul.mubr.bf16.gmra.mxu0 %v489
      %v661 = vpop.f32.mrf.mxu0
      %v662 = vadd.f32 0.0, %v661
      %v663 = vpop.f32.mrf.mxu0
      %v664 = vadd.f32 0.0, %v663
      %v665 = vpop.f32.mrf.mxu0
      %v666 = vadd.f32 0.0, %v665
      %v667 = vpop.f32.mrf.mxu0
      %v668 = vadd.f32 0.0, %v667
      %669 = vmatprep.mubr.bf16.mxu0 0
      %670 = vmatmul.mubr.bf16.gmra.mxu0 %v492
      %v671 = vpop.f32.mrf.mxu0
      %v672 = vpop.f32.mrf.mxu0
      %v673 = vadd.f32 0.0, %v672
      %v674 = vpop.f32.mrf.mxu0
      %v675 = vpop.f32.mrf.mxu0
      %676 = vmatprep.mubr.bf16.mxu0 0
      %677 = vmatmul.mubr.bf16.gmra.mxu0 %v495
      %v678 = vpop.f32.mrf.mxu0
      %v679 = vadd.f32 0.0, %v678
      %v680 = vpop.f32.mrf.mxu0
      %v681 = vadd.f32 0.0, %v680
      %v682 = vpop.f32.mrf.mxu0
      %v683 = vadd.f32 0.0, %v682
      %v684 = vpop.f32.mrf.mxu0
      %v685 = vadd.f32 0.0, %v684
      %686 = vmatprep.mubr.bf16.mxu0 0
      %687 = vmatmul.mubr.bf16.gmra.mxu0 %v498
      %v688 = vpop.f32.mrf.mxu0
      %v689 = vpop.f32.mrf.mxu0
      %v690 = vadd.f32 0.0, %v689
      %v691 = vpop.f32.mrf.mxu0
      %v692 = vpop.f32.mrf.mxu0
      %693 = vmatprep.mubr.bf16.mxu0 0
      %694 = vmatmul.mubr.bf16.gmra.mxu0 %v501
      %v695 = vpop.f32.mrf.mxu0
      %v696 = vadd.f32 0.0, %v695
      %v697 = vpop.f32.mrf.mxu0
      %v698 = vadd.f32 0.0, %v697
      %v699 = vpop.f32.mrf.mxu0
      %v700 = vadd.f32 0.0, %v699
      %v701 = vpop.f32.mrf.mxu0
      %v702 = vadd.f32 0.0, %v701
      %703 = vmatprep.mubr.bf16.mxu0 0
      %704 = vmatmul.mubr.bf16.gmra.mxu0 %v504
      %v705 = vpop.f32.mrf.mxu0
      %v706 = vpop.f32.mrf.mxu0
      %v707 = vadd.f32 0.0, %v706
      %v708 = vpop.f32.mrf.mxu0
      %v709 = vpop.f32.mrf.mxu0
      %710 = vmatprep.mubr.bf16.mxu0 0
      %711 = vmatmul.mubr.bf16.gmra.mxu0 %v507
      %v712 = vpop.f32.mrf.mxu0
      %v713 = vadd.f32 0.0, %v712
      %v714 = vpop.f32.mrf.mxu0
      %v715 = vadd.f32 0.0, %v714
      %v716 = vpop.f32.mrf.mxu0
      %v717 = vadd.f32 0.0, %v716
      %v718 = vpop.f32.mrf.mxu0
      %v719 = vadd.f32 0.0, %v718
      %720 = vmatprep.mubr.bf16.mxu0 0
      %721 = vmatmul.mubr.bf16.gmra.mxu0 %v510
      %v722 = vpop.f32.mrf.mxu0
      %v723 = vpop.f32.mrf.mxu0
      %v724 = vadd.f32 0.0, %v723
      %v725 = vpop.f32.mrf.mxu0
      %v726 = vpop.f32.mrf.mxu0
      %727 = vmatprep.mubr.bf16.mxu0 0
      %728 = vmatmul.mubr.bf16.gmra.mxu0 %v513
      %v729 = vpop.f32.mrf.mxu0
      %v730 = vadd.f32 0.0, %v729
      %v731 = vpop.f32.mrf.mxu0
      %v732 = vadd.f32 0.0, %v731
      %v733 = vpop.f32.mrf.mxu0
      %v734 = vadd.f32 0.0, %v733
      %v735 = vpop.f32.mrf.mxu0
      %v736 = vadd.f32 0.0, %v735
      %737 = vmatprep.mubr.bf16.mxu0 0
      %738 = vmatmul.mubr.bf16.gmra.mxu0 %v516
      %v739 = vpop.f32.mrf.mxu0
      %v740 = vpop.f32.mrf.mxu0
      %v741 = vadd.f32 0.0, %v740
      %v742 = vpop.f32.mrf.mxu0
      %v743 = vpop.f32.mrf.mxu0
      %744 = vmatprep.mubr.bf16.mxu0 0
      %745 = vmatmul.mubr.bf16.gmra.mxu0 %v519
      %v746 = vpop.f32.mrf.mxu0
      %v747 = vadd.f32 0.0, %v746
      %v748 = vpop.f32.mrf.mxu0
      %v749 = vadd.f32 0.0, %v748
      %v750 = vpop.f32.mrf.mxu0
      %v751 = vadd.f32 0.0, %v750
      %v752 = vpop.f32.mrf.mxu0
      %v753 = vadd.f32 0.0, %v752
      %754 = vmatprep.mubr.bf16.mxu0 0
      %755 = vmatmul.mubr.bf16.gmra.mxu0 %v522
      %v756 = vpop.f32.mrf.mxu0
      %v757 = vpop.f32.mrf.mxu0
      %v758 = vadd.f32 0.0, %v757
      %v759 = vpop.f32.mrf.mxu0
      %v760 = vpop.f32.mrf.mxu0
      %761 = vmatprep.mubr.bf16.mxu0 0
      %762 = vmatmul.mubr.bf16.gmra.mxu0 %v525
      %v763 = vpop.f32.mrf.mxu0
      %v764 = vadd.f32 0.0, %v763
      %v765 = vpop.f32.mrf.mxu0
      %v766 = vadd.f32 0.0, %v765
      %v767 = vpop.f32.mrf.mxu0
      %v768 = vadd.f32 0.0, %v767
      %v769 = vpop.f32.mrf.mxu0
      %v770 = vadd.f32 0.0, %v769
      %771 = vmatprep.mubr.bf16.mxu0 0
      %772 = vmatmul.mubr.bf16.gmra.mxu0 %v528
      %v773 = vpop.f32.mrf.mxu0
      %v774 = vpop.f32.mrf.mxu0
      %v775 = vadd.f32 0.0, %v774
      %v776 = vpop.f32.mrf.mxu0
      %v777 = vpop.f32.mrf.mxu0
      %778 = vmatprep.mubr.bf16.mxu0 0
      %779 = vmatmul.mubr.bf16.gmra.mxu0 %v531
      %v780 = vpop.f32.mrf.mxu0
      %v781 = vadd.f32 0.0, %v780
      %v782 = vpop.f32.mrf.mxu0
      %v783 = vadd.f32 0.0, %v782
      %v784 = vpop.f32.mrf.mxu0
      %v785 = vadd.f32 0.0, %v784
      %v786 = vpop.f32.mrf.mxu0
      %v787 = vadd.f32 0.0, %v786
      %788 = vmatprep.mubr.bf16.mxu0 0
      %789 = vmatmul.mubr.bf16.gmra.mxu0 %v534
      %v790 = vpop.f32.mrf.mxu0
      %v791 = vpop.f32.mrf.mxu0
      %v792 = vadd.f32 0.0, %v791
      %v793 = vpop.f32.mrf.mxu0
      %v794 = vpop.f32.mrf.mxu0
      %795 = vmatprep.mubr.bf16.mxu0 0
      %796 = vmatmul.mubr.bf16.gmra.mxu0 %v537
      %v797 = vpop.f32.mrf.mxu0
      %v798 = vadd.f32 0.0, %v797
      %v799 = vpop.f32.mrf.mxu0
      %v800 = vadd.f32 0.0, %v799
      %v801 = vpop.f32.mrf.mxu0
      %v802 = vadd.f32 0.0, %v801
      %v803 = vpop.f32.mrf.mxu0
      %v804 = vadd.f32 0.0, %v803
      %805 = vmatprep.mubr.bf16.mxu0 0
      %806 = vmatmul.mubr.bf16.gmra.mxu0 %v540
      %v807 = vpop.f32.mrf.mxu0
      %v808 = vpop.f32.mrf.mxu0
      %v809 = vadd.f32 0.0, %v808
      %v810 = vpop.f32.mrf.mxu0
      %v811 = vpop.f32.mrf.mxu0
      %812 = vmatprep.mubr.bf16.mxu0 0
      %813 = vmatmul.mubr.bf16.gmra.mxu0 %v543
      %v814 = vpop.f32.mrf.mxu0
      %v815 = vadd.f32 0.0, %v814
      %v816 = vpop.f32.mrf.mxu0
      %v817 = vadd.f32 0.0, %v816
      %v818 = vpop.f32.mrf.mxu0
      %v819 = vadd.f32 0.0, %v818
      %v820 = vpop.f32.mrf.mxu0
      %v821 = vadd.f32 0.0, %v820
      %822 = vmatprep.mubr.bf16.mxu0 0
      %823 = vmatmul.mubr.bf16.gmra.mxu0 %v546
      %v824 = vpop.f32.mrf.mxu0
      %v825 = vpop.f32.mrf.mxu0
      %v826 = vadd.f32 0.0, %v825
      %v827 = vpop.f32.mrf.mxu0
      %v828 = vpop.f32.mrf.mxu0
      %829 = vmatprep.mubr.bf16.mxu0 0
      %830 = vmatmul.mubr.bf16.gmra.mxu0 %v549
      %v831 = vpop.f32.mrf.mxu0
      %v832 = vadd.f32 0.0, %v831
      %v833 = vpop.f32.mrf.mxu0
      %v834 = vadd.f32 0.0, %v833
      %v835 = vpop.f32.mrf.mxu0
      %v836 = vadd.f32 0.0, %v835
      %v837 = vpop.f32.mrf.mxu0
      %v838 = vadd.f32 0.0, %v837
      %839 = vmatprep.mubr.bf16.mxu0 0
      %840 = vmatmul.mubr.bf16.gmra.mxu0 %v552
      %v841 = vpop.f32.mrf.mxu0
      %v842 = vpop.f32.mrf.mxu0
      %v843 = vadd.f32 0.0, %v842
      %v844 = vpop.f32.mrf.mxu0
      %v845 = vpop.f32.mrf.mxu0
      %846 = vmatprep.mubr.bf16.mxu0 0
      %847 = vmatmul.mubr.bf16.gmra.mxu0 %v555
      %v848 = vpop.f32.mrf.mxu0
      %v849 = vadd.f32 0.0, %v848
      %v850 = vpop.f32.mrf.mxu0
      %v851 = vadd.f32 0.0, %v850
      %v852 = vpop.f32.mrf.mxu0
      %v853 = vadd.f32 0.0, %v852
      %v854 = vpop.f32.mrf.mxu0
      %v855 = vadd.f32 0.0, %v854
      %856 = vmatprep.mubr.bf16.mxu0 0
      %857 = vmatmul.mubr.bf16.gmra.mxu0 %v558
      %v858 = vpop.f32.mrf.mxu0
      %v859 = vpop.f32.mrf.mxu0
      %v860 = vadd.f32 0.0, %v859
      %v861 = vpop.f32.mrf.mxu0
      %v862 = vpop.f32.mrf.mxu0
      %863 = vmatprep.mubr.bf16.mxu0 0
      %864 = vmatmul.mubr.bf16.gmra.mxu0 %v561
      %v865 = vpop.f32.mrf.mxu0
      %v866 = vadd.f32 0.0, %v865
      %v867 = vpop.f32.mrf.mxu0
      %v868 = vadd.f32 0.0, %v867
      %v869 = vpop.f32.mrf.mxu0
      %v870 = vadd.f32 0.0, %v869
      %v871 = vpop.f32.mrf.mxu0
      %v872 = vadd.f32 0.0, %v871
      %873 = vmatprep.mubr.bf16.mxu0 0
      %874 = vmatmul.mubr.bf16.gmra.mxu0 %v564
      %v875 = vpop.f32.mrf.mxu0
      %v876 = vpop.f32.mrf.mxu0
      %v877 = vadd.f32 0.0, %v876
      %v878 = vpop.f32.mrf.mxu0
      %v879 = vpop.f32.mrf.mxu0
      %880 = vdwg.mxu0
      %881 = vmatprep.subr.bf16.mxu0 0
      %882 = vmatpush1.bf16.msra.mxu0 0
      %883 = vmatprep.subr.bf16.mxu0 0
      %884 = vmatpush1.bf16.msra.mxu0 0
      %885 = vmatprep.subr.bf16.mxu0 0
      %886 = vmatpush1.bf16.msra.mxu0 0
      %887 = vmatprep.subr.bf16.mxu0 0
      %888 = vmatpush1.bf16.msra.mxu0 0
      %889 = vmatprep.subr.bf16.mxu0 0
      %890 = vmatpush1.bf16.msra.mxu0 0
      %891 = vmatprep.subr.bf16.mxu0 0
      %892 = vmatpush1.bf16.msra.mxu0 0
      %893 = vmatprep.subr.bf16.mxu0 0
      %894 = vmatpush1.bf16.msra.mxu0 0
      %895 = vmatprep.subr.bf16.mxu0 0
      %896 = vmatpush1.bf16.msra.mxu0 %v574
      %897 = vmatprep.subr.bf16.mxu0 0
      %898 = vmatpush2.bf16.msra.mxu0 0
      %899 = vmatprep.subr.bf16.mxu0 0
      %900 = vmatpush2.bf16.msra.mxu0 0
      %901 = vmatprep.subr.bf16.mxu0 0
      %902 = vmatpush2.bf16.msra.mxu0 0
      %903 = vmatprep.subr.bf16.mxu0 0
      %904 = vmatpush2.bf16.msra.mxu0 0
      %905 = vmatprep.subr.bf16.mxu0 0
      %906 = vmatpush2.bf16.msra.mxu0 0
      %907 = vmatprep.subr.bf16.mxu0 0
      %908 = vmatpush2.bf16.msra.mxu0 0
      %909 = vmatprep.subr.bf16.mxu0 0
      %910 = vmatpush2.bf16.msra.mxu0 0
      %911 = vmatprep.subr.bf16.mxu0 0
      %912 = vmatpush2.bf16.msra.mxu0 0
      %913 = vmatprep.mubr.bf16.mxu0 0
      %914 = vmatmul.mubr.bf16.gmra.mxu0 %v471
      %v915 = vpop.f32.mrf.mxu0
      %v916 = vadd.f32 0.0, %v915
      %v917 = vpop.f32.mrf.mxu0
      %v918 = vpop.f32.mrf.mxu0
      %v919 = vadd.f32 0.0, %v918
      %v920 = vpop.f32.mrf.mxu0
      %921 = vmatprep.mubr.bf16.mxu0 0
      %922 = vmatmul.mubr.bf16.gmra.mxu0 %v474
      %v923 = vpop.f32.mrf.mxu0
      %v924 = vadd.f32 0.0, %v923
      %v925 = vpop.f32.mrf.mxu0
      %v926 = vpop.f32.mrf.mxu0
      %v927 = vpop.f32.mrf.mxu0
      %928 = vmatprep.mubr.bf16.mxu0 0
      %929 = vmatmul.mubr.bf16.gmra.mxu0 %v477
      %v930 = vpop.f32.mrf.mxu0
      %v931 = vadd.f32 0.0, %v930
      %v932 = vpop.f32.mrf.mxu0
      %v933 = vpop.f32.mrf.mxu0
      %v934 = vadd.f32 0.0, %v933
      %v935 = vpop.f32.mrf.mxu0
      %936 = vmatprep.mubr.bf16.mxu0 0
      %937 = vmatmul.mubr.bf16.gmra.mxu0 %v480
      %v938 = vpop.f32.mrf.mxu0
      %v939 = vadd.f32 0.0, %v938
      %v940 = vpop.f32.mrf.mxu0
      %v941 = vpop.f32.mrf.mxu0
      %v942 = vpop.f32.mrf.mxu0
      %943 = vmatprep.mubr.bf16.mxu0 0
      %944 = vmatmul.mubr.bf16.gmra.mxu0 %v483
      %v945 = vpop.f32.mrf.mxu0
      %v946 = vadd.f32 0.0, %v945
      %v947 = vpop.f32.mrf.mxu0
      %v948 = vpop.f32.mrf.mxu0
      %v949 = vadd.f32 0.0, %v948
      %v950 = vpop.f32.mrf.mxu0
      %951 = vmatprep.mubr.bf16.mxu0 0
      %952 = vmatmul.mubr.bf16.gmra.mxu0 %v486
      %v953 = vpop.f32.mrf.mxu0
      %v954 = vadd.f32 0.0, %v953
      %v955 = vpop.f32.mrf.mxu0
      %v956 = vpop.f32.mrf.mxu0
      %v957 = vpop.f32.mrf.mxu0
      %958 = vmatprep.mubr.bf16.mxu0 0
      %959 = vmatmul.mubr.bf16.gmra.mxu0 %v489
      %v960 = vpop.f32.mrf.mxu0
      %v961 = vadd.f32 0.0, %v960
      %v962 = vpop.f32.mrf.mxu0
      %v963 = vpop.f32.mrf.mxu0
      %v964 = vadd.f32 0.0, %v963
      %v965 = vpop.f32.mrf.mxu0
      %966 = vmatprep.mubr.bf16.mxu0 0
      %967 = vmatmul.mubr.bf16.gmra.mxu0 %v492
      %v968 = vpop.f32.mrf.mxu0
      %v969 = vadd.f32 0.0, %v968
      %v970 = vpop.f32.mrf.mxu0
      %v971 = vpop.f32.mrf.mxu0
      %v972 = vpop.f32.mrf.mxu0
      %973 = vmatprep.mubr.bf16.mxu0 0
      %974 = vmatmul.mubr.bf16.gmra.mxu0 %v495
      %v975 = vpop.f32.mrf.mxu0
      %v976 = vadd.f32 0.0, %v975
      %v977 = vpop.f32.mrf.mxu0
      %v978 = vpop.f32.mrf.mxu0
      %v979 = vadd.f32 0.0, %v978
      %v980 = vpop.f32.mrf.mxu0
      %981 = vmatprep.mubr.bf16.mxu0 0
      %982 = vmatmul.mubr.bf16.gmra.mxu0 %v498
      %v983 = vpop.f32.mrf.mxu0
      %v984 = vadd.f32 0.0, %v983
      %v985 = vpop.f32.mrf.mxu0
      %v986 = vpop.f32.mrf.mxu0
      %v987 = vpop.f32.mrf.mxu0
      %988 = vmatprep.mubr.bf16.mxu0 0
      %989 = vmatmul.mubr.bf16.gmra.mxu0 %v501
      %v990 = vpop.f32.mrf.mxu0
      %v991 = vadd.f32 0.0, %v990
      %v992 = vpop.f32.mrf.mxu0
      %v993 = vpop.f32.mrf.mxu0
      %v994 = vadd.f32 0.0, %v993
      %v995 = vpop.f32.mrf.mxu0
      %996 = vmatprep.mubr.bf16.mxu0 0
      %997 = vmatmul.mubr.bf16.gmra.mxu0 %v504
      %v998 = vpop.f32.mrf.mxu0
      %v999 = vadd.f32 0.0, %v998
      %v1000 = vpop.f32.mrf.mxu0
      %v1001 = vpop.f32.mrf.mxu0
      %v1002 = vpop.f32.mrf.mxu0
      %1003 = vmatprep.mubr.bf16.mxu0 0
      %1004 = vmatmul.mubr.bf16.gmra.mxu0 %v507
      %v1005 = vpop.f32.mrf.mxu0
      %v1006 = vadd.f32 0.0, %v1005
      %v1007 = vpop.f32.mrf.mxu0
      %v1008 = vpop.f32.mrf.mxu0
      %v1009 = vadd.f32 0.0, %v1008
      %v1010 = vpop.f32.mrf.mxu0
      %1011 = vmatprep.mubr.bf16.mxu0 0
      %1012 = vmatmul.mubr.bf16.gmra.mxu0 %v510
      %v1013 = vpop.f32.mrf.mxu0
      %v1014 = vadd.f32 0.0, %v1013
      %v1015 = vpop.f32.mrf.mxu0
      %v1016 = vpop.f32.mrf.mxu0
      %v1017 = vpop.f32.mrf.mxu0
      %1018 = vmatprep.mubr.bf16.mxu0 0
      %1019 = vmatmul.mubr.bf16.gmra.mxu0 %v513
      %v1020 = vpop.f32.mrf.mxu0
      %v1021 = vadd.f32 0.0, %v1020
      %v1022 = vpop.f32.mrf.mxu0
      %v1023 = vpop.f32.mrf.mxu0
      %v1024 = vadd.f32 0.0, %v1023
      %v1025 = vpop.f32.mrf.mxu0
      %1026 = vmatprep.mubr.bf16.mxu0 0
      %1027 = vmatmul.mubr.bf16.gmra.mxu0 %v516
      %v1028 = vpop.f32.mrf.mxu0
      %v1029 = vadd.f32 0.0, %v1028
      %v1030 = vpop.f32.mrf.mxu0
      %v1031 = vpop.f32.mrf.mxu0
      %v1032 = vpop.f32.mrf.mxu0
      %1033 = vmatprep.mubr.bf16.mxu0 0
      %1034 = vmatmul.mubr.bf16.gmra.mxu0 %v519
      %v1035 = vpop.f32.mrf.mxu0
      %v1036 = vadd.f32 0.0, %v1035
      %v1037 = vpop.f32.mrf.mxu0
      %v1038 = vpop.f32.mrf.mxu0
      %v1039 = vadd.f32 0.0, %v1038
      %v1040 = vpop.f32.mrf.mxu0
      %1041 = vmatprep.mubr.bf16.mxu0 0
      %1042 = vmatmul.mubr.bf16.gmra.mxu0 %v522
      %v1043 = vpop.f32.mrf.mxu0
      %v1044 = vadd.f32 0.0, %v1043
      %v1045 = vpop.f32.mrf.mxu0
      %v1046 = vpop.f32.mrf.mxu0
      %v1047 = vpop.f32.mrf.mxu0
      %1048 = vmatprep.mubr.bf16.mxu0 0
      %1049 = vmatmul.mubr.bf16.gmra.mxu0 %v525
      %v1050 = vpop.f32.mrf.mxu0
      %v1051 = vadd.f32 0.0, %v1050
      %v1052 = vpop.f32.mrf.mxu0
      %v1053 = vpop.f32.mrf.mxu0
      %v1054 = vadd.f32 0.0, %v1053
      %v1055 = vpop.f32.mrf.mxu0
      %1056 = vmatprep.mubr.bf16.mxu0 0
      %1057 = vmatmul.mubr.bf16.gmra.mxu0 %v528
      %v1058 = vpop.f32.mrf.mxu0
      %v1059 = vadd.f32 0.0, %v1058
      %v1060 = vpop.f32.mrf.mxu0
      %v1061 = vpop.f32.mrf.mxu0
      %v1062 = vpop.f32.mrf.mxu0
      %1063 = vmatprep.mubr.bf16.mxu0 0
      %1064 = vmatmul.mubr.bf16.gmra.mxu0 %v531
      %v1065 = vpop.f32.mrf.mxu0
      %v1066 = vadd.f32 0.0, %v1065
      %v1067 = vpop.f32.mrf.mxu0
      %v1068 = vpop.f32.mrf.mxu0
      %v1069 = vadd.f32 0.0, %v1068
      %v1070 = vpop.f32.mrf.mxu0
      %1071 = vmatprep.mubr.bf16.mxu0 0
      %1072 = vmatmul.mubr.bf16.gmra.mxu0 %v534
      %v1073 = vpop.f32.mrf.mxu0
      %v1074 = vadd.f32 0.0, %v1073
      %v1075 = vpop.f32.mrf.mxu0
      %v1076 = vpop.f32.mrf.mxu0
      %v1077 = vpop.f32.mrf.mxu0
      %1078 = vmatprep.mubr.bf16.mxu0 0
      %1079 = vmatmul.mubr.bf16.gmra.mxu0 %v537
      %v1080 = vpop.f32.mrf.mxu0
      %v1081 = vadd.f32 0.0, %v1080
      %v1082 = vpop.f32.mrf.mxu0
      %v1083 = vpop.f32.mrf.mxu0
      %v1084 = vadd.f32 0.0, %v1083
      %v1085 = vpop.f32.mrf.mxu0
      %1086 = vmatprep.mubr.bf16.mxu0 0
      %1087 = vmatmul.mubr.bf16.gmra.mxu0 %v540
      %v1088 = vpop.f32.mrf.mxu0
      %v1089 = vadd.f32 0.0, %v1088
      %v1090 = vpop.f32.mrf.mxu0
      %v1091 = vpop.f32.mrf.mxu0
      %v1092 = vpop.f32.mrf.mxu0
      %1093 = vmatprep.mubr.bf16.mxu0 0
      %1094 = vmatmul.mubr.bf16.gmra.mxu0 %v543
      %v1095 = vpop.f32.mrf.mxu0
      %v1096 = vadd.f32 0.0, %v1095
      %v1097 = vpop.f32.mrf.mxu0
      %v1098 = vpop.f32.mrf.mxu0
      %v1099 = vadd.f32 0.0, %v1098
      %v1100 = vpop.f32.mrf.mxu0
      %1101 = vmatprep.mubr.bf16.mxu0 0
      %1102 = vmatmul.mubr.bf16.gmra.mxu0 %v546
      %v1103 = vpop.f32.mrf.mxu0
      %v1104 = vadd.f32 0.0, %v1103
      %v1105 = vpop.f32.mrf.mxu0
      %v1106 = vpop.f32.mrf.mxu0
      %v1107 = vpop.f32.mrf.mxu0
      %1108 = vmatprep.mubr.bf16.mxu0 0
      %1109 = vmatmul.mubr.bf16.gmra.mxu0 %v549
      %v1110 = vpop.f32.mrf.mxu0
      %v1111 = vadd.f32 0.0, %v1110
      %v1112 = vpop.f32.mrf.mxu0
      %v1113 = vpop.f32.mrf.mxu0
      %v1114 = vadd.f32 0.0, %v1113
      %v1115 = vpop.f32.mrf.mxu0
      %1116 = vmatprep.mubr.bf16.mxu0 0
      %1117 = vmatmul.mubr.bf16.gmra.mxu0 %v552
      %v1118 = vpop.f32.mrf.mxu0
      %v1119 = vadd.f32 0.0, %v1118
      %v1120 = vpop.f32.mrf.mxu0
      %v1121 = vpop.f32.mrf.mxu0
      %v1122 = vpop.f32.mrf.mxu0
      %1123 = vmatprep.mubr.bf16.mxu0 0
      %1124 = vmatmul.mubr.bf16.gmra.mxu0 %v555
      %v1125 = vpop.f32.mrf.mxu0
      %v1126 = vadd.f32 0.0, %v1125
      %v1127 = vpop.f32.mrf.mxu0
      %v1128 = vpop.f32.mrf.mxu0
      %v1129 = vadd.f32 0.0, %v1128
      %v1130 = vpop.f32.mrf.mxu0
      %1131 = vmatprep.mubr.bf16.mxu0 0
      %1132 = vmatmul.mubr.bf16.gmra.mxu0 %v558
      %v1133 = vpop.f32.mrf.mxu0
      %v1134 = vadd.f32 0.0, %v1133
      %v1135 = vpop.f32.mrf.mxu0
      %v1136 = vpop.f32.mrf.mxu0
      %v1137 = vpop.f32.mrf.mxu0
      %1138 = vmatprep.mubr.bf16.mxu0 0
      %1139 = vmatmul.mubr.bf16.gmra.mxu0 %v561
      %v1140 = vpop.f32.mrf.mxu0
      %v1141 = vadd.f32 0.0, %v1140
      %v1142 = vpop.f32.mrf.mxu0
      %v1143 = vpop.f32.mrf.mxu0
      %v1144 = vadd.f32 0.0, %v1143
      %v1145 = vpop.f32.mrf.mxu0
      %1146 = vmatprep.mubr.bf16.mxu0 0
      %1147 = vmatmul.mubr.bf16.gmra.mxu0 %v564
      %v1148 = vpop.f32.mrf.mxu0
      %v1149 = vadd.f32 0.0, %v1148
      %v1150 = vpop.f32.mrf.mxu0
      %v1151 = vpop.f32.mrf.mxu0
      %v1152 = vpop.f32.mrf.mxu0
      %1153 = vdwg.mxu0
      %v1158 = vunpack.c.l.b16 %v221
      %v1159 = vunpack.c.l.b16 %v222
      %v1160 = vunpack.c.l.b16 %v223
      %v1161 = vunpack.c.l.b16 %v224
      %v1162 = vpack.c.b16 %v1159, %v1158
      %v1163 = vpack.c.b16 %v1161, %v1160
      %v1165 = vcombine.high %v285, %v285
      %v1167 = vunpack.c.l.s4 1983009808
      %v1168 = vunpack.c.0.s8 %v1167
      %v1169 = vlaneseq
      %v1170 = vshrl.u32 %v1169, 7
      %v1171 = vsub.s32 %v1168, %v1170
      %v1172 = vrot.slane %v285, %v1171
      %v1174 = vunpack.c.l.s4 1983009808
      %v1175 = vunpack.c.0.s8 %v1174
      %v1176 = vlaneseq
      %v1177 = vshrl.u32 %v1176, 7
      %v1178 = vsub.s32 %v1175, %v1177
      %v1179 = vrot.slane %v1165, %v1178
      %v1180 = vcombine.high %v1172, %v1172
      %v1182 = vsel %vm469, %v1162, 0
      %v1185 = vsel %vm469, %v1163, 0
      %v1188 = vsel %vm566, %v1172, 0
      %v1191 = vsel %vm566, %v1180, 0
      %v1194 = vsel %vm566, %v1179, 0
      %1196 = vmatprep.subr.bf16.mxu0 0
      %1197 = vmatpush1.bf16.msra.mxu0 0
      %1198 = vmatprep.subr.bf16.mxu0 0
      %1199 = vmatpush1.bf16.msra.mxu0 0
      %1200 = vmatprep.subr.bf16.mxu0 0
      %1201 = vmatpush1.bf16.msra.mxu0 0
      %1202 = vmatprep.subr.bf16.mxu0 0
      %1203 = vmatpush1.bf16.msra.mxu0 0
      %1204 = vmatprep.subr.bf16.mxu0 0
      %1205 = vmatpush1.bf16.msra.mxu0 0
      %1206 = vmatprep.subr.bf16.mxu0 0
      %1207 = vmatpush1.bf16.msra.mxu0 0
      %1208 = vmatprep.subr.bf16.mxu0 0
      %1209 = vmatpush1.bf16.msra.mxu0 0
      %1210 = vmatprep.subr.bf16.mxu0 %v1191
      %1211 = vmatpush1.bf16.msra.mxu0 %v1188
      %1212 = vmatprep.subr.bf16.mxu0 0
      %1213 = vmatpush2.bf16.msra.mxu0 0
      %1214 = vmatprep.subr.bf16.mxu0 0
      %1215 = vmatpush2.bf16.msra.mxu0 0
      %1216 = vmatprep.subr.bf16.mxu0 0
      %1217 = vmatpush2.bf16.msra.mxu0 0
      %1218 = vmatprep.subr.bf16.mxu0 0
      %1219 = vmatpush2.bf16.msra.mxu0 0
      %1220 = vmatprep.subr.bf16.mxu0 0
      %1221 = vmatpush2.bf16.msra.mxu0 0
      %1222 = vmatprep.subr.bf16.mxu0 0
      %1223 = vmatpush2.bf16.msra.mxu0 0
      %1224 = vmatprep.subr.bf16.mxu0 0
      %1225 = vmatpush2.bf16.msra.mxu0 0
      %1226 = vmatprep.subr.bf16.mxu0 0
      %1227 = vmatpush2.bf16.msra.mxu0 0
      %1228 = vmatprep.mubr.bf16.mxu0 0
      %1229 = vmatmul.mubr.bf16.gmra.mxu0 %v1182
      %v1230 = vpop.f32.mrf.mxu0
      %v1231 = vadd.f32 %v611, %v1230
      %v1232 = vpop.f32.mrf.mxu0
      %v1233 = vadd.f32 %v613, %v1232
      %v1234 = vpop.f32.mrf.mxu0
      %v1235 = vadd.f32 %v615, %v1234
      %v1236 = vpop.f32.mrf.mxu0
      %v1237 = vadd.f32 %v617, %v1236
      %1238 = vmatprep.mubr.bf16.mxu0 0
      %1239 = vmatmul.mubr.bf16.gmra.mxu0 %v1185
      %v1240 = vpop.f32.mrf.mxu0
      %v1241 = vpop.f32.mrf.mxu0
      %v1242 = vadd.f32 %v622, %v1241
      %v1243 = vpop.f32.mrf.mxu0
      %v1244 = vpop.f32.mrf.mxu0
      %1245 = vmatprep.mubr.bf16.mxu0 0
      %1246 = vmatmul.mubr.bf16.gmra.mxu0 %v471
      %v1247 = vpop.f32.mrf.mxu0
      %v1248 = vadd.f32 %v628, %v1247
      %v1249 = vpop.f32.mrf.mxu0
      %v1250 = vadd.f32 %v630, %v1249
      %v1251 = vpop.f32.mrf.mxu0
      %v1252 = vadd.f32 %v632, %v1251
      %v1253 = vpop.f32.mrf.mxu0
      %v1254 = vadd.f32 %v634, %v1253
      %1255 = vmatprep.mubr.bf16.mxu0 0
      %1256 = vmatmul.mubr.bf16.gmra.mxu0 %v474
      %v1257 = vpop.f32.mrf.mxu0
      %v1258 = vpop.f32.mrf.mxu0
      %v1259 = vadd.f32 %v639, %v1258
      %v1260 = vpop.f32.mrf.mxu0
      %v1261 = vpop.f32.mrf.mxu0
      %1262 = vmatprep.mubr.bf16.mxu0 0
      %1263 = vmatmul.mubr.bf16.gmra.mxu0 %v477
      %v1264 = vpop.f32.mrf.mxu0
      %v1265 = vadd.f32 %v645, %v1264
      %v1266 = vpop.f32.mrf.mxu0
      %v1267 = vadd.f32 %v647, %v1266
      %v1268 = vpop.f32.mrf.mxu0
      %v1269 = vadd.f32 %v649, %v1268
      %v1270 = vpop.f32.mrf.mxu0
      %v1271 = vadd.f32 %v651, %v1270
      %1272 = vmatprep.mubr.bf16.mxu0 0
      %1273 = vmatmul.mubr.bf16.gmra.mxu0 %v480
      %v1274 = vpop.f32.mrf.mxu0
      %v1275 = vpop.f32.mrf.mxu0
      %v1276 = vadd.f32 %v656, %v1275
      %v1277 = vpop.f32.mrf.mxu0
      %v1278 = vpop.f32.mrf.mxu0
      %1279 = vmatprep.mubr.bf16.mxu0 0
      %1280 = vmatmul.mubr.bf16.gmra.mxu0 %v483
      %v1281 = vpop.f32.mrf.mxu0
      %v1282 = vadd.f32 %v662, %v1281
      %v1283 = vpop.f32.mrf.mxu0
      %v1284 = vadd.f32 %v664, %v1283
      %v1285 = vpop.f32.mrf.mxu0
      %v1286 = vadd.f32 %v666, %v1285
      %v1287 = vpop.f32.mrf.mxu0
      %v1288 = vadd.f32 %v668, %v1287
      %1289 = vmatprep.mubr.bf16.mxu0 0
      %1290 = vmatmul.mubr.bf16.gmra.mxu0 %v486
      %v1291 = vpop.f32.mrf.mxu0
      %v1292 = vpop.f32.mrf.mxu0
      %v1293 = vadd.f32 %v673, %v1292
      %v1294 = vpop.f32.mrf.mxu0
      %v1295 = vpop.f32.mrf.mxu0
      %1296 = vmatprep.mubr.bf16.mxu0 0
      %1297 = vmatmul.mubr.bf16.gmra.mxu0 %v489
      %v1298 = vpop.f32.mrf.mxu0
      %v1299 = vadd.f32 %v679, %v1298
      %v1300 = vpop.f32.mrf.mxu0
      %v1301 = vadd.f32 %v681, %v1300
      %v1302 = vpop.f32.mrf.mxu0
      %v1303 = vadd.f32 %v683, %v1302
      %v1304 = vpop.f32.mrf.mxu0
      %v1305 = vadd.f32 %v685, %v1304
      %1306 = vmatprep.mubr.bf16.mxu0 0
      %1307 = vmatmul.mubr.bf16.gmra.mxu0 %v492
      %v1308 = vpop.f32.mrf.mxu0
      %v1309 = vpop.f32.mrf.mxu0
      %v1310 = vadd.f32 %v690, %v1309
      %v1311 = vpop.f32.mrf.mxu0
      %v1312 = vpop.f32.mrf.mxu0
      %1313 = vmatprep.mubr.bf16.mxu0 0
      %1314 = vmatmul.mubr.bf16.gmra.mxu0 %v495
      %v1315 = vpop.f32.mrf.mxu0
      %v1316 = vadd.f32 %v696, %v1315
      %v1317 = vpop.f32.mrf.mxu0
      %v1318 = vadd.f32 %v698, %v1317
      %v1319 = vpop.f32.mrf.mxu0
      %v1320 = vadd.f32 %v700, %v1319
      %v1321 = vpop.f32.mrf.mxu0
      %v1322 = vadd.f32 %v702, %v1321
      %1323 = vmatprep.mubr.bf16.mxu0 0
      %1324 = vmatmul.mubr.bf16.gmra.mxu0 %v498
      %v1325 = vpop.f32.mrf.mxu0
      %v1326 = vpop.f32.mrf.mxu0
      %v1327 = vadd.f32 %v707, %v1326
      %v1328 = vpop.f32.mrf.mxu0
      %v1329 = vpop.f32.mrf.mxu0
      %1330 = vmatprep.mubr.bf16.mxu0 0
      %1331 = vmatmul.mubr.bf16.gmra.mxu0 %v501
      %v1332 = vpop.f32.mrf.mxu0
      %v1333 = vadd.f32 %v713, %v1332
      %v1334 = vpop.f32.mrf.mxu0
      %v1335 = vadd.f32 %v715, %v1334
      %v1336 = vpop.f32.mrf.mxu0
      %v1337 = vadd.f32 %v717, %v1336
      %v1338 = vpop.f32.mrf.mxu0
      %v1339 = vadd.f32 %v719, %v1338
      %1340 = vmatprep.mubr.bf16.mxu0 0
      %1341 = vmatmul.mubr.bf16.gmra.mxu0 %v504
      %v1342 = vpop.f32.mrf.mxu0
      %v1343 = vpop.f32.mrf.mxu0
      %v1344 = vadd.f32 %v724, %v1343
      %v1345 = vpop.f32.mrf.mxu0
      %v1346 = vpop.f32.mrf.mxu0
      %1347 = vmatprep.mubr.bf16.mxu0 0
      %1348 = vmatmul.mubr.bf16.gmra.mxu0 %v507
      %v1349 = vpop.f32.mrf.mxu0
      %v1350 = vadd.f32 %v730, %v1349
      %v1351 = vpop.f32.mrf.mxu0
      %v1352 = vadd.f32 %v732, %v1351
      %v1353 = vpop.f32.mrf.mxu0
      %v1354 = vadd.f32 %v734, %v1353
      %v1355 = vpop.f32.mrf.mxu0
      %v1356 = vadd.f32 %v736, %v1355
      %1357 = vmatprep.mubr.bf16.mxu0 0
      %1358 = vmatmul.mubr.bf16.gmra.mxu0 %v510
      %v1359 = vpop.f32.mrf.mxu0
      %v1360 = vpop.f32.mrf.mxu0
      %v1361 = vadd.f32 %v741, %v1360
      %v1362 = vpop.f32.mrf.mxu0
      %v1363 = vpop.f32.mrf.mxu0
      %1364 = vmatprep.mubr.bf16.mxu0 0
      %1365 = vmatmul.mubr.bf16.gmra.mxu0 %v513
      %v1366 = vpop.f32.mrf.mxu0
      %v1367 = vadd.f32 %v747, %v1366
      %v1368 = vpop.f32.mrf.mxu0
      %v1369 = vadd.f32 %v749, %v1368
      %v1370 = vpop.f32.mrf.mxu0
      %v1371 = vadd.f32 %v751, %v1370
      %v1372 = vpop.f32.mrf.mxu0
      %v1373 = vadd.f32 %v753, %v1372
      %1374 = vmatprep.mubr.bf16.mxu0 0
      %1375 = vmatmul.mubr.bf16.gmra.mxu0 %v516
      %v1376 = vpop.f32.mrf.mxu0
      %v1377 = vpop.f32.mrf.mxu0
      %v1378 = vadd.f32 %v758, %v1377
      %v1379 = vpop.f32.mrf.mxu0
      %v1380 = vpop.f32.mrf.mxu0
      %1381 = vmatprep.mubr.bf16.mxu0 0
      %1382 = vmatmul.mubr.bf16.gmra.mxu0 %v519
      %v1383 = vpop.f32.mrf.mxu0
      %v1384 = vadd.f32 %v764, %v1383
      %v1385 = vpop.f32.mrf.mxu0
      %v1386 = vadd.f32 %v766, %v1385
      %v1387 = vpop.f32.mrf.mxu0
      %v1388 = vadd.f32 %v768, %v1387
      %v1389 = vpop.f32.mrf.mxu0
      %v1390 = vadd.f32 %v770, %v1389
      %1391 = vmatprep.mubr.bf16.mxu0 0
      %1392 = vmatmul.mubr.bf16.gmra.mxu0 %v522
      %v1393 = vpop.f32.mrf.mxu0
      %v1394 = vpop.f32.mrf.mxu0
      %v1395 = vadd.f32 %v775, %v1394
      %v1396 = vpop.f32.mrf.mxu0
      %v1397 = vpop.f32.mrf.mxu0
      %1398 = vmatprep.mubr.bf16.mxu0 0
      %1399 = vmatmul.mubr.bf16.gmra.mxu0 %v525
      %v1400 = vpop.f32.mrf.mxu0
      %v1401 = vadd.f32 %v781, %v1400
      %v1402 = vpop.f32.mrf.mxu0
      %v1403 = vadd.f32 %v783, %v1402
      %v1404 = vpop.f32.mrf.mxu0
      %v1405 = vadd.f32 %v785, %v1404
      %v1406 = vpop.f32.mrf.mxu0
      %v1407 = vadd.f32 %v787, %v1406
      %1408 = vmatprep.mubr.bf16.mxu0 0
      %1409 = vmatmul.mubr.bf16.gmra.mxu0 %v528
      %v1410 = vpop.f32.mrf.mxu0
      %v1411 = vpop.f32.mrf.mxu0
      %v1412 = vadd.f32 %v792, %v1411
      %v1413 = vpop.f32.mrf.mxu0
      %v1414 = vpop.f32.mrf.mxu0
      %1415 = vmatprep.mubr.bf16.mxu0 0
      %1416 = vmatmul.mubr.bf16.gmra.mxu0 %v531
      %v1417 = vpop.f32.mrf.mxu0
      %v1418 = vadd.f32 %v798, %v1417
      %v1419 = vpop.f32.mrf.mxu0
      %v1420 = vadd.f32 %v800, %v1419
      %v1421 = vpop.f32.mrf.mxu0
      %v1422 = vadd.f32 %v802, %v1421
      %v1423 = vpop.f32.mrf.mxu0
      %v1424 = vadd.f32 %v804, %v1423
      %1425 = vmatprep.mubr.bf16.mxu0 0
      %1426 = vmatmul.mubr.bf16.gmra.mxu0 %v534
      %v1427 = vpop.f32.mrf.mxu0
      %v1428 = vpop.f32.mrf.mxu0
      %v1429 = vadd.f32 %v809, %v1428
      %v1430 = vpop.f32.mrf.mxu0
      %v1431 = vpop.f32.mrf.mxu0
      %1432 = vmatprep.mubr.bf16.mxu0 0
      %1433 = vmatmul.mubr.bf16.gmra.mxu0 %v537
      %v1434 = vpop.f32.mrf.mxu0
      %v1435 = vadd.f32 %v815, %v1434
      %v1436 = vpop.f32.mrf.mxu0
      %v1437 = vadd.f32 %v817, %v1436
      %v1438 = vpop.f32.mrf.mxu0
      %v1439 = vadd.f32 %v819, %v1438
      %v1440 = vpop.f32.mrf.mxu0
      %v1441 = vadd.f32 %v821, %v1440
      %1442 = vmatprep.mubr.bf16.mxu0 0
      %1443 = vmatmul.mubr.bf16.gmra.mxu0 %v540
      %v1444 = vpop.f32.mrf.mxu0
      %v1445 = vpop.f32.mrf.mxu0
      %v1446 = vadd.f32 %v826, %v1445
      %v1447 = vpop.f32.mrf.mxu0
      %v1448 = vpop.f32.mrf.mxu0
      %1449 = vmatprep.mubr.bf16.mxu0 0
      %1450 = vmatmul.mubr.bf16.gmra.mxu0 %v543
      %v1451 = vpop.f32.mrf.mxu0
      %v1452 = vadd.f32 %v832, %v1451
      %v1453 = vpop.f32.mrf.mxu0
      %v1454 = vadd.f32 %v834, %v1453
      %v1455 = vpop.f32.mrf.mxu0
      %v1456 = vadd.f32 %v836, %v1455
      %v1457 = vpop.f32.mrf.mxu0
      %v1458 = vadd.f32 %v838, %v1457
      %1459 = vmatprep.mubr.bf16.mxu0 0
      %1460 = vmatmul.mubr.bf16.gmra.mxu0 %v546
      %v1461 = vpop.f32.mrf.mxu0
      %v1462 = vpop.f32.mrf.mxu0
      %v1463 = vadd.f32 %v843, %v1462
      %v1464 = vpop.f32.mrf.mxu0
      %v1465 = vpop.f32.mrf.mxu0
      %1466 = vmatprep.mubr.bf16.mxu0 0
      %1467 = vmatmul.mubr.bf16.gmra.mxu0 %v549
      %v1468 = vpop.f32.mrf.mxu0
      %v1469 = vadd.f32 %v849, %v1468
      %v1470 = vpop.f32.mrf.mxu0
      %v1471 = vadd.f32 %v851, %v1470
      %v1472 = vpop.f32.mrf.mxu0
      %v1473 = vadd.f32 %v853, %v1472
      %v1474 = vpop.f32.mrf.mxu0
      %v1475 = vadd.f32 %v855, %v1474
      %1476 = vmatprep.mubr.bf16.mxu0 0
      %1477 = vmatmul.mubr.bf16.gmra.mxu0 %v552
      %v1478 = vpop.f32.mrf.mxu0
      %v1479 = vpop.f32.mrf.mxu0
      %v1480 = vadd.f32 %v860, %v1479
      %v1481 = vpop.f32.mrf.mxu0
      %v1482 = vpop.f32.mrf.mxu0
      %1483 = vmatprep.mubr.bf16.mxu0 0
      %1484 = vmatmul.mubr.bf16.gmra.mxu0 %v555
      %v1485 = vpop.f32.mrf.mxu0
      %v1486 = vadd.f32 %v866, %v1485
      %v1487 = vpop.f32.mrf.mxu0
      %v1488 = vadd.f32 %v868, %v1487
      %v1489 = vpop.f32.mrf.mxu0
      %v1490 = vadd.f32 %v870, %v1489
      %v1491 = vpop.f32.mrf.mxu0
      %v1492 = vadd.f32 %v872, %v1491
      %1493 = vmatprep.mubr.bf16.mxu0 0
      %1494 = vmatmul.mubr.bf16.gmra.mxu0 %v558
      %v1495 = vpop.f32.mrf.mxu0
      %v1496 = vpop.f32.mrf.mxu0
      %v1497 = vadd.f32 %v877, %v1496
      %v1498 = vpop.f32.mrf.mxu0
      %v1499 = vpop.f32.mrf.mxu0
      %1500 = vdwg.mxu0
      %1501 = vmatprep.subr.bf16.mxu0 0
      %1502 = vmatpush1.bf16.msra.mxu0 0
      %1503 = vmatprep.subr.bf16.mxu0 0
      %1504 = vmatpush1.bf16.msra.mxu0 0
      %1505 = vmatprep.subr.bf16.mxu0 0
      %1506 = vmatpush1.bf16.msra.mxu0 0
      %1507 = vmatprep.subr.bf16.mxu0 0
      %1508 = vmatpush1.bf16.msra.mxu0 0
      %1509 = vmatprep.subr.bf16.mxu0 0
      %1510 = vmatpush1.bf16.msra.mxu0 0
      %1511 = vmatprep.subr.bf16.mxu0 0
      %1512 = vmatpush1.bf16.msra.mxu0 0
      %1513 = vmatprep.subr.bf16.mxu0 0
      %1514 = vmatpush1.bf16.msra.mxu0 0
      %1515 = vmatprep.subr.bf16.mxu0 0
      %1516 = vmatpush1.bf16.msra.mxu0 %v1194
      %1517 = vmatprep.subr.bf16.mxu0 0
      %1518 = vmatpush2.bf16.msra.mxu0 0
      %1519 = vmatprep.subr.bf16.mxu0 0
      %1520 = vmatpush2.bf16.msra.mxu0 0
      %1521 = vmatprep.subr.bf16.mxu0 0
      %1522 = vmatpush2.bf16.msra.mxu0 0
      %1523 = vmatprep.subr.bf16.mxu0 0
      %1524 = vmatpush2.bf16.msra.mxu0 0
      %1525 = vmatprep.subr.bf16.mxu0 0
      %1526 = vmatpush2.bf16.msra.mxu0 0
      %1527 = vmatprep.subr.bf16.mxu0 0
      %1528 = vmatpush2.bf16.msra.mxu0 0
      %1529 = vmatprep.subr.bf16.mxu0 0
      %1530 = vmatpush2.bf16.msra.mxu0 0
      %1531 = vmatprep.subr.bf16.mxu0 0
      %1532 = vmatpush2.bf16.msra.mxu0 0
      %1533 = vmatprep.mubr.bf16.mxu0 0
      %1534 = vmatmul.mubr.bf16.gmra.mxu0 %v1182
      %v1535 = vpop.f32.mrf.mxu0
      %v1536 = vadd.f32 %v916, %v1535
      %v1537 = vpop.f32.mrf.mxu0
      %v1538 = vpop.f32.mrf.mxu0
      %v1539 = vadd.f32 %v919, %v1538
      %v1540 = vpop.f32.mrf.mxu0
      %1541 = vmatprep.mubr.bf16.mxu0 0
      %1542 = vmatmul.mubr.bf16.gmra.mxu0 %v1185
      %v1543 = vpop.f32.mrf.mxu0
      %v1544 = vadd.f32 %v924, %v1543
      %v1545 = vpop.f32.mrf.mxu0
      %v1546 = vpop.f32.mrf.mxu0
      %v1547 = vpop.f32.mrf.mxu0
      %1548 = vmatprep.mubr.bf16.mxu0 0
      %1549 = vmatmul.mubr.bf16.gmra.mxu0 %v471
      %v1550 = vpop.f32.mrf.mxu0
      %v1551 = vadd.f32 %v931, %v1550
      %v1552 = vpop.f32.mrf.mxu0
      %v1553 = vpop.f32.mrf.mxu0
      %v1554 = vadd.f32 %v934, %v1553
      %v1555 = vpop.f32.mrf.mxu0
      %1556 = vmatprep.mubr.bf16.mxu0 0
      %1557 = vmatmul.mubr.bf16.gmra.mxu0 %v474
      %v1558 = vpop.f32.mrf.mxu0
      %v1559 = vadd.f32 %v939, %v1558
      %v1560 = vpop.f32.mrf.mxu0
      %v1561 = vpop.f32.mrf.mxu0
      %v1562 = vpop.f32.mrf.mxu0
      %1563 = vmatprep.mubr.bf16.mxu0 0
      %1564 = vmatmul.mubr.bf16.gmra.mxu0 %v477
      %v1565 = vpop.f32.mrf.mxu0
      %v1566 = vadd.f32 %v946, %v1565
      %v1567 = vpop.f32.mrf.mxu0
      %v1568 = vpop.f32.mrf.mxu0
      %v1569 = vadd.f32 %v949, %v1568
      %v1570 = vpop.f32.mrf.mxu0
      %1571 = vmatprep.mubr.bf16.mxu0 0
      %1572 = vmatmul.mubr.bf16.gmra.mxu0 %v480
      %v1573 = vpop.f32.mrf.mxu0
      %v1574 = vadd.f32 %v954, %v1573
      %v1575 = vpop.f32.mrf.mxu0
      %v1576 = vpop.f32.mrf.mxu0
      %v1577 = vpop.f32.mrf.mxu0
      %1578 = vmatprep.mubr.bf16.mxu0 0
      %1579 = vmatmul.mubr.bf16.gmra.mxu0 %v483
      %v1580 = vpop.f32.mrf.mxu0
      %v1581 = vadd.f32 %v961, %v1580
      %v1582 = vpop.f32.mrf.mxu0
      %v1583 = vpop.f32.mrf.mxu0
      %v1584 = vadd.f32 %v964, %v1583
      %v1585 = vpop.f32.mrf.mxu0
      %1586 = vmatprep.mubr.bf16.mxu0 0
      %1587 = vmatmul.mubr.bf16.gmra.mxu0 %v486
      %v1588 = vpop.f32.mrf.mxu0
      %v1589 = vadd.f32 %v969, %v1588
      %v1590 = vpop.f32.mrf.mxu0
      %v1591 = vpop.f32.mrf.mxu0
      %v1592 = vpop.f32.mrf.mxu0
      %1593 = vmatprep.mubr.bf16.mxu0 0
      %1594 = vmatmul.mubr.bf16.gmra.mxu0 %v489
      %v1595 = vpop.f32.mrf.mxu0
      %v1596 = vadd.f32 %v976, %v1595
      %v1597 = vpop.f32.mrf.mxu0
      %v1598 = vpop.f32.mrf.mxu0
      %v1599 = vadd.f32 %v979, %v1598
      %v1600 = vpop.f32.mrf.mxu0
      %1601 = vmatprep.mubr.bf16.mxu0 0
      %1602 = vmatmul.mubr.bf16.gmra.mxu0 %v492
      %v1603 = vpop.f32.mrf.mxu0
      %v1604 = vadd.f32 %v984, %v1603
      %v1605 = vpop.f32.mrf.mxu0
      %v1606 = vpop.f32.mrf.mxu0
      %v1607 = vpop.f32.mrf.mxu0
      %1608 = vmatprep.mubr.bf16.mxu0 0
      %1609 = vmatmul.mubr.bf16.gmra.mxu0 %v495
      %v1610 = vpop.f32.mrf.mxu0
      %v1611 = vadd.f32 %v991, %v1610
      %v1612 = vpop.f32.mrf.mxu0
      %v1613 = vpop.f32.mrf.mxu0
      %v1614 = vadd.f32 %v994, %v1613
      %v1615 = vpop.f32.mrf.mxu0
      %1616 = vmatprep.mubr.bf16.mxu0 0
      %1617 = vmatmul.mubr.bf16.gmra.mxu0 %v498
      %v1618 = vpop.f32.mrf.mxu0
      %v1619 = vadd.f32 %v999, %v1618
      %v1620 = vpop.f32.mrf.mxu0
      %v1621 = vpop.f32.mrf.mxu0
      %v1622 = vpop.f32.mrf.mxu0
      %1623 = vmatprep.mubr.bf16.mxu0 0
      %1624 = vmatmul.mubr.bf16.gmra.mxu0 %v501
      %v1625 = vpop.f32.mrf.mxu0
      %v1626 = vadd.f32 %v1006, %v1625
      %v1627 = vpop.f32.mrf.mxu0
      %v1628 = vpop.f32.mrf.mxu0
      %v1629 = vadd.f32 %v1009, %v1628
      %v1630 = vpop.f32.mrf.mxu0
      %1631 = vmatprep.mubr.bf16.mxu0 0
      %1632 = vmatmul.mubr.bf16.gmra.mxu0 %v504
      %v1633 = vpop.f32.mrf.mxu0
      %v1634 = vadd.f32 %v1014, %v1633
      %v1635 = vpop.f32.mrf.mxu0
      %v1636 = vpop.f32.mrf.mxu0
      %v1637 = vpop.f32.mrf.mxu0
      %1638 = vmatprep.mubr.bf16.mxu0 0
      %1639 = vmatmul.mubr.bf16.gmra.mxu0 %v507
      %v1640 = vpop.f32.mrf.mxu0
      %v1641 = vadd.f32 %v1021, %v1640
      %v1642 = vpop.f32.mrf.mxu0
      %v1643 = vpop.f32.mrf.mxu0
      %v1644 = vadd.f32 %v1024, %v1643
      %v1645 = vpop.f32.mrf.mxu0
      %1646 = vmatprep.mubr.bf16.mxu0 0
      %1647 = vmatmul.mubr.bf16.gmra.mxu0 %v510
      %v1648 = vpop.f32.mrf.mxu0
      %v1649 = vadd.f32 %v1029, %v1648
      %v1650 = vpop.f32.mrf.mxu0
      %v1651 = vpop.f32.mrf.mxu0
      %v1652 = vpop.f32.mrf.mxu0
      %1653 = vmatprep.mubr.bf16.mxu0 0
      %1654 = vmatmul.mubr.bf16.gmra.mxu0 %v513
      %v1655 = vpop.f32.mrf.mxu0
      %v1656 = vadd.f32 %v1036, %v1655
      %v1657 = vpop.f32.mrf.mxu0
      %v1658 = vpop.f32.mrf.mxu0
      %v1659 = vadd.f32 %v1039, %v1658
      %v1660 = vpop.f32.mrf.mxu0
      %1661 = vmatprep.mubr.bf16.mxu0 0
      %1662 = vmatmul.mubr.bf16.gmra.mxu0 %v516
      %v1663 = vpop.f32.mrf.mxu0
      %v1664 = vadd.f32 %v1044, %v1663
      %v1665 = vpop.f32.mrf.mxu0
      %v1666 = vpop.f32.mrf.mxu0
      %v1667 = vpop.f32.mrf.mxu0
      %1668 = vmatprep.mubr.bf16.mxu0 0
      %1669 = vmatmul.mubr.bf16.gmra.mxu0 %v519
      %v1670 = vpop.f32.mrf.mxu0
      %v1671 = vadd.f32 %v1051, %v1670
      %v1672 = vpop.f32.mrf.mxu0
      %v1673 = vpop.f32.mrf.mxu0
      %v1674 = vadd.f32 %v1054, %v1673
      %v1675 = vpop.f32.mrf.mxu0
      %1676 = vmatprep.mubr.bf16.mxu0 0
      %1677 = vmatmul.mubr.bf16.gmra.mxu0 %v522
      %v1678 = vpop.f32.mrf.mxu0
      %v1679 = vadd.f32 %v1059, %v1678
      %v1680 = vpop.f32.mrf.mxu0
      %v1681 = vpop.f32.mrf.mxu0
      %v1682 = vpop.f32.mrf.mxu0
      %1683 = vmatprep.mubr.bf16.mxu0 0
      %1684 = vmatmul.mubr.bf16.gmra.mxu0 %v525
      %v1685 = vpop.f32.mrf.mxu0
      %v1686 = vadd.f32 %v1066, %v1685
      %v1687 = vpop.f32.mrf.mxu0
      %v1688 = vpop.f32.mrf.mxu0
      %v1689 = vadd.f32 %v1069, %v1688
      %v1690 = vpop.f32.mrf.mxu0
      %1691 = vmatprep.mubr.bf16.mxu0 0
      %1692 = vmatmul.mubr.bf16.gmra.mxu0 %v528
      %v1693 = vpop.f32.mrf.mxu0
      %v1694 = vadd.f32 %v1074, %v1693
      %v1695 = vpop.f32.mrf.mxu0
      %v1696 = vpop.f32.mrf.mxu0
      %v1697 = vpop.f32.mrf.mxu0
      %1698 = vmatprep.mubr.bf16.mxu0 0
      %1699 = vmatmul.mubr.bf16.gmra.mxu0 %v531
      %v1700 = vpop.f32.mrf.mxu0
      %v1701 = vadd.f32 %v1081, %v1700
      %v1702 = vpop.f32.mrf.mxu0
      %v1703 = vpop.f32.mrf.mxu0
      %v1704 = vadd.f32 %v1084, %v1703
      %v1705 = vpop.f32.mrf.mxu0
      %1706 = vmatprep.mubr.bf16.mxu0 0
      %1707 = vmatmul.mubr.bf16.gmra.mxu0 %v534
      %v1708 = vpop.f32.mrf.mxu0
      %v1709 = vadd.f32 %v1089, %v1708
      %v1710 = vpop.f32.mrf.mxu0
      %v1711 = vpop.f32.mrf.mxu0
      %v1712 = vpop.f32.mrf.mxu0
      %1713 = vmatprep.mubr.bf16.mxu0 0
      %1714 = vmatmul.mubr.bf16.gmra.mxu0 %v537
      %v1715 = vpop.f32.mrf.mxu0
      %v1716 = vadd.f32 %v1096, %v1715
      %v1717 = vpop.f32.mrf.mxu0
      %v1718 = vpop.f32.mrf.mxu0
      %v1719 = vadd.f32 %v1099, %v1718
      %v1720 = vpop.f32.mrf.mxu0
      %1721 = vmatprep.mubr.bf16.mxu0 0
      %1722 = vmatmul.mubr.bf16.gmra.mxu0 %v540
      %v1723 = vpop.f32.mrf.mxu0
      %v1724 = vadd.f32 %v1104, %v1723
      %v1725 = vpop.f32.mrf.mxu0
      %v1726 = vpop.f32.mrf.mxu0
      %v1727 = vpop.f32.mrf.mxu0
      %1728 = vmatprep.mubr.bf16.mxu0 0
      %1729 = vmatmul.mubr.bf16.gmra.mxu0 %v543
      %v1730 = vpop.f32.mrf.mxu0
      %v1731 = vadd.f32 %v1111, %v1730
      %v1732 = vpop.f32.mrf.mxu0
      %v1733 = vpop.f32.mrf.mxu0
      %v1734 = vadd.f32 %v1114, %v1733
      %v1735 = vpop.f32.mrf.mxu0
      %1736 = vmatprep.mubr.bf16.mxu0 0
      %1737 = vmatmul.mubr.bf16.gmra.mxu0 %v546
      %v1738 = vpop.f32.mrf.mxu0
      %v1739 = vadd.f32 %v1119, %v1738
      %v1740 = vpop.f32.mrf.mxu0
      %v1741 = vpop.f32.mrf.mxu0
      %v1742 = vpop.f32.mrf.mxu0
      %1743 = vmatprep.mubr.bf16.mxu0 0
      %1744 = vmatmul.mubr.bf16.gmra.mxu0 %v549
      %v1745 = vpop.f32.mrf.mxu0
      %v1746 = vadd.f32 %v1126, %v1745
      %v1747 = vpop.f32.mrf.mxu0
      %v1748 = vpop.f32.mrf.mxu0
      %v1749 = vadd.f32 %v1129, %v1748
      %v1750 = vpop.f32.mrf.mxu0
      %1751 = vmatprep.mubr.bf16.mxu0 0
      %1752 = vmatmul.mubr.bf16.gmra.mxu0 %v552
      %v1753 = vpop.f32.mrf.mxu0
      %v1754 = vadd.f32 %v1134, %v1753
      %v1755 = vpop.f32.mrf.mxu0
      %v1756 = vpop.f32.mrf.mxu0
      %v1757 = vpop.f32.mrf.mxu0
      %1758 = vmatprep.mubr.bf16.mxu0 0
      %1759 = vmatmul.mubr.bf16.gmra.mxu0 %v555
      %v1760 = vpop.f32.mrf.mxu0
      %v1761 = vadd.f32 %v1141, %v1760
      %v1762 = vpop.f32.mrf.mxu0
      %v1763 = vpop.f32.mrf.mxu0
      %v1764 = vadd.f32 %v1144, %v1763
      %v1765 = vpop.f32.mrf.mxu0
      %1766 = vmatprep.mubr.bf16.mxu0 0
      %1767 = vmatmul.mubr.bf16.gmra.mxu0 %v558
      %v1768 = vpop.f32.mrf.mxu0
      %v1769 = vadd.f32 %v1149, %v1768
      %v1770 = vpop.f32.mrf.mxu0
      %v1771 = vpop.f32.mrf.mxu0
      %v1772 = vpop.f32.mrf.mxu0
      %1773 = vdwg.mxu0
      %v1774 = vld [vmem:[%s205 + $0x20] sm:$0xf]
      %v1775 = vld [vmem:[%s205 + $0x24] sm:$0xf]
      %v1776 = vld [vmem:[%s205 + $0x28] sm:$0xf]
      %v1777 = vld [vmem:[%s205 + $0x2c] sm:$0xf]
      %v1778 = vld [vmem:[%s205 + $0x30] sm:$0xf]
      %v1779 = vld [vmem:[%s205 + $0x34] sm:$0xf]
      %v1780 = vld [vmem:[%s205 + $0x38] sm:$0xf]
      %v1781 = vld [vmem:[%s205 + $0x3c] sm:$0xf]
      %v1782 = vld [vmem:[%s205 + $0x40] sm:$0xf]
      %v1783 = vld [vmem:[%s205 + $0x44] sm:$0xf]
      %v1784 = vld [vmem:[%s205 + $0x48] sm:$0xf]
      %v1785 = vld [vmem:[%s205 + $0x4c] sm:$0xf]
      %v1786 = vld [vmem:[%s205 + $0x50] sm:$0xf]
      %v1787 = vld [vmem:[%s205 + $0x54] sm:$0xf]
      %v1788 = vld [vmem:[%s205 + $0x58] sm:$0xf]
      %v1789 = vld [vmem:[%s205 + $0x5c] sm:$0xf]
      %v1790 = vld [vmem:[%s205 + $0x60] sm:$0xf]
      %v1791 = vld [vmem:[%s205 + $0x64] sm:$0xf]
      %v1792 = vld [vmem:[%s205 + $0x68] sm:$0xf]
      %v1793 = vld [vmem:[%s205 + $0x6c] sm:$0xf]
      %v1794 = vld [vmem:[%s205 + $0x70] sm:$0xf]
      %v1795 = vld [vmem:[%s205 + $0x74] sm:$0xf]
      %v1796 = vld [vmem:[%s205 + $0x78] sm:$0xf]
      %v1797 = vld [vmem:[%s205 + $0x7c] sm:$0xf]
      %v1798 = vld [vmem:[%s205 + $0x80] sm:$0xf]
      %v1799 = vld [vmem:[%s205 + $0x84] sm:$0xf]
      %v1800 = vld [vmem:[%s205 + $0x88] sm:$0xf]
      %v1801 = vld [vmem:[%s205 + $0x8c] sm:$0xf]
      %v1802 = vld [vmem:[%s205 + $0x90] sm:$0xf]
      %v1803 = vld [vmem:[%s205 + $0x94] sm:$0xf]
      %v1804 = vld [vmem:[%s205 + $0x98] sm:$0xf]
      %v1805 = vld [vmem:[%s205 + $0x9c] sm:$0xf]
      %v1806 = vld [vmem:[%s205 + $0xa0] sm:$0xf]
      %v1807 = vld [vmem:[%s205 + $0xa4] sm:$0xf]
      %v1808 = vld [vmem:[%s205 + $0xa8] sm:$0xf]
      %v1809 = vld [vmem:[%s205 + $0xac] sm:$0xf]
      %v1810 = vld [vmem:[%s205 + $0xb0] sm:$0xf]
      %v1811 = vld [vmem:[%s205 + $0xb4] sm:$0xf]
      %v1812 = vld [vmem:[%s205 + $0xb8] sm:$0xf]
      %v1813 = vld [vmem:[%s205 + $0xbc] sm:$0xf]
      %v1814 = vld [vmem:[%s205 + $0xc0] sm:$0xf]
      %v1815 = vld [vmem:[%s205 + $0xc4] sm:$0xf]
      %v1816 = vld [vmem:[%s205 + $0xc8] sm:$0xf]
      %v1817 = vld [vmem:[%s205 + $0xcc] sm:$0xf]
      %v1818 = vld [vmem:[%s205 + $0xd0] sm:$0xf]
      %v1819 = vld [vmem:[%s205 + $0xd4] sm:$0xf]
      %v1820 = vld [vmem:[%s205 + $0xd8] sm:$0xf]
      %v1821 = vld [vmem:[%s205 + $0xdc] sm:$0xf]
      %v1822 = vld [vmem:[%s205 + $0xe0] sm:$0xf]
      %v1823 = vld [vmem:[%s205 + $0xe4] sm:$0xf]
      %v1824 = vld [vmem:[%s205 + $0xe8] sm:$0xf]
      %v1825 = vld [vmem:[%s205 + $0xec] sm:$0xf]
      %v1826 = vld [vmem:[%s205 + $0xf0] sm:$0xf]
      %v1827 = vld [vmem:[%s205 + $0xf4] sm:$0xf]
      %v1828 = vld [vmem:[%s205 + $0xf8] sm:$0xf]
      %v1829 = vld [vmem:[%s205 + $0xfc] sm:$0xf]
      %v1830 = vld [vmem:[%s205 + $0x100] sm:$0xf]
      %v1831 = vld [vmem:[%s205 + $0x104] sm:$0xf]
      %v1832 = vld [vmem:[%s205 + $0x108] sm:$0xf]
      %v1833 = vld [vmem:[%s205 + $0x10c] sm:$0xf]
      %v1834 = vld [vmem:[%s205 + $0x110] sm:$0xf]
      %v1835 = vld [vmem:[%s205 + $0x114] sm:$0xf]
      %v1836 = vld [vmem:[%s205 + $0x118] sm:$0xf]
      %v1837 = vld [vmem:[%s205 + $0x11c] sm:$0xf]
      %s1838 = scalar_lea.vmem %s1, 12
      %v1839 = vld [vmem:[%s1838] sm:$0x3f]
      %v1904 = vunpack.c.l.b16 %v1774
      %v1905 = vunpack.c.l.b16 %v1775
      %v1906 = vunpack.c.l.b16 %v1776
      %v1907 = vunpack.c.l.b16 %v1777
      %v1908 = vunpack.c.l.b16 %v1778
      %v1909 = vunpack.c.l.b16 %v1779
      %v1910 = vunpack.c.l.b16 %v1780
      %v1911 = vunpack.c.l.b16 %v1781
      %v1912 = vunpack.c.l.b16 %v1782
      %v1913 = vunpack.c.l.b16 %v1783
      %v1914 = vunpack.c.l.b16 %v1784
      %v1915 = vunpack.c.l.b16 %v1785
      %v1916 = vunpack.c.l.b16 %v1786
      %v1917 = vunpack.c.l.b16 %v1787
      %v1918 = vunpack.c.l.b16 %v1788
      %v1919 = vunpack.c.l.b16 %v1789
      %v1920 = vunpack.c.l.b16 %v1790
      %v1921 = vunpack.c.l.b16 %v1791
      %v1922 = vunpack.c.l.b16 %v1792
      %v1923 = vunpack.c.l.b16 %v1793
      %v1924 = vunpack.c.l.b16 %v1794
      %v1925 = vunpack.c.l.b16 %v1795
      %v1926 = vunpack.c.l.b16 %v1796
      %v1927 = vunpack.c.l.b16 %v1797
      %v1928 = vunpack.c.l.b16 %v1798
      %v1929 = vunpack.c.l.b16 %v1799
      %v1930 = vunpack.c.l.b16 %v1800
      %v1931 = vunpack.c.l.b16 %v1801
      %v1932 = vunpack.c.l.b16 %v1802
      %v1933 = vunpack.c.l.b16 %v1803
      %v1934 = vunpack.c.l.b16 %v1804
      %v1935 = vunpack.c.l.b16 %v1805
      %v1936 = vunpack.c.l.b16 %v1806
      %v1937 = vunpack.c.l.b16 %v1807
      %v1938 = vunpack.c.l.b16 %v1808
      %v1939 = vunpack.c.l.b16 %v1809
      %v1940 = vunpack.c.l.b16 %v1810
      %v1941 = vunpack.c.l.b16 %v1811
      %v1942 = vunpack.c.l.b16 %v1812
      %v1943 = vunpack.c.l.b16 %v1813
      %v1944 = vunpack.c.l.b16 %v1814
      %v1945 = vunpack.c.l.b16 %v1815
      %v1946 = vunpack.c.l.b16 %v1816
      %v1947 = vunpack.c.l.b16 %v1817
      %v1948 = vunpack.c.l.b16 %v1818
      %v1949 = vunpack.c.l.b16 %v1819
      %v1950 = vunpack.c.l.b16 %v1820
      %v1951 = vunpack.c.l.b16 %v1821
      %v1952 = vunpack.c.l.b16 %v1822
      %v1953 = vunpack.c.l.b16 %v1823
      %v1954 = vunpack.c.l.b16 %v1824
      %v1955 = vunpack.c.l.b16 %v1825
      %v1956 = vunpack.c.l.b16 %v1826
      %v1957 = vunpack.c.l.b16 %v1827
      %v1958 = vunpack.c.l.b16 %v1828
      %v1959 = vunpack.c.l.b16 %v1829
      %v1960 = vunpack.c.l.b16 %v1830
      %v1961 = vunpack.c.l.b16 %v1831
      %v1962 = vunpack.c.l.b16 %v1832
      %v1963 = vunpack.c.l.b16 %v1833
      %v1964 = vunpack.c.l.b16 %v1834
      %v1965 = vunpack.c.l.b16 %v1835
      %v1966 = vunpack.c.l.b16 %v1836
      %v1967 = vunpack.c.l.b16 %v1837
      %v1968 = vpack.c.b16 %v1905, %v1904
      %v1969 = vpack.c.b16 %v1907, %v1906
      %v1970 = vpack.c.b16 %v1909, %v1908
      %v1971 = vpack.c.b16 %v1911, %v1910
      %v1972 = vpack.c.b16 %v1913, %v1912
      %v1973 = vpack.c.b16 %v1915, %v1914
      %v1974 = vpack.c.b16 %v1917, %v1916
      %v1975 = vpack.c.b16 %v1919, %v1918
      %v1976 = vpack.c.b16 %v1921, %v1920
      %v1977 = vpack.c.b16 %v1923, %v1922
      %v1978 = vpack.c.b16 %v1925, %v1924
      %v1979 = vpack.c.b16 %v1927, %v1926
      %v1980 = vpack.c.b16 %v1929, %v1928
      %v1981 = vpack.c.b16 %v1931, %v1930
      %v1982 = vpack.c.b16 %v1933, %v1932
      %v1983 = vpack.c.b16 %v1935, %v1934
      %v1984 = vpack.c.b16 %v1937, %v1936
      %v1985 = vpack.c.b16 %v1939, %v1938
      %v1986 = vpack.c.b16 %v1941, %v1940
      %v1987 = vpack.c.b16 %v1943, %v1942
      %v1988 = vpack.c.b16 %v1945, %v1944
      %v1989 = vpack.c.b16 %v1947, %v1946
      %v1990 = vpack.c.b16 %v1949, %v1948
      %v1991 = vpack.c.b16 %v1951, %v1950
      %v1992 = vpack.c.b16 %v1953, %v1952
      %v1993 = vpack.c.b16 %v1955, %v1954
      %v1994 = vpack.c.b16 %v1957, %v1956
      %v1995 = vpack.c.b16 %v1959, %v1958
      %v1996 = vpack.c.b16 %v1961, %v1960
      %v1997 = vpack.c.b16 %v1963, %v1962
      %v1998 = vpack.c.b16 %v1965, %v1964
      %v1999 = vpack.c.b16 %v1967, %v1966
      %v2001 = vcombine.high %v1839, %v1839
      %v2003 = vunpack.c.l.s4 1983009808
      %v2004 = vunpack.c.0.s8 %v2003
      %v2005 = vlaneseq
      %v2006 = vshrl.u32 %v2005, 7
      %v2007 = vsub.s32 %v2004, %v2006
      %v2008 = vrot.slane %v1839, %v2007
      %v2010 = vunpack.c.l.s4 1983009808
      %v2011 = vunpack.c.0.s8 %v2010
      %v2012 = vlaneseq
      %v2013 = vshrl.u32 %v2012, 7
      %v2014 = vsub.s32 %v2011, %v2013
      %v2015 = vrot.slane %v2001, %v2014
      %v2016 = vcombine.high %v2008, %v2008
      %v2018 = vsel %vm469, %v1968, 0
      %v2021 = vsel %vm469, %v1969, 0
      %v2024 = vsel %vm469, %v1970, 0
      %v2027 = vsel %vm469, %v1971, 0
      %v2030 = vsel %vm469, %v1972, 0
      %v2033 = vsel %vm469, %v1973, 0
      %v2036 = vsel %vm469, %v1974, 0
      %v2039 = vsel %vm469, %v1975, 0
      %v2042 = vsel %vm469, %v1976, 0
      %v2045 = vsel %vm469, %v1977, 0
      %v2048 = vsel %vm469, %v1978, 0
      %v2051 = vsel %vm469, %v1979, 0
      %v2054 = vsel %vm469, %v1980, 0
      %v2057 = vsel %vm469, %v1981, 0
      %v2060 = vsel %vm469, %v1982, 0
      %v2063 = vsel %vm469, %v1983, 0
      %v2066 = vsel %vm469, %v1984, 0
      %v2069 = vsel %vm469, %v1985, 0
      %v2072 = vsel %vm469, %v1986, 0
      %v2075 = vsel %vm469, %v1987, 0
      %v2078 = vsel %vm469, %v1988, 0
      %v2081 = vsel %vm469, %v1989, 0
      %v2084 = vsel %vm469, %v1990, 0
      %v2087 = vsel %vm469, %v1991, 0
      %v2090 = vsel %vm469, %v1992, 0
      %v2093 = vsel %vm469, %v1993, 0
      %v2096 = vsel %vm469, %v1994, 0
      %v2099 = vsel %vm469, %v1995, 0
      %v2102 = vsel %vm469, %v1996, 0
      %v2105 = vsel %vm469, %v1997, 0
      %v2108 = vsel %vm469, %v1998, 0
      %v2111 = vsel %vm469, %v1999, 0
      %v2114 = vsel %vm566, %v2008, 0
      %v2117 = vsel %vm566, %v2016, 0
      %v2120 = vsel %vm566, %v2015, 0
      %2122 = vmatprep.subr.bf16.mxu0 0
      %2123 = vmatpush1.bf16.msra.mxu0 0
      %2124 = vmatprep.subr.bf16.mxu0 0
      %2125 = vmatpush1.bf16.msra.mxu0 0
      %2126 = vmatprep.subr.bf16.mxu0 0
      %2127 = vmatpush1.bf16.msra.mxu0 0
      %2128 = vmatprep.subr.bf16.mxu0 0
      %2129 = vmatpush1.bf16.msra.mxu0 0
      %2130 = vmatprep.subr.bf16.mxu0 0
      %2131 = vmatpush1.bf16.msra.mxu0 0
      %2132 = vmatprep.subr.bf16.mxu0 0
      %2133 = vmatpush1.bf16.msra.mxu0 0
      %2134 = vmatprep.subr.bf16.mxu0 0
      %2135 = vmatpush1.bf16.msra.mxu0 0
      %2136 = vmatprep.subr.bf16.mxu0 %v2117
      %2137 = vmatpush1.bf16.msra.mxu0 %v2114
      %2138 = vmatprep.subr.bf16.mxu0 0
      %2139 = vmatpush2.bf16.msra.mxu0 0
      %2140 = vmatprep.subr.bf16.mxu0 0
      %2141 = vmatpush2.bf16.msra.mxu0 0
      %2142 = vmatprep.subr.bf16.mxu0 0
      %2143 = vmatpush2.bf16.msra.mxu0 0
      %2144 = vmatprep.subr.bf16.mxu0 0
      %2145 = vmatpush2.bf16.msra.mxu0 0
      %2146 = vmatprep.subr.bf16.mxu0 0
      %2147 = vmatpush2.bf16.msra.mxu0 0
      %2148 = vmatprep.subr.bf16.mxu0 0
      %2149 = vmatpush2.bf16.msra.mxu0 0
      %2150 = vmatprep.subr.bf16.mxu0 0
      %2151 = vmatpush2.bf16.msra.mxu0 0
      %2152 = vmatprep.subr.bf16.mxu0 0
      %2153 = vmatpush2.bf16.msra.mxu0 0
      %2154 = vmatprep.mubr.bf16.mxu0 0
      %2155 = vmatmul.mubr.bf16.gmra.mxu0 %v2018
      %v2156 = vpop.f32.mrf.mxu0
      %v2157 = vadd.f32 0.0, %v2156
      %v2158 = vpop.f32.mrf.mxu0
      %v2159 = vadd.f32 0.0, %v2158
      %v2160 = vpop.f32.mrf.mxu0
      %v2161 = vadd.f32 0.0, %v2160
      %v2162 = vpop.f32.mrf.mxu0
      %v2163 = vadd.f32 0.0, %v2162
      %2164 = vmatprep.mubr.bf16.mxu0 0
      %2165 = vmatmul.mubr.bf16.gmra.mxu0 %v2021
      %v2166 = vpop.f32.mrf.mxu0
      %v2167 = vpop.f32.mrf.mxu0
      %v2168 = vadd.f32 0.0, %v2167
      %v2169 = vpop.f32.mrf.mxu0
      %v2170 = vpop.f32.mrf.mxu0
      %2171 = vmatprep.mubr.bf16.mxu0 0
      %2172 = vmatmul.mubr.bf16.gmra.mxu0 %v2024
      %v2173 = vpop.f32.mrf.mxu0
      %v2174 = vadd.f32 0.0, %v2173
      %v2175 = vpop.f32.mrf.mxu0
      %v2176 = vadd.f32 0.0, %v2175
      %v2177 = vpop.f32.mrf.mxu0
      %v2178 = vadd.f32 0.0, %v2177
      %v2179 = vpop.f32.mrf.mxu0
      %v2180 = vadd.f32 0.0, %v2179
      %2181 = vmatprep.mubr.bf16.mxu0 0
      %2182 = vmatmul.mubr.bf16.gmra.mxu0 %v2027
      %v2183 = vpop.f32.mrf.mxu0
      %v2184 = vpop.f32.mrf.mxu0
      %v2185 = vadd.f32 0.0, %v2184
      %v2186 = vpop.f32.mrf.mxu0
      %v2187 = vpop.f32.mrf.mxu0
      %2188 = vmatprep.mubr.bf16.mxu0 0
      %2189 = vmatmul.mubr.bf16.gmra.mxu0 %v2030
      %v2190 = vpop.f32.mrf.mxu0
      %v2191 = vadd.f32 0.0, %v2190
      %v2192 = vpop.f32.mrf.mxu0
      %v2193 = vadd.f32 0.0, %v2192
      %v2194 = vpop.f32.mrf.mxu0
      %v2195 = vadd.f32 0.0, %v2194
      %v2196 = vpop.f32.mrf.mxu0
      %v2197 = vadd.f32 0.0, %v2196
      %2198 = vmatprep.mubr.bf16.mxu0 0
      %2199 = vmatmul.mubr.bf16.gmra.mxu0 %v2033
      %v2200 = vpop.f32.mrf.mxu0
      %v2201 = vpop.f32.mrf.mxu0
      %v2202 = vadd.f32 0.0, %v2201
      %v2203 = vpop.f32.mrf.mxu0
      %v2204 = vpop.f32.mrf.mxu0
      %2205 = vmatprep.mubr.bf16.mxu0 0
      %2206 = vmatmul.mubr.bf16.gmra.mxu0 %v2036
      %v2207 = vpop.f32.mrf.mxu0
      %v2208 = vadd.f32 0.0, %v2207
      %v2209 = vpop.f32.mrf.mxu0
      %v2210 = vadd.f32 0.0, %v2209
      %v2211 = vpop.f32.mrf.mxu0
      %v2212 = vadd.f32 0.0, %v2211
      %v2213 = vpop.f32.mrf.mxu0
      %v2214 = vadd.f32 0.0, %v2213
      %2215 = vmatprep.mubr.bf16.mxu0 0
      %2216 = vmatmul.mubr.bf16.gmra.mxu0 %v2039
      %v2217 = vpop.f32.mrf.mxu0
      %v2218 = vpop.f32.mrf.mxu0
      %v2219 = vadd.f32 0.0, %v2218
      %v2220 = vpop.f32.mrf.mxu0
      %v2221 = vpop.f32.mrf.mxu0
      %2222 = vmatprep.mubr.bf16.mxu0 0
      %2223 = vmatmul.mubr.bf16.gmra.mxu0 %v2042
      %v2224 = vpop.f32.mrf.mxu0
      %v2225 = vadd.f32 0.0, %v2224
      %v2226 = vpop.f32.mrf.mxu0
      %v2227 = vadd.f32 0.0, %v2226
      %v2228 = vpop.f32.mrf.mxu0
      %v2229 = vadd.f32 0.0, %v2228
      %v2230 = vpop.f32.mrf.mxu0
      %v2231 = vadd.f32 0.0, %v2230
      %2232 = vmatprep.mubr.bf16.mxu0 0
      %2233 = vmatmul.mubr.bf16.gmra.mxu0 %v2045
      %v2234 = vpop.f32.mrf.mxu0
      %v2235 = vpop.f32.mrf.mxu0
      %v2236 = vadd.f32 0.0, %v2235
      %v2237 = vpop.f32.mrf.mxu0
      %v2238 = vpop.f32.mrf.mxu0
      %2239 = vmatprep.mubr.bf16.mxu0 0
      %2240 = vmatmul.mubr.bf16.gmra.mxu0 %v2048
      %v2241 = vpop.f32.mrf.mxu0
      %v2242 = vadd.f32 0.0, %v2241
      %v2243 = vpop.f32.mrf.mxu0
      %v2244 = vadd.f32 0.0, %v2243
      %v2245 = vpop.f32.mrf.mxu0
      %v2246 = vadd.f32 0.0, %v2245
      %v2247 = vpop.f32.mrf.mxu0
      %v2248 = vadd.f32 0.0, %v2247
      %2249 = vmatprep.mubr.bf16.mxu0 0
      %2250 = vmatmul.mubr.bf16.gmra.mxu0 %v2051
      %v2251 = vpop.f32.mrf.mxu0
      %v2252 = vpop.f32.mrf.mxu0
      %v2253 = vadd.f32 0.0, %v2252
      %v2254 = vpop.f32.mrf.mxu0
      %v2255 = vpop.f32.mrf.mxu0
      %2256 = vmatprep.mubr.bf16.mxu0 0
      %2257 = vmatmul.mubr.bf16.gmra.mxu0 %v2054
      %v2258 = vpop.f32.mrf.mxu0
      %v2259 = vadd.f32 0.0, %v2258
      %v2260 = vpop.f32.mrf.mxu0
      %v2261 = vadd.f32 0.0, %v2260
      %v2262 = vpop.f32.mrf.mxu0
      %v2263 = vadd.f32 0.0, %v2262
      %v2264 = vpop.f32.mrf.mxu0
      %v2265 = vadd.f32 0.0, %v2264
      %2266 = vmatprep.mubr.bf16.mxu0 0
      %2267 = vmatmul.mubr.bf16.gmra.mxu0 %v2057
      %v2268 = vpop.f32.mrf.mxu0
      %v2269 = vpop.f32.mrf.mxu0
      %v2270 = vadd.f32 0.0, %v2269
      %v2271 = vpop.f32.mrf.mxu0
      %v2272 = vpop.f32.mrf.mxu0
      %2273 = vmatprep.mubr.bf16.mxu0 0
      %2274 = vmatmul.mubr.bf16.gmra.mxu0 %v2060
      %v2275 = vpop.f32.mrf.mxu0
      %v2276 = vadd.f32 0.0, %v2275
      %v2277 = vpop.f32.mrf.mxu0
      %v2278 = vadd.f32 0.0, %v2277
      %v2279 = vpop.f32.mrf.mxu0
      %v2280 = vadd.f32 0.0, %v2279
      %v2281 = vpop.f32.mrf.mxu0
      %v2282 = vadd.f32 0.0, %v2281
      %2283 = vmatprep.mubr.bf16.mxu0 0
      %2284 = vmatmul.mubr.bf16.gmra.mxu0 %v2063
      %v2285 = vpop.f32.mrf.mxu0
      %v2286 = vpop.f32.mrf.mxu0
      %v2287 = vadd.f32 0.0, %v2286
      %v2288 = vpop.f32.mrf.mxu0
      %v2289 = vpop.f32.mrf.mxu0
      %2290 = vmatprep.mubr.bf16.mxu0 0
      %2291 = vmatmul.mubr.bf16.gmra.mxu0 %v2066
      %v2292 = vpop.f32.mrf.mxu0
      %v2293 = vadd.f32 0.0, %v2292
      %v2294 = vpop.f32.mrf.mxu0
      %v2295 = vadd.f32 0.0, %v2294
      %v2296 = vpop.f32.mrf.mxu0
      %v2297 = vadd.f32 0.0, %v2296
      %v2298 = vpop.f32.mrf.mxu0
      %v2299 = vadd.f32 0.0, %v2298
      %2300 = vmatprep.mubr.bf16.mxu0 0
      %2301 = vmatmul.mubr.bf16.gmra.mxu0 %v2069
      %v2302 = vpop.f32.mrf.mxu0
      %v2303 = vpop.f32.mrf.mxu0
      %v2304 = vadd.f32 0.0, %v2303
      %v2305 = vpop.f32.mrf.mxu0
      %v2306 = vpop.f32.mrf.mxu0
      %2307 = vmatprep.mubr.bf16.mxu0 0
      %2308 = vmatmul.mubr.bf16.gmra.mxu0 %v2072
      %v2309 = vpop.f32.mrf.mxu0
      %v2310 = vadd.f32 0.0, %v2309
      %v2311 = vpop.f32.mrf.mxu0
      %v2312 = vadd.f32 0.0, %v2311
      %v2313 = vpop.f32.mrf.mxu0
      %v2314 = vadd.f32 0.0, %v2313
      %v2315 = vpop.f32.mrf.mxu0
      %v2316 = vadd.f32 0.0, %v2315
      %2317 = vmatprep.mubr.bf16.mxu0 0
      %2318 = vmatmul.mubr.bf16.gmra.mxu0 %v2075
      %v2319 = vpop.f32.mrf.mxu0
      %v2320 = vpop.f32.mrf.mxu0
      %v2321 = vadd.f32 0.0, %v2320
      %v2322 = vpop.f32.mrf.mxu0
      %v2323 = vpop.f32.mrf.mxu0
      %2324 = vmatprep.mubr.bf16.mxu0 0
      %2325 = vmatmul.mubr.bf16.gmra.mxu0 %v2078
      %v2326 = vpop.f32.mrf.mxu0
      %v2327 = vadd.f32 0.0, %v2326
      %v2328 = vpop.f32.mrf.mxu0
      %v2329 = vadd.f32 0.0, %v2328
      %v2330 = vpop.f32.mrf.mxu0
      %v2331 = vadd.f32 0.0, %v2330
      %v2332 = vpop.f32.mrf.mxu0
      %v2333 = vadd.f32 0.0, %v2332
      %2334 = vmatprep.mubr.bf16.mxu0 0
      %2335 = vmatmul.mubr.bf16.gmra.mxu0 %v2081
      %v2336 = vpop.f32.mrf.mxu0
      %v2337 = vpop.f32.mrf.mxu0
      %v2338 = vadd.f32 0.0, %v2337
      %v2339 = vpop.f32.mrf.mxu0
      %v2340 = vpop.f32.mrf.mxu0
      %2341 = vmatprep.mubr.bf16.mxu0 0
      %2342 = vmatmul.mubr.bf16.gmra.mxu0 %v2084
      %v2343 = vpop.f32.mrf.mxu0
      %v2344 = vadd.f32 0.0, %v2343
      %v2345 = vpop.f32.mrf.mxu0
      %v2346 = vadd.f32 0.0, %v2345
      %v2347 = vpop.f32.mrf.mxu0
      %v2348 = vadd.f32 0.0, %v2347
      %v2349 = vpop.f32.mrf.mxu0
      %v2350 = vadd.f32 0.0, %v2349
      %2351 = vmatprep.mubr.bf16.mxu0 0
      %2352 = vmatmul.mubr.bf16.gmra.mxu0 %v2087
      %v2353 = vpop.f32.mrf.mxu0
      %v2354 = vpop.f32.mrf.mxu0
      %v2355 = vadd.f32 0.0, %v2354
      %v2356 = vpop.f32.mrf.mxu0
      %v2357 = vpop.f32.mrf.mxu0
      %2358 = vmatprep.mubr.bf16.mxu0 0
      %2359 = vmatmul.mubr.bf16.gmra.mxu0 %v2090
      %v2360 = vpop.f32.mrf.mxu0
      %v2361 = vadd.f32 0.0, %v2360
      %v2362 = vpop.f32.mrf.mxu0
      %v2363 = vadd.f32 0.0, %v2362
      %v2364 = vpop.f32.mrf.mxu0
      %v2365 = vadd.f32 0.0, %v2364
      %v2366 = vpop.f32.mrf.mxu0
      %v2367 = vadd.f32 0.0, %v2366
      %2368 = vmatprep.mubr.bf16.mxu0 0
      %2369 = vmatmul.mubr.bf16.gmra.mxu0 %v2093
      %v2370 = vpop.f32.mrf.mxu0
      %v2371 = vpop.f32.mrf.mxu0
      %v2372 = vadd.f32 0.0, %v2371
      %v2373 = vpop.f32.mrf.mxu0
      %v2374 = vpop.f32.mrf.mxu0
      %2375 = vmatprep.mubr.bf16.mxu0 0
      %2376 = vmatmul.mubr.bf16.gmra.mxu0 %v2096
      %v2377 = vpop.f32.mrf.mxu0
      %v2378 = vadd.f32 0.0, %v2377
      %v2379 = vpop.f32.mrf.mxu0
      %v2380 = vadd.f32 0.0, %v2379
      %v2381 = vpop.f32.mrf.mxu0
      %v2382 = vadd.f32 0.0, %v2381
      %v2383 = vpop.f32.mrf.mxu0
      %v2384 = vadd.f32 0.0, %v2383
      %2385 = vmatprep.mubr.bf16.mxu0 0
      %2386 = vmatmul.mubr.bf16.gmra.mxu0 %v2099
      %v2387 = vpop.f32.mrf.mxu0
      %v2388 = vpop.f32.mrf.mxu0
      %v2389 = vadd.f32 0.0, %v2388
      %v2390 = vpop.f32.mrf.mxu0
      %v2391 = vpop.f32.mrf.mxu0
      %2392 = vmatprep.mubr.bf16.mxu0 0
      %2393 = vmatmul.mubr.bf16.gmra.mxu0 %v2102
      %v2394 = vpop.f32.mrf.mxu0
      %v2395 = vadd.f32 0.0, %v2394
      %v2396 = vpop.f32.mrf.mxu0
      %v2397 = vadd.f32 0.0, %v2396
      %v2398 = vpop.f32.mrf.mxu0
      %v2399 = vadd.f32 0.0, %v2398
      %v2400 = vpop.f32.mrf.mxu0
      %v2401 = vadd.f32 0.0, %v2400
      %2402 = vmatprep.mubr.bf16.mxu0 0
      %2403 = vmatmul.mubr.bf16.gmra.mxu0 %v2105
      %v2404 = vpop.f32.mrf.mxu0
      %v2405 = vpop.f32.mrf.mxu0
      %v2406 = vadd.f32 0.0, %v2405
      %v2407 = vpop.f32.mrf.mxu0
      %v2408 = vpop.f32.mrf.mxu0
      %2409 = vmatprep.mubr.bf16.mxu0 0
      %2410 = vmatmul.mubr.bf16.gmra.mxu0 %v2108
      %v2411 = vpop.f32.mrf.mxu0
      %v2412 = vadd.f32 0.0, %v2411
      %v2413 = vpop.f32.mrf.mxu0
      %v2414 = vadd.f32 0.0, %v2413
      %v2415 = vpop.f32.mrf.mxu0
      %v2416 = vadd.f32 0.0, %v2415
      %v2417 = vpop.f32.mrf.mxu0
      %v2418 = vadd.f32 0.0, %v2417
      %2419 = vmatprep.mubr.bf16.mxu0 0
      %2420 = vmatmul.mubr.bf16.gmra.mxu0 %v2111
      %v2421 = vpop.f32.mrf.mxu0
      %v2422 = vpop.f32.mrf.mxu0
      %v2423 = vadd.f32 0.0, %v2422
      %v2424 = vpop.f32.mrf.mxu0
      %v2425 = vpop.f32.mrf.mxu0
      %2426 = vdwg.mxu0
      %2427 = vmatprep.subr.bf16.mxu0 0
      %2428 = vmatpush1.bf16.msra.mxu0 0
      %2429 = vmatprep.subr.bf16.mxu0 0
      %2430 = vmatpush1.bf16.msra.mxu0 0
      %2431 = vmatprep.subr.bf16.mxu0 0
      %2432 = vmatpush1.bf16.msra.mxu0 0
      %2433 = vmatprep.subr.bf16.mxu0 0
      %2434 = vmatpush1.bf16.msra.mxu0 0
      %2435 = vmatprep.subr.bf16.mxu0 0
      %2436 = vmatpush1.bf16.msra.mxu0 0
      %2437 = vmatprep.subr.bf16.mxu0 0
      %2438 = vmatpush1.bf16.msra.mxu0 0
      %2439 = vmatprep.subr.bf16.mxu0 0
      %2440 = vmatpush1.bf16.msra.mxu0 0
      %2441 = vmatprep.subr.bf16.mxu0 0
      %2442 = vmatpush1.bf16.msra.mxu0 %v2120
      %2443 = vmatprep.subr.bf16.mxu0 0
      %2444 = vmatpush2.bf16.msra.mxu0 0
      %2445 = vmatprep.subr.bf16.mxu0 0
      %2446 = vmatpush2.bf16.msra.mxu0 0
      %2447 = vmatprep.subr.bf16.mxu0 0
      %2448 = vmatpush2.bf16.msra.mxu0 0
      %2449 = vmatprep.subr.bf16.mxu0 0
      %2450 = vmatpush2.bf16.msra.mxu0 0
      %2451 = vmatprep.subr.bf16.mxu0 0
      %2452 = vmatpush2.bf16.msra.mxu0 0
      %2453 = vmatprep.subr.bf16.mxu0 0
      %2454 = vmatpush2.bf16.msra.mxu0 0
      %2455 = vmatprep.subr.bf16.mxu0 0
      %2456 = vmatpush2.bf16.msra.mxu0 0
      %2457 = vmatprep.subr.bf16.mxu0 0
      %2458 = vmatpush2.bf16.msra.mxu0 0
      %2459 = vmatprep.mubr.bf16.mxu0 0
      %2460 = vmatmul.mubr.bf16.gmra.mxu0 %v2018
      %v2461 = vpop.f32.mrf.mxu0
      %v2462 = vadd.f32 0.0, %v2461
      %v2463 = vpop.f32.mrf.mxu0
      %v2464 = vpop.f32.mrf.mxu0
      %v2465 = vadd.f32 0.0, %v2464
      %v2466 = vpop.f32.mrf.mxu0
      %2467 = vmatprep.mubr.bf16.mxu0 0
      %2468 = vmatmul.mubr.bf16.gmra.mxu0 %v2021
      %v2469 = vpop.f32.mrf.mxu0
      %v2470 = vadd.f32 0.0, %v2469
      %v2471 = vpop.f32.mrf.mxu0
      %v2472 = vpop.f32.mrf.mxu0
      %v2473 = vpop.f32.mrf.mxu0
      %2474 = vmatprep.mubr.bf16.mxu0 0
      %2475 = vmatmul.mubr.bf16.gmra.mxu0 %v2024
      %v2476 = vpop.f32.mrf.mxu0
      %v2477 = vadd.f32 0.0, %v2476
      %v2478 = vpop.f32.mrf.mxu0
      %v2479 = vpop.f32.mrf.mxu0
      %v2480 = vadd.f32 0.0, %v2479
      %v2481 = vpop.f32.mrf.mxu0
      %2482 = vmatprep.mubr.bf16.mxu0 0
      %2483 = vmatmul.mubr.bf16.gmra.mxu0 %v2027
      %v2484 = vpop.f32.mrf.mxu0
      %v2485 = vadd.f32 0.0, %v2484
      %v2486 = vpop.f32.mrf.mxu0
      %v2487 = vpop.f32.mrf.mxu0
      %v2488 = vpop.f32.mrf.mxu0
      %2489 = vmatprep.mubr.bf16.mxu0 0
      %2490 = vmatmul.mubr.bf16.gmra.mxu0 %v2030
      %v2491 = vpop.f32.mrf.mxu0
      %v2492 = vadd.f32 0.0, %v2491
      %v2493 = vpop.f32.mrf.mxu0
      %v2494 = vpop.f32.mrf.mxu0
      %v2495 = vadd.f32 0.0, %v2494
      %v2496 = vpop.f32.mrf.mxu0
      %2497 = vmatprep.mubr.bf16.mxu0 0
      %2498 = vmatmul.mubr.bf16.gmra.mxu0 %v2033
      %v2499 = vpop.f32.mrf.mxu0
      %v2500 = vadd.f32 0.0, %v2499
      %v2501 = vpop.f32.mrf.mxu0
      %v2502 = vpop.f32.mrf.mxu0
      %v2503 = vpop.f32.mrf.mxu0
      %2504 = vmatprep.mubr.bf16.mxu0 0
      %2505 = vmatmul.mubr.bf16.gmra.mxu0 %v2036
      %v2506 = vpop.f32.mrf.mxu0
      %v2507 = vadd.f32 0.0, %v2506
      %v2508 = vpop.f32.mrf.mxu0
      %v2509 = vpop.f32.mrf.mxu0
      %v2510 = vadd.f32 0.0, %v2509
      %v2511 = vpop.f32.mrf.mxu0
      %2512 = vmatprep.mubr.bf16.mxu0 0
      %2513 = vmatmul.mubr.bf16.gmra.mxu0 %v2039
      %v2514 = vpop.f32.mrf.mxu0
      %v2515 = vadd.f32 0.0, %v2514
      %v2516 = vpop.f32.mrf.mxu0
      %v2517 = vpop.f32.mrf.mxu0
      %v2518 = vpop.f32.mrf.mxu0
      %2519 = vmatprep.mubr.bf16.mxu0 0
      %2520 = vmatmul.mubr.bf16.gmra.mxu0 %v2042
      %v2521 = vpop.f32.mrf.mxu0
      %v2522 = vadd.f32 0.0, %v2521
      %v2523 = vpop.f32.mrf.mxu0
      %v2524 = vpop.f32.mrf.mxu0
      %v2525 = vadd.f32 0.0, %v2524
      %v2526 = vpop.f32.mrf.mxu0
      %2527 = vmatprep.mubr.bf16.mxu0 0
      %2528 = vmatmul.mubr.bf16.gmra.mxu0 %v2045
      %v2529 = vpop.f32.mrf.mxu0
      %v2530 = vadd.f32 0.0, %v2529
      %v2531 = vpop.f32.mrf.mxu0
      %v2532 = vpop.f32.mrf.mxu0
      %v2533 = vpop.f32.mrf.mxu0
      %2534 = vmatprep.mubr.bf16.mxu0 0
      %2535 = vmatmul.mubr.bf16.gmra.mxu0 %v2048
      %v2536 = vpop.f32.mrf.mxu0
      %v2537 = vadd.f32 0.0, %v2536
      %v2538 = vpop.f32.mrf.mxu0
      %v2539 = vpop.f32.mrf.mxu0
      %v2540 = vadd.f32 0.0, %v2539
      %v2541 = vpop.f32.mrf.mxu0
      %2542 = vmatprep.mubr.bf16.mxu0 0
      %2543 = vmatmul.mubr.bf16.gmra.mxu0 %v2051
      %v2544 = vpop.f32.mrf.mxu0
      %v2545 = vadd.f32 0.0, %v2544
      %v2546 = vpop.f32.mrf.mxu0
      %v2547 = vpop.f32.mrf.mxu0
      %v2548 = vpop.f32.mrf.mxu0
      %2549 = vmatprep.mubr.bf16.mxu0 0
      %2550 = vmatmul.mubr.bf16.gmra.mxu0 %v2054
      %v2551 = vpop.f32.mrf.mxu0
      %v2552 = vadd.f32 0.0, %v2551
      %v2553 = vpop.f32.mrf.mxu0
      %v2554 = vpop.f32.mrf.mxu0
      %v2555 = vadd.f32 0.0, %v2554
      %v2556 = vpop.f32.mrf.mxu0
      %2557 = vmatprep.mubr.bf16.mxu0 0
      %2558 = vmatmul.mubr.bf16.gmra.mxu0 %v2057
      %v2559 = vpop.f32.mrf.mxu0
      %v2560 = vadd.f32 0.0, %v2559
      %v2561 = vpop.f32.mrf.mxu0
      %v2562 = vpop.f32.mrf.mxu0
      %v2563 = vpop.f32.mrf.mxu0
      %2564 = vmatprep.mubr.bf16.mxu0 0
      %2565 = vmatmul.mubr.bf16.gmra.mxu0 %v2060
      %v2566 = vpop.f32.mrf.mxu0
      %v2567 = vadd.f32 0.0, %v2566
      %v2568 = vpop.f32.mrf.mxu0
      %v2569 = vpop.f32.mrf.mxu0
      %v2570 = vadd.f32 0.0, %v2569
      %v2571 = vpop.f32.mrf.mxu0
      %2572 = vmatprep.mubr.bf16.mxu0 0
      %2573 = vmatmul.mubr.bf16.gmra.mxu0 %v2063
      %v2574 = vpop.f32.mrf.mxu0
      %v2575 = vadd.f32 0.0, %v2574
      %v2576 = vpop.f32.mrf.mxu0
      %v2577 = vpop.f32.mrf.mxu0
      %v2578 = vpop.f32.mrf.mxu0
      %2579 = vmatprep.mubr.bf16.mxu0 0
      %2580 = vmatmul.mubr.bf16.gmra.mxu0 %v2066
      %v2581 = vpop.f32.mrf.mxu0
      %v2582 = vadd.f32 0.0, %v2581
      %v2583 = vpop.f32.mrf.mxu0
      %v2584 = vpop.f32.mrf.mxu0
      %v2585 = vadd.f32 0.0, %v2584
      %v2586 = vpop.f32.mrf.mxu0
      %2587 = vmatprep.mubr.bf16.mxu0 0
      %2588 = vmatmul.mubr.bf16.gmra.mxu0 %v2069
      %v2589 = vpop.f32.mrf.mxu0
      %v2590 = vadd.f32 0.0, %v2589
      %v2591 = vpop.f32.mrf.mxu0
      %v2592 = vpop.f32.mrf.mxu0
      %v2593 = vpop.f32.mrf.mxu0
      %2594 = vmatprep.mubr.bf16.mxu0 0
      %2595 = vmatmul.mubr.bf16.gmra.mxu0 %v2072
      %v2596 = vpop.f32.mrf.mxu0
      %v2597 = vadd.f32 0.0, %v2596
      %v2598 = vpop.f32.mrf.mxu0
      %v2599 = vpop.f32.mrf.mxu0
      %v2600 = vadd.f32 0.0, %v2599
      %v2601 = vpop.f32.mrf.mxu0
      %2602 = vmatprep.mubr.bf16.mxu0 0
      %2603 = vmatmul.mubr.bf16.gmra.mxu0 %v2075
      %v2604 = vpop.f32.mrf.mxu0
      %v2605 = vadd.f32 0.0, %v2604
      %v2606 = vpop.f32.mrf.mxu0
      %v2607 = vpop.f32.mrf.mxu0
      %v2608 = vpop.f32.mrf.mxu0
      %2609 = vmatprep.mubr.bf16.mxu0 0
      %2610 = vmatmul.mubr.bf16.gmra.mxu0 %v2078
      %v2611 = vpop.f32.mrf.mxu0
      %v2612 = vadd.f32 0.0, %v2611
      %v2613 = vpop.f32.mrf.mxu0
      %v2614 = vpop.f32.mrf.mxu0
      %v2615 = vadd.f32 0.0, %v2614
      %v2616 = vpop.f32.mrf.mxu0
      %2617 = vmatprep.mubr.bf16.mxu0 0
      %2618 = vmatmul.mubr.bf16.gmra.mxu0 %v2081
      %v2619 = vpop.f32.mrf.mxu0
      %v2620 = vadd.f32 0.0, %v2619
      %v2621 = vpop.f32.mrf.mxu0
      %v2622 = vpop.f32.mrf.mxu0
      %v2623 = vpop.f32.mrf.mxu0
      %2624 = vmatprep.mubr.bf16.mxu0 0
      %2625 = vmatmul.mubr.bf16.gmra.mxu0 %v2084
      %v2626 = vpop.f32.mrf.mxu0
      %v2627 = vadd.f32 0.0, %v2626
      %v2628 = vpop.f32.mrf.mxu0
      %v2629 = vpop.f32.mrf.mxu0
      %v2630 = vadd.f32 0.0, %v2629
      %v2631 = vpop.f32.mrf.mxu0
      %2632 = vmatprep.mubr.bf16.mxu0 0
      %2633 = vmatmul.mubr.bf16.gmra.mxu0 %v2087
      %v2634 = vpop.f32.mrf.mxu0
      %v2635 = vadd.f32 0.0, %v2634
      %v2636 = vpop.f32.mrf.mxu0
      %v2637 = vpop.f32.mrf.mxu0
      %v2638 = vpop.f32.mrf.mxu0
      %2639 = vmatprep.mubr.bf16.mxu0 0
      %2640 = vmatmul.mubr.bf16.gmra.mxu0 %v2090
      %v2641 = vpop.f32.mrf.mxu0
      %v2642 = vadd.f32 0.0, %v2641
      %v2643 = vpop.f32.mrf.mxu0
      %v2644 = vpop.f32.mrf.mxu0
      %v2645 = vadd.f32 0.0, %v2644
      %v2646 = vpop.f32.mrf.mxu0
      %2647 = vmatprep.mubr.bf16.mxu0 0
      %2648 = vmatmul.mubr.bf16.gmra.mxu0 %v2093
      %v2649 = vpop.f32.mrf.mxu0
      %v2650 = vadd.f32 0.0, %v2649
      %v2651 = vpop.f32.mrf.mxu0
      %v2652 = vpop.f32.mrf.mxu0
      %v2653 = vpop.f32.mrf.mxu0
      %2654 = vmatprep.mubr.bf16.mxu0 0
      %2655 = vmatmul.mubr.bf16.gmra.mxu0 %v2096
      %v2656 = vpop.f32.mrf.mxu0
      %v2657 = vadd.f32 0.0, %v2656
      %v2658 = vpop.f32.mrf.mxu0
      %v2659 = vpop.f32.mrf.mxu0
      %v2660 = vadd.f32 0.0, %v2659
      %v2661 = vpop.f32.mrf.mxu0
      %2662 = vmatprep.mubr.bf16.mxu0 0
      %2663 = vmatmul.mubr.bf16.gmra.mxu0 %v2099
      %v2664 = vpop.f32.mrf.mxu0
      %v2665 = vadd.f32 0.0, %v2664
      %v2666 = vpop.f32.mrf.mxu0
      %v2667 = vpop.f32.mrf.mxu0
      %v2668 = vpop.f32.mrf.mxu0
      %2669 = vmatprep.mubr.bf16.mxu0 0
      %2670 = vmatmul.mubr.bf16.gmra.mxu0 %v2102
      %v2671 = vpop.f32.mrf.mxu0
      %v2672 = vadd.f32 0.0, %v2671
      %v2673 = vpop.f32.mrf.mxu0
      %v2674 = vpop.f32.mrf.mxu0
      %v2675 = vadd.f32 0.0, %v2674
      %v2676 = vpop.f32.mrf.mxu0
      %2677 = vmatprep.mubr.bf16.mxu0 0
      %2678 = vmatmul.mubr.bf16.gmra.mxu0 %v2105
      %v2679 = vpop.f32.mrf.mxu0
      %v2680 = vadd.f32 0.0, %v2679
      %v2681 = vpop.f32.mrf.mxu0
      %v2682 = vpop.f32.mrf.mxu0
      %v2683 = vpop.f32.mrf.mxu0
      %2684 = vmatprep.mubr.bf16.mxu0 0
      %2685 = vmatmul.mubr.bf16.gmra.mxu0 %v2108
      %v2686 = vpop.f32.mrf.mxu0
      %v2687 = vadd.f32 0.0, %v2686
      %v2688 = vpop.f32.mrf.mxu0
      %v2689 = vpop.f32.mrf.mxu0
      %v2690 = vadd.f32 0.0, %v2689
      %v2691 = vpop.f32.mrf.mxu0
      %2692 = vmatprep.mubr.bf16.mxu0 0
      %2693 = vmatmul.mubr.bf16.gmra.mxu0 %v2111
      %v2694 = vpop.f32.mrf.mxu0
      %v2695 = vadd.f32 0.0, %v2694
      %v2696 = vpop.f32.mrf.mxu0
      %v2697 = vpop.f32.mrf.mxu0
      %v2698 = vpop.f32.mrf.mxu0
      %2699 = vdwg.mxu0
      %v2700 = vadd.f32 %v1231, %v2157
      %v2701 = vadd.f32 %v1233, %v2159
      %v2702 = vadd.f32 %v1536, %v2462
      %v2703 = vadd.f32 %v1235, %v2161
      %v2704 = vadd.f32 %v1237, %v2163
      %v2705 = vadd.f32 %v1539, %v2465
      %v2706 = vadd.f32 %v1242, %v2168
      %v2707 = vadd.f32 %v1544, %v2470
      %v2708 = vadd.f32 %v1248, %v2174
      %v2709 = vadd.f32 %v1250, %v2176
      %v2710 = vadd.f32 %v1551, %v2477
      %v2711 = vadd.f32 %v1252, %v2178
      %v2712 = vadd.f32 %v1254, %v2180
      %v2713 = vadd.f32 %v1554, %v2480
      %v2714 = vadd.f32 %v1259, %v2185
      %v2715 = vadd.f32 %v1559, %v2485
      %v2716 = vadd.f32 %v1265, %v2191
      %v2717 = vadd.f32 %v1267, %v2193
      %v2718 = vadd.f32 %v1566, %v2492
      %v2719 = vadd.f32 %v1269, %v2195
      %v2720 = vadd.f32 %v1271, %v2197
      %v2721 = vadd.f32 %v1569, %v2495
      %v2722 = vadd.f32 %v1276, %v2202
      %v2723 = vadd.f32 %v1574, %v2500
      %v2724 = vadd.f32 %v1282, %v2208
      %v2725 = vadd.f32 %v1284, %v2210
      %v2726 = vadd.f32 %v1581, %v2507
      %v2727 = vadd.f32 %v1286, %v2212
      %v2728 = vadd.f32 %v1288, %v2214
      %v2729 = vadd.f32 %v1584, %v2510
      %v2730 = vadd.f32 %v1293, %v2219
      %v2731 = vadd.f32 %v1589, %v2515
      %v2732 = vadd.f32 %v1299, %v2225
      %v2733 = vadd.f32 %v1301, %v2227
      %v2734 = vadd.f32 %v1596, %v2522
      %v2735 = vadd.f32 %v1303, %v2229
      %v2736 = vadd.f32 %v1305, %v2231
      %v2737 = vadd.f32 %v1599, %v2525
      %v2738 = vadd.f32 %v1310, %v2236
      %v2739 = vadd.f32 %v1604, %v2530
      %v2740 = vadd.f32 %v1316, %v2242
      %v2741 = vadd.f32 %v1318, %v2244
      %v2742 = vadd.f32 %v1611, %v2537
      %v2743 = vadd.f32 %v1320, %v2246
      %v2744 = vadd.f32 %v1322, %v2248
      %v2745 = vadd.f32 %v1614, %v2540
      %v2746 = vadd.f32 %v1327, %v2253
      %v2747 = vadd.f32 %v1619, %v2545
      %v2748 = vadd.f32 %v1333, %v2259
      %v2749 = vadd.f32 %v1335, %v2261
      %v2750 = vadd.f32 %v1626, %v2552
      %v2751 = vadd.f32 %v1337, %v2263
      %v2752 = vadd.f32 %v1339, %v2265
      %v2753 = vadd.f32 %v1629, %v2555
      %v2754 = vadd.f32 %v1344, %v2270
      %v2755 = vadd.f32 %v1634, %v2560
      %v2756 = vadd.f32 %v1350, %v2276
      %v2757 = vadd.f32 %v1352, %v2278
      %v2758 = vadd.f32 %v1641, %v2567
      %v2759 = vadd.f32 %v1354, %v2280
      %v2760 = vadd.f32 %v1356, %v2282
      %v2761 = vadd.f32 %v1644, %v2570
      %v2762 = vadd.f32 %v1361, %v2287
      %v2763 = vadd.f32 %v1649, %v2575
      %v2764 = vadd.f32 %v1367, %v2293
      %v2765 = vadd.f32 %v1369, %v2295
      %v2766 = vadd.f32 %v1656, %v2582
      %v2767 = vadd.f32 %v1371, %v2297
      %v2768 = vadd.f32 %v1373, %v2299
      %v2769 = vadd.f32 %v1659, %v2585
      %v2770 = vadd.f32 %v1378, %v2304
      %v2771 = vadd.f32 %v1664, %v2590
      %v2772 = vadd.f32 %v1384, %v2310
      %v2773 = vadd.f32 %v1386, %v2312
      %v2774 = vadd.f32 %v1671, %v2597
      %v2775 = vadd.f32 %v1388, %v2314
      %v2776 = vadd.f32 %v1390, %v2316
      %v2777 = vadd.f32 %v1674, %v2600
      %v2778 = vadd.f32 %v1395, %v2321
      %v2779 = vadd.f32 %v1679, %v2605
      %v2780 = vadd.f32 %v1401, %v2327
      %v2781 = vadd.f32 %v1403, %v2329
      %v2782 = vadd.f32 %v1686, %v2612
      %v2783 = vadd.f32 %v1405, %v2331
      %v2784 = vadd.f32 %v1407, %v2333
      %v2785 = vadd.f32 %v1689, %v2615
      %v2786 = vadd.f32 %v1412, %v2338
      %v2787 = vadd.f32 %v1694, %v2620
      %v2788 = vadd.f32 %v1418, %v2344
      %v2789 = vadd.f32 %v1420, %v2346
      %v2790 = vadd.f32 %v1701, %v2627
      %v2791 = vadd.f32 %v1422, %v2348
      %v2792 = vadd.f32 %v1424, %v2350
      %v2793 = vadd.f32 %v1704, %v2630
      %v2794 = vadd.f32 %v1429, %v2355
      %v2795 = vadd.f32 %v1709, %v2635
      %v2796 = vadd.f32 %v1435, %v2361
      %v2797 = vadd.f32 %v1437, %v2363
      %v2798 = vadd.f32 %v1716, %v2642
      %v2799 = vadd.f32 %v1439, %v2365
      %v2800 = vadd.f32 %v1441, %v2367
      %v2801 = vadd.f32 %v1719, %v2645
      %v2802 = vadd.f32 %v1446, %v2372
      %v2803 = vadd.f32 %v1724, %v2650
      %v2804 = vadd.f32 %v1452, %v2378
      %v2805 = vadd.f32 %v1454, %v2380
      %v2806 = vadd.f32 %v1731, %v2657
      %v2807 = vadd.f32 %v1456, %v2382
      %v2808 = vadd.f32 %v1458, %v2384
      %v2809 = vadd.f32 %v1734, %v2660
      %v2810 = vadd.f32 %v1463, %v2389
      %v2811 = vadd.f32 %v1739, %v2665
      %v2812 = vadd.f32 %v1469, %v2395
      %v2813 = vadd.f32 %v1471, %v2397
      %v2814 = vadd.f32 %v1746, %v2672
      %v2815 = vadd.f32 %v1473, %v2399
      %v2816 = vadd.f32 %v1475, %v2401
      %v2817 = vadd.f32 %v1749, %v2675
      %v2818 = vadd.f32 %v1480, %v2406
      %v2819 = vadd.f32 %v1754, %v2680
      %v2820 = vadd.f32 %v1486, %v2412
      %v2821 = vadd.f32 %v1488, %v2414
      %v2822 = vadd.f32 %v1761, %v2687
      %v2823 = vadd.f32 %v1490, %v2416
      %v2824 = vadd.f32 %v1492, %v2418
      %v2825 = vadd.f32 %v1764, %v2690
      %v2826 = vadd.f32 %v1497, %v2423
      %v2827 = vadd.f32 %v1769, %v2695
      %vm2876 = vcmask 1046528
      %v2877 = vrot.slane %v2701, 1
      %v2878 = vrot.slane %v2704, 1
      %v2879 = vsel %vm2876, %v2877, %v2878
      %v2880 = vrot.slane %v2706, 1
      %v2881 = vsel %vm2876, %v2878, %v2880
      %v2882 = vrot.slane %v2709, 1
      %v2883 = vrot.slane %v2712, 1
      %v2884 = vsel %vm2876, %v2882, %v2883
      %v2885 = vrot.slane %v2714, 1
      %v2886 = vsel %vm2876, %v2883, %v2885
      %v2887 = vrot.slane %v2717, 1
      %v2888 = vrot.slane %v2720, 1
      %v2889 = vsel %vm2876, %v2887, %v2888
      %v2890 = vrot.slane %v2722, 1
      %v2891 = vsel %vm2876, %v2888, %v2890
      %v2892 = vrot.slane %v2725, 1
      %v2893 = vrot.slane %v2728, 1
      %v2894 = vsel %vm2876, %v2892, %v2893
      %v2895 = vrot.slane %v2730, 1
      %v2896 = vsel %vm2876, %v2893, %v2895
      %v2897 = vrot.slane %v2733, 1
      %v2898 = vrot.slane %v2736, 1
      %v2899 = vsel %vm2876, %v2897, %v2898
      %v2900 = vrot.slane %v2738, 1
      %v2901 = vsel %vm2876, %v2898, %v2900
      %v2902 = vrot.slane %v2741, 1
      %v2903 = vrot.slane %v2744, 1
      %v2904 = vsel %vm2876, %v2902, %v2903
      %v2905 = vrot.slane %v2746, 1
      %v2906 = vsel %vm2876, %v2903, %v2905
      %v2907 = vrot.slane %v2749, 1
      %v2908 = vrot.slane %v2752, 1
      %v2909 = vsel %vm2876, %v2907, %v2908
      %v2910 = vrot.slane %v2754, 1
      %v2911 = vsel %vm2876, %v2908, %v2910
      %v2912 = vrot.slane %v2757, 1
      %v2913 = vrot.slane %v2760, 1
      %v2914 = vsel %vm2876, %v2912, %v2913
      %v2915 = vrot.slane %v2762, 1
      %v2916 = vsel %vm2876, %v2913, %v2915
      %v2917 = vrot.slane %v2765, 1
      %v2918 = vrot.slane %v2768, 1
      %v2919 = vsel %vm2876, %v2917, %v2918
      %v2920 = vrot.slane %v2770, 1
      %v2921 = vsel %vm2876, %v2918, %v2920
      %v2922 = vrot.slane %v2773, 1
      %v2923 = vrot.slane %v2776, 1
      %v2924 = vsel %vm2876, %v2922, %v2923
      %v2925 = vrot.slane %v2778, 1
      %v2926 = vsel %vm2876, %v2923, %v2925
      %v2927 = vrot.slane %v2781, 1
      %v2928 = vrot.slane %v2784, 1
      %v2929 = vsel %vm2876, %v2927, %v2928
      %v2930 = vrot.slane %v2786, 1
      %v2931 = vsel %vm2876, %v2928, %v2930
      %v2932 = vrot.slane %v2789, 1
      %v2933 = vrot.slane %v2792, 1
      %v2934 = vsel %vm2876, %v2932, %v2933
      %v2935 = vrot.slane %v2794, 1
      %v2936 = vsel %vm2876, %v2933, %v2935
      %v2937 = vrot.slane %v2797, 1
      %v2938 = vrot.slane %v2800, 1
      %v2939 = vsel %vm2876, %v2937, %v2938
      %v2940 = vrot.slane %v2802, 1
      %v2941 = vsel %vm2876, %v2938, %v2940
      %v2942 = vrot.slane %v2805, 1
      %v2943 = vrot.slane %v2808, 1
      %v2944 = vsel %vm2876, %v2942, %v2943
      %v2945 = vrot.slane %v2810, 1
      %v2946 = vsel %vm2876, %v2943, %v2945
      %v2947 = vrot.slane %v2813, 1
      %v2948 = vrot.slane %v2816, 1
      %v2949 = vsel %vm2876, %v2947, %v2948
      %v2950 = vrot.slane %v2818, 1
      %v2951 = vsel %vm2876, %v2948, %v2950
      %v2952 = vrot.slane %v2821, 1
      %v2953 = vrot.slane %v2824, 1
      %v2954 = vsel %vm2876, %v2952, %v2953
      %v2955 = vrot.slane %v2826, 1
      %v2956 = vsel %vm2876, %v2953, %v2955
      %v2989 = vadd.f32 %v2700, %v2879
      %v2990 = vadd.f32 %v2703, %v2881
      %v2991 = vadd.f32 %v2708, %v2884
      %v2992 = vadd.f32 %v2711, %v2886
      %v2993 = vadd.f32 %v2716, %v2889
      %v2994 = vadd.f32 %v2719, %v2891
      %v2995 = vadd.f32 %v2724, %v2894
      %v2996 = vadd.f32 %v2727, %v2896
      %v2997 = vadd.f32 %v2732, %v2899
      %v2998 = vadd.f32 %v2735, %v2901
      %v2999 = vadd.f32 %v2740, %v2904
      %v3000 = vadd.f32 %v2743, %v2906
      %v3001 = vadd.f32 %v2748, %v2909
      %v3002 = vadd.f32 %v2751, %v2911
      %v3003 = vadd.f32 %v2756, %v2914
      %v3004 = vadd.f32 %v2759, %v2916
      %v3005 = vadd.f32 %v2764, %v2919
      %v3006 = vadd.f32 %v2767, %v2921
      %v3007 = vadd.f32 %v2772, %v2924
      %v3008 = vadd.f32 %v2775, %v2926
      %v3009 = vadd.f32 %v2780, %v2929
      %v3010 = vadd.f32 %v2783, %v2931
      %v3011 = vadd.f32 %v2788, %v2934
      %v3012 = vadd.f32 %v2791, %v2936
      %v3013 = vadd.f32 %v2796, %v2939
      %v3014 = vadd.f32 %v2799, %v2941
      %v3015 = vadd.f32 %v2804, %v2944
      %v3016 = vadd.f32 %v2807, %v2946
      %v3017 = vadd.f32 %v2812, %v2949
      %v3018 = vadd.f32 %v2815, %v2951
      %v3019 = vadd.f32 %v2820, %v2954
      %v3020 = vadd.f32 %v2823, %v2956
      %vm3069 = vcmask 1045504
      %v3070 = vrot.slane %v2702, 2
      %v3071 = vrot.slane %v2705, 2
      %v3072 = vsel %vm3069, %v3070, %v3071
      %v3073 = vrot.slane %v2707, 2
      %v3074 = vsel %vm3069, %v3071, %v3073
      %v3075 = vrot.slane %v2710, 2
      %v3076 = vrot.slane %v2713, 2
      %v3077 = vsel %vm3069, %v3075, %v3076
      %v3078 = vrot.slane %v2715, 2
      %v3079 = vsel %vm3069, %v3076, %v3078
      %v3080 = vrot.slane %v2718, 2
      %v3081 = vrot.slane %v2721, 2
      %v3082 = vsel %vm3069, %v3080, %v3081
      %v3083 = vrot.slane %v2723, 2
      %v3084 = vsel %vm3069, %v3081, %v3083
      %v3085 = vrot.slane %v2726, 2
      %v3086 = vrot.slane %v2729, 2
      %v3087 = vsel %vm3069, %v3085, %v3086
      %v3088 = vrot.slane %v2731, 2
      %v3089 = vsel %vm3069, %v3086, %v3088
      %v3090 = vrot.slane %v2734, 2
      %v3091 = vrot.slane %v2737, 2
      %v3092 = vsel %vm3069, %v3090, %v3091
      %v3093 = vrot.slane %v2739, 2
      %v3094 = vsel %vm3069, %v3091, %v3093
      %v3095 = vrot.slane %v2742, 2
      %v3096 = vrot.slane %v2745, 2
      %v3097 = vsel %vm3069, %v3095, %v3096
      %v3098 = vrot.slane %v2747, 2
      %v3099 = vsel %vm3069, %v3096, %v3098
      %v3100 = vrot.slane %v2750, 2
      %v3101 = vrot.slane %v2753, 2
      %v3102 = vsel %vm3069, %v3100, %v3101
      %v3103 = vrot.slane %v2755, 2
      %v3104 = vsel %vm3069, %v3101, %v3103
      %v3105 = vrot.slane %v2758, 2
      %v3106 = vrot.slane %v2761, 2
      %v3107 = vsel %vm3069, %v3105, %v3106
      %v3108 = vrot.slane %v2763, 2
      %v3109 = vsel %vm3069, %v3106, %v3108
      %v3110 = vrot.slane %v2766, 2
      %v3111 = vrot.slane %v2769, 2
      %v3112 = vsel %vm3069, %v3110, %v3111
      %v3113 = vrot.slane %v2771, 2
      %v3114 = vsel %vm3069, %v3111, %v3113
      %v3115 = vrot.slane %v2774, 2
      %v3116 = vrot.slane %v2777, 2
      %v3117 = vsel %vm3069, %v3115, %v3116
      %v3118 = vrot.slane %v2779, 2
      %v3119 = vsel %vm3069, %v3116, %v3118
      %v3120 = vrot.slane %v2782, 2
      %v3121 = vrot.slane %v2785, 2
      %v3122 = vsel %vm3069, %v3120, %v3121
      %v3123 = vrot.slane %v2787, 2
      %v3124 = vsel %vm3069, %v3121, %v3123
      %v3125 = vrot.slane %v2790, 2
      %v3126 = vrot.slane %v2793, 2
      %v3127 = vsel %vm3069, %v3125, %v3126
      %v3128 = vrot.slane %v2795, 2
      %v3129 = vsel %vm3069, %v3126, %v3128
      %v3130 = vrot.slane %v2798, 2
      %v3131 = vrot.slane %v2801, 2
      %v3132 = vsel %vm3069, %v3130, %v3131
      %v3133 = vrot.slane %v2803, 2
      %v3134 = vsel %vm3069, %v3131, %v3133
      %v3135 = vrot.slane %v2806, 2
      %v3136 = vrot.slane %v2809, 2
      %v3137 = vsel %vm3069, %v3135, %v3136
      %v3138 = vrot.slane %v2811, 2
      %v3139 = vsel %vm3069, %v3136, %v3138
      %v3140 = vrot.slane %v2814, 2
      %v3141 = vrot.slane %v2817, 2
      %v3142 = vsel %vm3069, %v3140, %v3141
      %v3143 = vrot.slane %v2819, 2
      %v3144 = vsel %vm3069, %v3141, %v3143
      %v3145 = vrot.slane %v2822, 2
      %v3146 = vrot.slane %v2825, 2
      %v3147 = vsel %vm3069, %v3145, %v3146
      %v3148 = vrot.slane %v2827, 2
      %v3149 = vsel %vm3069, %v3146, %v3148
      %v3182 = vadd.f32 %v2989, %v3072
      %v3183 = vadd.f32 %v2990, %v3074
      %v3184 = vadd.f32 %v2991, %v3077
      %v3185 = vadd.f32 %v2992, %v3079
      %v3186 = vadd.f32 %v2993, %v3082
      %v3187 = vadd.f32 %v2994, %v3084
      %v3188 = vadd.f32 %v2995, %v3087
      %v3189 = vadd.f32 %v2996, %v3089
      %v3190 = vadd.f32 %v2997, %v3092
      %v3191 = vadd.f32 %v2998, %v3094
      %v3192 = vadd.f32 %v2999, %v3097
      %v3193 = vadd.f32 %v3000, %v3099
      %v3194 = vadd.f32 %v3001, %v3102
      %v3195 = vadd.f32 %v3002, %v3104
      %v3196 = vadd.f32 %v3003, %v3107
      %v3197 = vadd.f32 %v3004, %v3109
      %v3198 = vadd.f32 %v3005, %v3112
      %v3199 = vadd.f32 %v3006, %v3114
      %v3200 = vadd.f32 %v3007, %v3117
      %v3201 = vadd.f32 %v3008, %v3119
      %v3202 = vadd.f32 %v3009, %v3122
      %v3203 = vadd.f32 %v3010, %v3124
      %v3204 = vadd.f32 %v3011, %v3127
      %v3205 = vadd.f32 %v3012, %v3129
      %v3206 = vadd.f32 %v3013, %v3132
      %v3207 = vadd.f32 %v3014, %v3134
      %v3208 = vadd.f32 %v3015, %v3137
      %v3209 = vadd.f32 %v3016, %v3139
      %v3210 = vadd.f32 %v3017, %v3142
      %v3211 = vadd.f32 %v3018, %v3144
      %v3212 = vadd.f32 %v3019, %v3147
      %v3213 = vadd.f32 %v3020, %v3149
      %3214 = vst [vmem:[%s210] sm:$0xff] %v3182
      %3215 = vst [vmem:[%s210 + $0x8] sm:$0xff] %v3183
      %3216 = vst [vmem:[%s210 + $0x10] sm:$0xff] %v3184
      %3217 = vst [vmem:[%s210 + $0x18] sm:$0xff] %v3185
      %3218 = vst [vmem:[%s210 + $0x20] sm:$0xff] %v3186
      %3219 = vst [vmem:[%s210 + $0x28] sm:$0xff] %v3187
      %3220 = vst [vmem:[%s210 + $0x30] sm:$0xff] %v3188
      %3221 = vst [vmem:[%s210 + $0x38] sm:$0xff] %v3189
      %3222 = vst [vmem:[%s210 + $0x40] sm:$0xff] %v3190
      %3223 = vst [vmem:[%s210 + $0x48] sm:$0xff] %v3191
      %3224 = vst [vmem:[%s210 + $0x50] sm:$0xff] %v3192
      %3225 = vst [vmem:[%s210 + $0x58] sm:$0xff] %v3193
      %3226 = vst [vmem:[%s210 + $0x60] sm:$0xff] %v3194
      %3227 = vst [vmem:[%s210 + $0x68] sm:$0xff] %v3195
      %3228 = vst [vmem:[%s210 + $0x70] sm:$0xff] %v3196
      %3229 = vst [vmem:[%s210 + $0x78] sm:$0xff] %v3197
      %3230 = vst [vmem:[%s210 + $0x80] sm:$0xff] %v3198
      %3231 = vst [vmem:[%s210 + $0x88] sm:$0xff] %v3199
      %3232 = vst [vmem:[%s210 + $0x90] sm:$0xff] %v3200
      %3233 = vst [vmem:[%s210 + $0x98] sm:$0xff] %v3201
      %3234 = vst [vmem:[%s210 + $0xa0] sm:$0xff] %v3202
      %3235 = vst [vmem:[%s210 + $0xa8] sm:$0xff] %v3203
      %3236 = vst [vmem:[%s210 + $0xb0] sm:$0xff] %v3204
      %3237 = vst [vmem:[%s210 + $0xb8] sm:$0xff] %v3205
      %3238 = vst [vmem:[%s210 + $0xc0] sm:$0xff] %v3206
      %3239 = vst [vmem:[%s210 + $0xc8] sm:$0xff] %v3207
      %3240 = vst [vmem:[%s210 + $0xd0] sm:$0xff] %v3208
      %3241 = vst [vmem:[%s210 + $0xd8] sm:$0xff] %v3209
      %3242 = vst [vmem:[%s210 + $0xe0] sm:$0xff] %v3210
      %3243 = vst [vmem:[%s210 + $0xe8] sm:$0xff] %v3211
      %3244 = vst [vmem:[%s210 + $0xf0] sm:$0xff] %v3212
      %3245 = vst [vmem:[%s210 + $0xf8] sm:$0xff] %v3213
      %v3246 = vadd.f32 %v3182, %v3183
      %v3247 = vadd.f32 %v3246, %v3184
      %v3248 = vadd.f32 %v3247, %v3185
      %v3249 = vadd.f32 %v3248, %v3186
      %v3250 = vadd.f32 %v3249, %v3187
      %v3251 = vadd.f32 %v3250, %v3188
      %v3252 = vadd.f32 %v3251, %v3189
      %v3253 = vadd.f32 %v3252, %v3190
      %v3254 = vadd.f32 %v3253, %v3191
      %v3255 = vadd.f32 %v3254, %v3192
      %v3256 = vadd.f32 %v3255, %v3193
      %v3257 = vadd.f32 %v3256, %v3194
      %v3258 = vadd.f32 %v3257, %v3195
      %v3259 = vadd.f32 %v3258, %v3196
      %v3260 = vadd.f32 %v3259, %v3197
      %v3261 = vadd.f32 %v3260, %v3198
      %v3262 = vadd.f32 %v3261, %v3199
      %v3263 = vadd.f32 %v3262, %v3200
      %v3264 = vadd.f32 %v3263, %v3201
      %v3265 = vadd.f32 %v3264, %v3202
      %v3266 = vadd.f32 %v3265, %v3203
      %v3267 = vadd.f32 %v3266, %v3204
      %v3268 = vadd.f32 %v3267, %v3205
      %v3269 = vadd.f32 %v3268, %v3206
      %v3270 = vadd.f32 %v3269, %v3207
      %v3271 = vadd.f32 %v3270, %v3208
      %v3272 = vadd.f32 %v3271, %v3209
      %v3273 = vadd.f32 %v3272, %v3210
      %v3274 = vadd.f32 %v3273, %v3211
      %v3275 = vadd.f32 %v3274, %v3212
      %v3276 = vadd.f32 %v3275, %v3213
      %v3277 = vrot.slane %v3276, 4
      %v3278 = vadd.f32 %v3276, %v3277
      %v3279 = vrot.slane %v3278, 2
      %v3280 = vadd.f32 %v3278, %v3279
      %v3281 = vrot.slane %v3280, 1
      %v3282 = vadd.f32 %v3280, %v3281
      %v3283 = vmul.f32 %v3182, %v3182
      %v3284 = vmul.f32 %v3183, %v3183
      %v3285 = vmul.f32 %v3184, %v3184
      %v3286 = vmul.f32 %v3185, %v3185
      %v3287 = vmul.f32 %v3186, %v3186
      %v3288 = vmul.f32 %v3187, %v3187
      %v3289 = vmul.f32 %v3188, %v3188
      %v3290 = vmul.f32 %v3189, %v3189
      %v3291 = vmul.f32 %v3190, %v3190
      %v3292 = vmul.f32 %v3191, %v3191
      %v3293 = vmul.f32 %v3192, %v3192
      %v3294 = vmul.f32 %v3193, %v3193
      %v3295 = vmul.f32 %v3194, %v3194
      %v3296 = vmul.f32 %v3195, %v3195
      %v3297 = vmul.f32 %v3196, %v3196
      %v3298 = vmul.f32 %v3197, %v3197
      %v3299 = vmul.f32 %v3198, %v3198
      %v3300 = vmul.f32 %v3199, %v3199
      %v3301 = vmul.f32 %v3200, %v3200
      %v3302 = vmul.f32 %v3201, %v3201
      %v3303 = vmul.f32 %v3202, %v3202
      %v3304 = vmul.f32 %v3203, %v3203
      %v3305 = vmul.f32 %v3204, %v3204
      %v3306 = vmul.f32 %v3205, %v3205
      %v3307 = vmul.f32 %v3206, %v3206
      %v3308 = vmul.f32 %v3207, %v3207
      %v3309 = vmul.f32 %v3208, %v3208
      %v3310 = vmul.f32 %v3209, %v3209
      %v3311 = vmul.f32 %v3210, %v3210
      %v3312 = vmul.f32 %v3211, %v3211
      %v3313 = vmul.f32 %v3212, %v3212
      %v3314 = vmul.f32 %v3213, %v3213
      %v3315 = vadd.f32 %v3283, %v3284
      %v3316 = vadd.f32 %v3315, %v3285
      %v3317 = vadd.f32 %v3316, %v3286
      %v3318 = vadd.f32 %v3317, %v3287
      %v3319 = vadd.f32 %v3318, %v3288
      %v3320 = vadd.f32 %v3319, %v3289
      %v3321 = vadd.f32 %v3320, %v3290
      %v3322 = vadd.f32 %v3321, %v3291
      %v3323 = vadd.f32 %v3322, %v3292
      %v3324 = vadd.f32 %v3323, %v3293
      %v3325 = vadd.f32 %v3324, %v3294
      %v3326 = vadd.f32 %v3325, %v3295
      %v3327 = vadd.f32 %v3326, %v3296
      %v3328 = vadd.f32 %v3327, %v3297
      %v3329 = vadd.f32 %v3328, %v3298
      %v3330 = vadd.f32 %v3329, %v3299
      %v3331 = vadd.f32 %v3330, %v3300
      %v3332 = vadd.f32 %v3331, %v3301
      %v3333 = vadd.f32 %v3332, %v3302
      %v3334 = vadd.f32 %v3333, %v3303
      %v3335 = vadd.f32 %v3334, %v3304
      %v3336 = vadd.f32 %v3335, %v3305
      %v3337 = vadd.f32 %v3336, %v3306
      %v3338 = vadd.f32 %v3337, %v3307
      %v3339 = vadd.f32 %v3338, %v3308
      %v3340 = vadd.f32 %v3339, %v3309
      %v3341 = vadd.f32 %v3340, %v3310
      %v3342 = vadd.f32 %v3341, %v3311
      %v3343 = vadd.f32 %v3342, %v3312
      %v3344 = vadd.f32 %v3343, %v3313
      %v3345 = vadd.f32 %v3344, %v3314
      %v3346 = vrot.slane %v3345, 4
      %v3347 = vadd.f32 %v3345, %v3346
      %v3348 = vrot.slane %v3347, 2
      %v3349 = vadd.f32 %v3347, %v3348
      %v3350 = vrot.slane %v3349, 1
      %v3351 = vadd.f32 %v3349, %v3350
      %3352 = vst [vmem:[%s215] sm:$0xff] %v3282
      %3353 = vst [vmem:[%s219] sm:$0xff] %v3351
      %s3354 = smul.u32 32, %s16
      %p3355 = scmp.lt.s32.totalorder %s3354, 63
      %s3356 = scalar_select %p3355, %s3354, 63
      %s3357 = smul.addr %s3356, 8
      %s3358 = scalar_lea.vmem %s2, %s3357
      %p3359 = scmp.lt.s32.totalorder %s16, 1
      %s3360 = scalar_select %p3359, %s16, 1
      %s3361 = smul.addr %s3360, 8
      %s3362 = scalar_lea.vmem %s3, %s3361
      %p3363 = scmp.lt.s32.totalorder %s16, 1
      %s3364 = scalar_select %p3363, %s16, 1
      %s3365 = smul.addr %s3364, 8
      %s3366 = scalar_lea.vmem %s4, %s3365
      // Predicated region
      $region29: #{conv_block_forward.2} parent=27 // pred_check
        %p3367 = pneg %p81
      $region30: #{conv_block_forward.2} parent=27 // pred_check_branch
        %3369 = sbr.rel (%p3367) target = $region32
      $region31: #{conv_block_forward.2} parent=27 // pred_region
        %s3370 = smul.u32 32, %s16
      $region32: #{conv_block_forward.2} parent=27 // pred_fallthru
        _
      // Predicated region
      $region33: #{conv_block_forward.2} parent=27 // pred_check
        %p3371 = pneg %p107
      $region34: #{conv_block_forward.2} parent=27 // pred_check_branch
        %3373 = sbr.rel (%p3371) target = $region36
      $region35: #{conv_block_forward.2} parent=27 // pred_region
        _
      $region36: #{conv_block_forward.2} parent=27 // pred_fallthru
        _
      // Predicated region
      $region37: #{conv_block_forward.2} parent=27 // pred_check
        %p3374 = pneg %p133
      $region38: #{conv_block_forward.2} parent=27 // pred_check_branch
        %3376 = sbr.rel (%p3374) target = $region40
      $region39: #{conv_block_forward.2} parent=27 // pred_region
        _
      $region40: #{conv_block_forward.2} parent=27 // pred_fallthru
        _
    $region28: #{conv_block_forward.2} parent=5 // pred_fallthru
      _
    %p3377 = scmp.le.s32.totalorder 2, %s11
    // Predicated region
    $region41: #{conv_block_forward.2} parent=5 // pred_check
      %p3378 = pneg %p3377
    $region42: #{conv_block_forward.2} parent=5 // pred_check_branch
      %3380 = sbr.rel (%p3378) target = $region44
    $region43: #{conv_block_forward.2} parent=5 // pred_region
      %s3381 = ssub.s32 %s11, 2
      // Predicated region
      $region45: #{conv_block_forward.2} parent=43 // pred_check
        %p3382 = pneg %p87
      $region46: #{conv_block_forward.2} parent=43 // pred_check_branch
        %3384 = sbr.rel (%p3382) target = $region48
      $region47: #{conv_block_forward.2} parent=43 // pred_region
        %s3385 = smul.u32 32, %s17
        %p3386 = scmp.lt.s32.totalorder %s3385, 63
        %s3387 = scalar_select %p3386, %s3385, 63
        %s3388 = smul.addr %s3387, 8
        %s3389 = scalar_lea.vmem %s2, %s3388
      $region48: #{conv_block_forward.2} parent=43 // pred_fallthru
        _
      // Predicated region
      $region49: #{conv_block_forward.2} parent=43 // pred_check
        %p3390 = pneg %p113
      $region50: #{conv_block_forward.2} parent=43 // pred_check_branch
        %3392 = sbr.rel (%p3390) target = $region52
      $region51: #{conv_block_forward.2} parent=43 // pred_region
        %p3393 = scmp.lt.s32.totalorder %s17, 1
        %s3394 = scalar_select %p3393, %s17, 1
        %s3395 = smul.addr %s3394, 8
        %s3396 = scalar_lea.vmem %s3, %s3395
      $region52: #{conv_block_forward.2} parent=43 // pred_fallthru
        _
      // Predicated region
      $region53: #{conv_block_forward.2} parent=43 // pred_check
        %p3397 = pneg %p139
      $region54: #{conv_block_forward.2} parent=43 // pred_check_branch
        %3399 = sbr.rel (%p3397) target = $region56
      $region55: #{conv_block_forward.2} parent=43 // pred_region
        %p3400 = scmp.lt.s32.totalorder %s17, 1
        %s3401 = scalar_select %p3400, %s17, 1
        %s3402 = smul.addr %s3401, 8
        %s3403 = scalar_lea.vmem %s4, %s3402
      $region56: #{conv_block_forward.2} parent=43 // pred_fallthru
        _
    $region44: #{conv_block_forward.2} parent=5 // pred_fallthru
      _
  $region6: #{conv_block_forward.2} parent=0 // loop_footer
    %s15 = sadd.s32 1, %s11
  $region7: #{conv_block_forward.2} parent=0 // loop_footer_branch
    %10 = sbr.rel target = $region3
  $region8: #{conv_block_forward.2} parent=0 // loop_exit
    _

</llo_original>
